<compile_context>
chip_gen: v7x
topology: tpu7x:2x2x1
jax: 0.10.0
libtpu: 0.0.40
codegen_flags: <defaults>
</compile_context>

<pallas_src>
import functools

import jax
import jax.numpy as jnp
from jax.experimental import pallas as pl
from jax.experimental.pallas import tpu as pltpu


def _aligned_v2_kernel(low2d_ref, lowpad_ref, high2d_ref,
                       wl_ref, wh_ref, wfg_ref,
                       upx_ref, upy_ref, upmask_ref,
                       bx_ref, by_ref,
                       out_ref,
                       *, H, W, Hh, Wh, Cin, Cout, Wp, L1, L2):
    f32 = jnp.float32

    def bilinear_sample(src_ref, Hin, Win, gx, gy):
        # gx, gy: (1, L) normalized coords; align_corners=True, zeros padding.
        L = gx.shape[1]
        ix = (gx + 1.0) * (0.5 * (Win - 1))
        iy = (gy + 1.0) * (0.5 * (Hin - 1))
        ix0f = jnp.floor(ix)
        iy0f = jnp.floor(iy)
        fx = ix - ix0f
        fy = iy - iy0f
        ix0 = ix0f.astype(jnp.int32)
        iy0 = iy0f.astype(jnp.int32)
        col = jax.lax.broadcasted_iota(jnp.int32, (Win, L), 0)
        row = jax.lax.broadcasted_iota(jnp.int32, (Hin, L), 0)
        # Separable 2-tap interpolation matrices. Out-of-range taps never match
        # the iota, so they contribute 0 == grid_sample padding_mode='zeros'.
        mxT = ((col == ix0).astype(f32) * (1.0 - fx)
               + (col == ix0 + 1).astype(f32) * fx)        # (Win, L)
        myT = ((row == iy0).astype(f32) * (1.0 - fy)
               + (row == iy0 + 1).astype(f32) * fy)        # (Hin, L)
        chans = []
        for c in range(src_ref.shape[0]):
            t = jnp.dot(src_ref[c], mxT, preferred_element_type=f32)  # (Hin, L)
            chans.append(jnp.sum(t * myT, axis=0, keepdims=True))     # (1, L)
        return jnp.concatenate(chans, axis=0)                          # (C, L)

    # --- high path: bilinear upsample (align_corners=True) of the high-res
    #     feature, then the 1x1 down_h conv (both linear -> order commuted). ---
    up_src = bilinear_sample(high2d_ref, Hh, Wh, upx_ref[...], upy_ref[...])  # (Cin, L1)
    up_src = up_src * upmask_ref[...]          # zero the conv halo lanes
    h_up = jnp.dot(wh_ref[...], up_src, preferred_element_type=f32)           # (Cout, L1)

    # --- low path: 1x1 down_l conv on the (zero-padded, flattened) low feature.
    l_feat = jnp.dot(wl_ref[...], lowpad_ref[...], preferred_element_type=f32)  # (Cout, L1)

    cat = jnp.concatenate([h_up, l_feat], axis=0)            # (2*Cout, L1)

    # --- 3x3 conv (flow_make + flow_gate fused -> 5 channels) as 9 accumulated
    #     matmuls over statically shifted slices of the padded flat input. ---
    acc = jnp.zeros((5, L2), f32)
    for ky in range(3):
        for kx in range(3):
            off = ky * Wp + kx
            tap = cat[:, off:off + L2]                        # (2*Cout, L2)
            acc = acc + jnp.dot(wfg_ref[3 * ky + kx], tap,
                                preferred_element_type=f32)   # (5, L2)

    bx = bx_ref[...]
    by = by_ref[...]
    gx_h = bx + acc[0:1, :] * (1.0 / float(W))
    gy_h = by + acc[1:2, :] * (1.0 / float(H))
    gx_l = bx + acc[2:3, :] * (1.0 / float(W))
    gy_l = by + acc[3:4, :] * (1.0 / float(H))
    gate = 1.0 / (1.0 + jnp.exp(-acc[4:5, :]))                # sigmoid (f32)

    # warps are applied to the ORIGINAL (pre-1x1-conv) features
    warp_h = bilinear_sample(high2d_ref, Hh, Wh, gx_h, gy_h)  # (Cin, L2)
    warp_l = bilinear_sample(low2d_ref, H, W, gx_l, gy_l)     # (Cin, L2)

    out_ref[...] = warp_h * gate + warp_l * (1.0 - gate)


def aligned_module_v2_forward(low_nchw, high_nchw, params):
    f32 = jnp.float32
    low = low_nchw.astype(f32)
    high = high_nchw.astype(f32)
    N, Cin, H, W = low.shape
    _, _, Hh, Wh = high.shape
    Cout = params["w_down_l"].shape[0]

    # Padded-flat lane spaces: Wp = W+2 (3x3 halo), one top + two bottom pad
    # rows so every tap slice of length L2 stays in bounds.
    Wp = W + 2
    L1 = (H + 3) * Wp          # conv-input lane space (zero halo included)
    L2 = H * Wp                # output / flow / warp lane space

    # ---- static per-lane tables (plain JAX, built once) ----
    gx_row = jnp.linspace(-1.0, 1.0, W, dtype=f32)
    gy_col = jnp.linspace(-1.0, 1.0, H, dtype=f32)
    gx2d = jnp.tile(gx_row[None, :], (H, 1))
    gy2d = jnp.tile(gy_col[:, None], (1, W))

    upx = jnp.pad(gx2d, ((1, 2), (1, 1))).reshape(1, L1)
    upy = jnp.pad(gy2d, ((1, 2), (1, 1))).reshape(1, L1)
    upmask = jnp.pad(jnp.ones((H, W), f32), ((1, 2), (1, 1))).reshape(1, L1)

    gx_row_ext = jnp.concatenate([gx_row, gx_row[-1:], gx_row[-1:]])  # (Wp,)
    bx = jnp.tile(gx_row_ext[None, :], (H, 1)).reshape(1, L2)
    by = jnp.tile(gy_col[:, None], (1, Wp)).reshape(1, L2)

    low_pad = jnp.pad(low, ((0, 0), (0, 0), (1, 2), (1, 1))).reshape(N, Cin, L1)

    # ---- weights: channels-first matmul layouts ----
    w_l = params["w_down_l"][:, :, 0, 0]                      # (Cout, Cin)
    w_h = params["w_down_h"][:, :, 0, 0]                      # (Cout, Cin)
    w_cat = jnp.concatenate([params["w_flow"], params["w_gate"]], axis=0)  # (5, 2C, 3, 3)
    w_fg = jnp.transpose(w_cat, (2, 3, 0, 1)).reshape(9, 5, 2 * Cout)      # tap-major

    kernel = functools.partial(
        _aligned_v2_kernel,
        H=H, W=W, Hh=Hh, Wh=Wh, Cin=Cin, Cout=Cout, Wp=Wp, L1=L1, L2=L2,
    )

    out_flat = pl.pallas_call(
        kernel,
        out_shape=jax.ShapeDtypeStruct((N, Cin, L2), f32),
        grid=(N,),
        in_specs=[
            pl.BlockSpec((None, Cin, H, W), lambda b: (b, 0, 0, 0)),    # low (2-D spatial)
            pl.BlockSpec((None, Cin, L1), lambda b: (b, 0, 0)),         # low (padded flat)
            pl.BlockSpec((None, Cin, Hh, Wh), lambda b: (b, 0, 0, 0)),  # high (2-D spatial)
            pl.BlockSpec((Cout, Cin), lambda b: (0, 0)),                # w_down_l
            pl.BlockSpec((Cout, Cin), lambda b: (0, 0)),                # w_down_h
            pl.BlockSpec((9, 5, 2 * Cout), lambda b: (0, 0, 0)),        # flow+gate taps
            pl.BlockSpec((1, L1), lambda b: (0, 0)),                    # upsample grid x
            pl.BlockSpec((1, L1), lambda b: (0, 0)),                    # upsample grid y
            pl.BlockSpec((1, L1), lambda b: (0, 0)),                    # interior mask
            pl.BlockSpec((1, L2), lambda b: (0, 0)),                    # warp base grid x
            pl.BlockSpec((1, L2), lambda b: (0, 0)),                    # warp base grid y
        ],
        out_specs=pl.BlockSpec((None, Cin, L2), lambda b: (b, 0, 0)),
        compiler_params=pltpu.CompilerParams(
            dimension_semantics=("parallel",),
            vmem_limit_bytes=32 * 1024 * 1024,
        ),
    )(low, low_pad, high, w_l, w_h, w_fg, upx, upy, upmask, bx, by)

    # strip the width halo lanes, back to NCHW
    out = out_flat.reshape(N, Cin, H, Wp)[:, :, :, :W]
    return out


if __name__ == "__main__":
    inplane, outplane = 4, 4
    key = jax.random.PRNGKey(0)
    k1, k2, k3, k4, k5, k6 = jax.random.split(key, 6)

    params = {
        "w_down_h": 0.1 * jax.random.normal(k1, (outplane, inplane, 1, 1), jnp.float32),
        "w_down_l": 0.1 * jax.random.normal(k2, (outplane, inplane, 1, 1), jnp.float32),
        "w_flow":   0.1 * jax.random.normal(k3, (4, outplane * 2, 3, 3), jnp.float32),
        "w_gate":   0.1 * jax.random.normal(k4, (1, outplane * 2, 3, 3), jnp.float32),
    }

    low_feature = jax.random.normal(k5, (2, inplane, 16, 16), jnp.float32)   # high-res
    h_feature = jax.random.normal(k6, (2, inplane, 8, 8), jnp.float32)       # low-res

    fwd = jax.jit(aligned_module_v2_forward)
    out = fwd(low_feature, h_feature, params)
    out = jax.block_until_ready(out)
    assert out.shape == (2, inplane, 16, 16), out.shape
    assert bool(jnp.all(jnp.isfinite(out)))
    print("KERNEL_OK")
</pallas_src>

<mosaic_0001>
module attributes {stable_mosaic.version = 11 : i64} {
  func.func @_aligned_v2_kernel(%arg0: i32, %arg1: memref<1x4x16x16xf32, #tpu.memory_space<vmem>>, %arg2: memref<1x4x342xf32, #tpu.memory_space<vmem>>, %arg3: memref<1x4x8x8xf32, #tpu.memory_space<vmem>>, %arg4: memref<4x4xf32, #tpu.memory_space<vmem>>, %arg5: memref<4x4xf32, #tpu.memory_space<vmem>>, %arg6: memref<9x5x8xf32, #tpu.memory_space<vmem>>, %arg7: memref<1x342xf32, #tpu.memory_space<vmem>>, %arg8: memref<1x342xf32, #tpu.memory_space<vmem>>, %arg9: memref<1x342xf32, #tpu.memory_space<vmem>>, %arg10: memref<1x288xf32, #tpu.memory_space<vmem>>, %arg11: memref<1x288xf32, #tpu.memory_space<vmem>>, %arg12: memref<1x4x288xf32, #tpu.memory_space<vmem>>) attributes {dimension_semantics = [#tpu.dimension_semantics<parallel>], iteration_bounds = array<i64: 2>, scalar_prefetch = 0 : i64, scratch_operands = 0 : i64, tpu.core_type = #tpu.core_type<tc>, window_params = [{transform_indices = @transform_0, window_bounds = array<i64: 1, 4, 16, 16>}, {transform_indices = @transform_1, window_bounds = array<i64: 1, 4, 342>}, {transform_indices = @transform_2, window_bounds = array<i64: 1, 4, 8, 8>}, {pipeline_mode = #tpu.pipeline_mode<synchronous>, transform_indices = @transform_3, window_bounds = array<i64: 4, 4>}, {pipeline_mode = #tpu.pipeline_mode<synchronous>, transform_indices = @transform_4, window_bounds = array<i64: 4, 4>}, {pipeline_mode = #tpu.pipeline_mode<synchronous>, transform_indices = @transform_5, window_bounds = array<i64: 9, 5, 8>}, {pipeline_mode = #tpu.pipeline_mode<synchronous>, transform_indices = @transform_6, window_bounds = array<i64: 1, 342>}, {pipeline_mode = #tpu.pipeline_mode<synchronous>, transform_indices = @transform_7, window_bounds = array<i64: 1, 342>}, {pipeline_mode = #tpu.pipeline_mode<synchronous>, transform_indices = @transform_8, window_bounds = array<i64: 1, 342>}, {pipeline_mode = #tpu.pipeline_mode<synchronous>, transform_indices = @transform_9, window_bounds = array<i64: 1, 288>}, {pipeline_mode = #tpu.pipeline_mode<synchronous>, transform_indices = @transform_10, window_bounds = array<i64: 1, 288>}, {transform_indices = @transform_11, window_bounds = array<i64: 1, 4, 288>}]} {
    %c0 = arith.constant 0 : index
    %c0_0 = arith.constant 0 : index
    %0 = vector.load %arg7[%c0, %c0_0] : memref<1x342xf32, #tpu.memory_space<vmem>>, vector<1x342xf32>
    %c0_1 = arith.constant 0 : index
    %c0_2 = arith.constant 0 : index
    %1 = vector.load %arg8[%c0_1, %c0_2] : memref<1x342xf32, #tpu.memory_space<vmem>>, vector<1x342xf32>
    %cst = arith.constant 1.000000e+00 : f32
    %2 = vector.broadcast %cst : f32 to vector<1x342xf32>
    %3 = arith.addf %0, %2 : vector<1x342xf32>
    %cst_3 = arith.constant 3.500000e+00 : f32
    %4 = vector.broadcast %cst_3 : f32 to vector<1x342xf32>
    %5 = arith.mulf %3, %4 : vector<1x342xf32>
    %cst_4 = arith.constant 1.000000e+00 : f32
    %6 = vector.broadcast %cst_4 : f32 to vector<1x342xf32>
    %7 = arith.addf %1, %6 : vector<1x342xf32>
    %cst_5 = arith.constant 3.500000e+00 : f32
    %8 = vector.broadcast %cst_5 : f32 to vector<1x342xf32>
    %9 = arith.mulf %7, %8 : vector<1x342xf32>
    %10 = math.floor %5 : vector<1x342xf32>
    %11 = math.floor %9 : vector<1x342xf32>
    %12 = arith.subf %5, %10 : vector<1x342xf32>
    %13 = arith.subf %9, %11 : vector<1x342xf32>
    %14 = arith.fptosi %10 : vector<1x342xf32> to vector<1x342xi32>
    %15 = arith.fptosi %11 : vector<1x342xf32> to vector<1x342xi32>
    %16 = tpu.iota {dimensions = array<i32: 0>} : vector<8x342xi32>
    %17 = tpu.iota {dimensions = array<i32: 0>} : vector<8x342xi32>
    %18 = vector.broadcast %14 : vector<1x342xi32> to vector<8x342xi32>
    %19 = arith.cmpi eq, %16, %18 : vector<8x342xi32>
    %20 = arith.extui %19 : vector<8x342xi1> to vector<8x342xi32>
    %21 = arith.sitofp %20 : vector<8x342xi32> to vector<8x342xf32>
    %cst_6 = arith.constant 1.000000e+00 : f32
    %22 = vector.broadcast %cst_6 : f32 to vector<1x342xf32>
    %23 = arith.subf %22, %12 : vector<1x342xf32>
    %24 = vector.broadcast %23 : vector<1x342xf32> to vector<8x342xf32>
    %25 = arith.mulf %21, %24 : vector<8x342xf32>
    %c1_i32 = arith.constant 1 : i32
    %26 = vector.broadcast %c1_i32 : i32 to vector<1x342xi32>
    %27 = arith.addi %14, %26 : vector<1x342xi32>
    %28 = vector.broadcast %27 : vector<1x342xi32> to vector<8x342xi32>
    %29 = arith.cmpi eq, %16, %28 : vector<8x342xi32>
    %30 = arith.extui %29 : vector<8x342xi1> to vector<8x342xi32>
    %31 = arith.sitofp %30 : vector<8x342xi32> to vector<8x342xf32>
    %32 = vector.broadcast %12 : vector<1x342xf32> to vector<8x342xf32>
    %33 = arith.mulf %31, %32 : vector<8x342xf32>
    %34 = arith.addf %25, %33 : vector<8x342xf32>
    %35 = vector.broadcast %15 : vector<1x342xi32> to vector<8x342xi32>
    %36 = arith.cmpi eq, %17, %35 : vector<8x342xi32>
    %37 = arith.extui %36 : vector<8x342xi1> to vector<8x342xi32>
    %38 = arith.sitofp %37 : vector<8x342xi32> to vector<8x342xf32>
    %cst_7 = arith.constant 1.000000e+00 : f32
    %39 = vector.broadcast %cst_7 : f32 to vector<1x342xf32>
    %40 = arith.subf %39, %13 : vector<1x342xf32>
    %41 = vector.broadcast %40 : vector<1x342xf32> to vector<8x342xf32>
    %42 = arith.mulf %38, %41 : vector<8x342xf32>
    %c1_i32_8 = arith.constant 1 : i32
    %43 = vector.broadcast %c1_i32_8 : i32 to vector<1x342xi32>
    %44 = arith.addi %15, %43 : vector<1x342xi32>
    %45 = vector.broadcast %44 : vector<1x342xi32> to vector<8x342xi32>
    %46 = arith.cmpi eq, %17, %45 : vector<8x342xi32>
    %47 = arith.extui %46 : vector<8x342xi1> to vector<8x342xi32>
    %48 = arith.sitofp %47 : vector<8x342xi32> to vector<8x342xf32>
    %49 = vector.broadcast %13 : vector<1x342xf32> to vector<8x342xf32>
    %50 = arith.mulf %48, %49 : vector<8x342xf32>
    %51 = arith.addf %42, %50 : vector<8x342xf32>
    %c0_9 = arith.constant 0 : index
    %c0_10 = arith.constant 0 : index
    %c0_11 = arith.constant 0 : index
    %c0_12 = arith.constant 0 : index
    %52 = vector.load %arg3[%c0_9, %c0_10, %c0_11, %c0_12] : memref<1x4x8x8xf32, #tpu.memory_space<vmem>>, vector<1x1x8x8xf32>
    %53 = vector.shape_cast %52 : vector<1x1x8x8xf32> to vector<8x8xf32>
    %cst_13 = arith.constant dense<0.000000e+00> : vector<8x342xf32>
    %54 = tpu.matmul %53, %34, %cst_13 {dimension_numbers = #tpu.dot_dimension_numbers<[1], [0], [0], [1], [0, 0, 1, 1], [], []>} : vector<8x8xf32>, vector<8x342xf32>, vector<8x342xf32> -> vector<8x342xf32>
    %55 = arith.mulf %54, %51 : vector<8x342xf32>
    %cst_14 = arith.constant dense<0.000000e+00> : vector<342xf32>
    %56 = vector.multi_reduction <add>, %55, %cst_14 [0] : vector<8x342xf32> to vector<342xf32>
    %57 = vector.shape_cast %56 : vector<342xf32> to vector<1x342xf32>
    %c0_15 = arith.constant 0 : index
    %c1 = arith.constant 1 : index
    %c0_16 = arith.constant 0 : index
    %c0_17 = arith.constant 0 : index
    %58 = vector.load %arg3[%c0_15, %c1, %c0_16, %c0_17] : memref<1x4x8x8xf32, #tpu.memory_space<vmem>>, vector<1x1x8x8xf32>
    %59 = vector.shape_cast %58 : vector<1x1x8x8xf32> to vector<8x8xf32>
    %cst_18 = arith.constant dense<0.000000e+00> : vector<8x342xf32>
    %60 = tpu.matmul %59, %34, %cst_18 {dimension_numbers = #tpu.dot_dimension_numbers<[1], [0], [0], [1], [0, 0, 1, 1], [], []>} : vector<8x8xf32>, vector<8x342xf32>, vector<8x342xf32> -> vector<8x342xf32>
    %61 = arith.mulf %60, %51 : vector<8x342xf32>
    %cst_19 = arith.constant dense<0.000000e+00> : vector<342xf32>
    %62 = vector.multi_reduction <add>, %61, %cst_19 [0] : vector<8x342xf32> to vector<342xf32>
    %63 = vector.shape_cast %62 : vector<342xf32> to vector<1x342xf32>
    %c0_20 = arith.constant 0 : index
    %c2 = arith.constant 2 : index
    %c0_21 = arith.constant 0 : index
    %c0_22 = arith.constant 0 : index
    %64 = vector.load %arg3[%c0_20, %c2, %c0_21, %c0_22] : memref<1x4x8x8xf32, #tpu.memory_space<vmem>>, vector<1x1x8x8xf32>
    %65 = vector.shape_cast %64 : vector<1x1x8x8xf32> to vector<8x8xf32>
    %cst_23 = arith.constant dense<0.000000e+00> : vector<8x342xf32>
    %66 = tpu.matmul %65, %34, %cst_23 {dimension_numbers = #tpu.dot_dimension_numbers<[1], [0], [0], [1], [0, 0, 1, 1], [], []>} : vector<8x8xf32>, vector<8x342xf32>, vector<8x342xf32> -> vector<8x342xf32>
    %67 = arith.mulf %66, %51 : vector<8x342xf32>
    %cst_24 = arith.constant dense<0.000000e+00> : vector<342xf32>
    %68 = vector.multi_reduction <add>, %67, %cst_24 [0] : vector<8x342xf32> to vector<342xf32>
    %69 = vector.shape_cast %68 : vector<342xf32> to vector<1x342xf32>
    %c0_25 = arith.constant 0 : index
    %c3 = arith.constant 3 : index
    %c0_26 = arith.constant 0 : index
    %c0_27 = arith.constant 0 : index
    %70 = vector.load %arg3[%c0_25, %c3, %c0_26, %c0_27] : memref<1x4x8x8xf32, #tpu.memory_space<vmem>>, vector<1x1x8x8xf32>
    %71 = vector.shape_cast %70 : vector<1x1x8x8xf32> to vector<8x8xf32>
    %cst_28 = arith.constant dense<0.000000e+00> : vector<8x342xf32>
    %72 = tpu.matmul %71, %34, %cst_28 {dimension_numbers = #tpu.dot_dimension_numbers<[1], [0], [0], [1], [0, 0, 1, 1], [], []>} : vector<8x8xf32>, vector<8x342xf32>, vector<8x342xf32> -> vector<8x342xf32>
    %73 = arith.mulf %72, %51 : vector<8x342xf32>
    %cst_29 = arith.constant dense<0.000000e+00> : vector<342xf32>
    %74 = vector.multi_reduction <add>, %73, %cst_29 [0] : vector<8x342xf32> to vector<342xf32>
    %75 = vector.shape_cast %74 : vector<342xf32> to vector<1x342xf32>
    %76 = tpu.concatenate %57, %63, %69, %75 in 0 : vector<1x342xf32>, vector<1x342xf32>, vector<1x342xf32>, vector<1x342xf32> -> vector<4x342xf32>
    %c0_30 = arith.constant 0 : index
    %c0_31 = arith.constant 0 : index
    %77 = vector.load %arg9[%c0_30, %c0_31] : memref<1x342xf32, #tpu.memory_space<vmem>>, vector<1x342xf32>
    %78 = vector.broadcast %77 : vector<1x342xf32> to vector<4x342xf32>
    %79 = arith.mulf %76, %78 : vector<4x342xf32>
    %c0_32 = arith.constant 0 : index
    %c0_33 = arith.constant 0 : index
    %80 = vector.load %arg5[%c0_32, %c0_33] : memref<4x4xf32, #tpu.memory_space<vmem>>, vector<4x4xf32>
    %cst_34 = arith.constant dense<0.000000e+00> : vector<4x342xf32>
    %81 = tpu.matmul %80, %79, %cst_34 {dimension_numbers = #tpu.dot_dimension_numbers<[1], [0], [0], [1], [0, 0, 1, 1], [], []>} : vector<4x4xf32>, vector<4x342xf32>, vector<4x342xf32> -> vector<4x342xf32>
    %c0_35 = arith.constant 0 : index
    %c0_36 = arith.constant 0 : index
    %82 = vector.load %arg4[%c0_35, %c0_36] : memref<4x4xf32, #tpu.memory_space<vmem>>, vector<4x4xf32>
    %c0_37 = arith.constant 0 : index
    %c0_38 = arith.constant 0 : index
    %c0_39 = arith.constant 0 : index
    %83 = vector.load %arg2[%c0_37, %c0_38, %c0_39] : memref<1x4x342xf32, #tpu.memory_space<vmem>>, vector<1x4x342xf32>
    %84 = vector.shape_cast %83 : vector<1x4x342xf32> to vector<4x342xf32>
    %cst_40 = arith.constant dense<0.000000e+00> : vector<4x342xf32>
    %85 = tpu.matmul %82, %84, %cst_40 {dimension_numbers = #tpu.dot_dimension_numbers<[1], [0], [0], [1], [0, 0, 1, 1], [], []>} : vector<4x4xf32>, vector<4x342xf32>, vector<4x342xf32> -> vector<4x342xf32>
    %86 = tpu.concatenate %81, %85 in 0 : vector<4x342xf32>, vector<4x342xf32> -> vector<8x342xf32>
    %cst_41 = arith.constant 0.000000e+00 : f32
    %87 = vector.broadcast %cst_41 : f32 to vector<5x288xf32>
    %88 = vector.extract_strided_slice %86 {offsets = [0, 0], sizes = [8, 288], strides = [1, 1]} : vector<8x342xf32> to vector<8x288xf32>
    %c0_42 = arith.constant 0 : index
    %c0_43 = arith.constant 0 : index
    %c0_44 = arith.constant 0 : index
    %89 = vector.load %arg6[%c0_42, %c0_43, %c0_44] : memref<9x5x8xf32, #tpu.memory_space<vmem>>, vector<1x5x8xf32>
    %90 = vector.shape_cast %89 : vector<1x5x8xf32> to vector<5x8xf32>
    %cst_45 = arith.constant dense<0.000000e+00> : vector<5x288xf32>
    %91 = tpu.matmul %90, %88, %cst_45 {dimension_numbers = #tpu.dot_dimension_numbers<[1], [0], [0], [1], [0, 0, 1, 1], [], []>} : vector<5x8xf32>, vector<8x288xf32>, vector<5x288xf32> -> vector<5x288xf32>
    %92 = arith.addf %87, %91 : vector<5x288xf32>
    %93 = vector.extract_strided_slice %86 {offsets = [0, 1], sizes = [8, 288], strides = [1, 1]} : vector<8x342xf32> to vector<8x288xf32>
    %c1_46 = arith.constant 1 : index
    %c0_47 = arith.constant 0 : index
    %c0_48 = arith.constant 0 : index
    %94 = vector.load %arg6[%c1_46, %c0_47, %c0_48] : memref<9x5x8xf32, #tpu.memory_space<vmem>>, vector<1x5x8xf32>
    %95 = vector.shape_cast %94 : vector<1x5x8xf32> to vector<5x8xf32>
    %cst_49 = arith.constant dense<0.000000e+00> : vector<5x288xf32>
    %96 = tpu.matmul %95, %93, %cst_49 {dimension_numbers = #tpu.dot_dimension_numbers<[1], [0], [0], [1], [0, 0, 1, 1], [], []>} : vector<5x8xf32>, vector<8x288xf32>, vector<5x288xf32> -> vector<5x288xf32>
    %97 = arith.addf %92, %96 : vector<5x288xf32>
    %98 = vector.extract_strided_slice %86 {offsets = [0, 2], sizes = [8, 288], strides = [1, 1]} : vector<8x342xf32> to vector<8x288xf32>
    %c2_50 = arith.constant 2 : index
    %c0_51 = arith.constant 0 : index
    %c0_52 = arith.constant 0 : index
    %99 = vector.load %arg6[%c2_50, %c0_51, %c0_52] : memref<9x5x8xf32, #tpu.memory_space<vmem>>, vector<1x5x8xf32>
    %100 = vector.shape_cast %99 : vector<1x5x8xf32> to vector<5x8xf32>
    %cst_53 = arith.constant dense<0.000000e+00> : vector<5x288xf32>
    %101 = tpu.matmul %100, %98, %cst_53 {dimension_numbers = #tpu.dot_dimension_numbers<[1], [0], [0], [1], [0, 0, 1, 1], [], []>} : vector<5x8xf32>, vector<8x288xf32>, vector<5x288xf32> -> vector<5x288xf32>
    %102 = arith.addf %97, %101 : vector<5x288xf32>
    %103 = vector.extract_strided_slice %86 {offsets = [0, 18], sizes = [8, 288], strides = [1, 1]} : vector<8x342xf32> to vector<8x288xf32>
    %c3_54 = arith.constant 3 : index
    %c0_55 = arith.constant 0 : index
    %c0_56 = arith.constant 0 : index
    %104 = vector.load %arg6[%c3_54, %c0_55, %c0_56] : memref<9x5x8xf32, #tpu.memory_space<vmem>>, vector<1x5x8xf32>
    %105 = vector.shape_cast %104 : vector<1x5x8xf32> to vector<5x8xf32>
    %cst_57 = arith.constant dense<0.000000e+00> : vector<5x288xf32>
    %106 = tpu.matmul %105, %103, %cst_57 {dimension_numbers = #tpu.dot_dimension_numbers<[1], [0], [0], [1], [0, 0, 1, 1], [], []>} : vector<5x8xf32>, vector<8x288xf32>, vector<5x288xf32> -> vector<5x288xf32>
    %107 = arith.addf %102, %106 : vector<5x288xf32>
    %108 = vector.extract_strided_slice %86 {offsets = [0, 19], sizes = [8, 288], strides = [1, 1]} : vector<8x342xf32> to vector<8x288xf32>
    %c4 = arith.constant 4 : index
    %c0_58 = arith.constant 0 : index
    %c0_59 = arith.constant 0 : index
    %109 = vector.load %arg6[%c4, %c0_58, %c0_59] : memref<9x5x8xf32, #tpu.memory_space<vmem>>, vector<1x5x8xf32>
    %110 = vector.shape_cast %109 : vector<1x5x8xf32> to vector<5x8xf32>
    %cst_60 = arith.constant dense<0.000000e+00> : vector<5x288xf32>
    %111 = tpu.matmul %110, %108, %cst_60 {dimension_numbers = #tpu.dot_dimension_numbers<[1], [0], [0], [1], [0, 0, 1, 1], [], []>} : vector<5x8xf32>, vector<8x288xf32>, vector<5x288xf32> -> vector<5x288xf32>
    %112 = arith.addf %107, %111 : vector<5x288xf32>
    %113 = vector.extract_strided_slice %86 {offsets = [0, 20], sizes = [8, 288], strides = [1, 1]} : vector<8x342xf32> to vector<8x288xf32>
    %c5 = arith.constant 5 : index
    %c0_61 = arith.constant 0 : index
    %c0_62 = arith.constant 0 : index
    %114 = vector.load %arg6[%c5, %c0_61, %c0_62] : memref<9x5x8xf32, #tpu.memory_space<vmem>>, vector<1x5x8xf32>
    %115 = vector.shape_cast %114 : vector<1x5x8xf32> to vector<5x8xf32>
    %cst_63 = arith.constant dense<0.000000e+00> : vector<5x288xf32>
    %116 = tpu.matmul %115, %113, %cst_63 {dimension_numbers = #tpu.dot_dimension_numbers<[1], [0], [0], [1], [0, 0, 1, 1], [], []>} : vector<5x8xf32>, vector<8x288xf32>, vector<5x288xf32> -> vector<5x288xf32>
    %117 = arith.addf %112, %116 : vector<5x288xf32>
    %118 = vector.extract_strided_slice %86 {offsets = [0, 36], sizes = [8, 288], strides = [1, 1]} : vector<8x342xf32> to vector<8x288xf32>
    %c6 = arith.constant 6 : index
    %c0_64 = arith.constant 0 : index
    %c0_65 = arith.constant 0 : index
    %119 = vector.load %arg6[%c6, %c0_64, %c0_65] : memref<9x5x8xf32, #tpu.memory_space<vmem>>, vector<1x5x8xf32>
    %120 = vector.shape_cast %119 : vector<1x5x8xf32> to vector<5x8xf32>
    %cst_66 = arith.constant dense<0.000000e+00> : vector<5x288xf32>
    %121 = tpu.matmul %120, %118, %cst_66 {dimension_numbers = #tpu.dot_dimension_numbers<[1], [0], [0], [1], [0, 0, 1, 1], [], []>} : vector<5x8xf32>, vector<8x288xf32>, vector<5x288xf32> -> vector<5x288xf32>
    %122 = arith.addf %117, %121 : vector<5x288xf32>
    %123 = vector.extract_strided_slice %86 {offsets = [0, 37], sizes = [8, 288], strides = [1, 1]} : vector<8x342xf32> to vector<8x288xf32>
    %c7 = arith.constant 7 : index
    %c0_67 = arith.constant 0 : index
    %c0_68 = arith.constant 0 : index
    %124 = vector.load %arg6[%c7, %c0_67, %c0_68] : memref<9x5x8xf32, #tpu.memory_space<vmem>>, vector<1x5x8xf32>
    %125 = vector.shape_cast %124 : vector<1x5x8xf32> to vector<5x8xf32>
    %cst_69 = arith.constant dense<0.000000e+00> : vector<5x288xf32>
    %126 = tpu.matmul %125, %123, %cst_69 {dimension_numbers = #tpu.dot_dimension_numbers<[1], [0], [0], [1], [0, 0, 1, 1], [], []>} : vector<5x8xf32>, vector<8x288xf32>, vector<5x288xf32> -> vector<5x288xf32>
    %127 = arith.addf %122, %126 : vector<5x288xf32>
    %128 = vector.extract_strided_slice %86 {offsets = [0, 38], sizes = [8, 288], strides = [1, 1]} : vector<8x342xf32> to vector<8x288xf32>
    %c8 = arith.constant 8 : index
    %c0_70 = arith.constant 0 : index
    %c0_71 = arith.constant 0 : index
    %129 = vector.load %arg6[%c8, %c0_70, %c0_71] : memref<9x5x8xf32, #tpu.memory_space<vmem>>, vector<1x5x8xf32>
    %130 = vector.shape_cast %129 : vector<1x5x8xf32> to vector<5x8xf32>
    %cst_72 = arith.constant dense<0.000000e+00> : vector<5x288xf32>
    %131 = tpu.matmul %130, %128, %cst_72 {dimension_numbers = #tpu.dot_dimension_numbers<[1], [0], [0], [1], [0, 0, 1, 1], [], []>} : vector<5x8xf32>, vector<8x288xf32>, vector<5x288xf32> -> vector<5x288xf32>
    %132 = arith.addf %127, %131 : vector<5x288xf32>
    %c0_73 = arith.constant 0 : index
    %c0_74 = arith.constant 0 : index
    %133 = vector.load %arg10[%c0_73, %c0_74] : memref<1x288xf32, #tpu.memory_space<vmem>>, vector<1x288xf32>
    %c0_75 = arith.constant 0 : index
    %c0_76 = arith.constant 0 : index
    %134 = vector.load %arg11[%c0_75, %c0_76] : memref<1x288xf32, #tpu.memory_space<vmem>>, vector<1x288xf32>
    %135 = vector.extract_strided_slice %132 {offsets = [0, 0], sizes = [1, 288], strides = [1, 1]} : vector<5x288xf32> to vector<1x288xf32>
    %cst_77 = arith.constant 6.250000e-02 : f32
    %136 = vector.broadcast %cst_77 : f32 to vector<1x288xf32>
    %137 = arith.mulf %135, %136 : vector<1x288xf32>
    %138 = arith.addf %133, %137 : vector<1x288xf32>
    %139 = vector.extract_strided_slice %132 {offsets = [1, 0], sizes = [1, 288], strides = [1, 1]} : vector<5x288xf32> to vector<1x288xf32>
    %cst_78 = arith.constant 6.250000e-02 : f32
    %140 = vector.broadcast %cst_78 : f32 to vector<1x288xf32>
    %141 = arith.mulf %139, %140 : vector<1x288xf32>
    %142 = arith.addf %134, %141 : vector<1x288xf32>
    %143 = vector.extract_strided_slice %132 {offsets = [2, 0], sizes = [1, 288], strides = [1, 1]} : vector<5x288xf32> to vector<1x288xf32>
    %cst_79 = arith.constant 6.250000e-02 : f32
    %144 = vector.broadcast %cst_79 : f32 to vector<1x288xf32>
    %145 = arith.mulf %143, %144 : vector<1x288xf32>
    %146 = arith.addf %133, %145 : vector<1x288xf32>
    %147 = vector.extract_strided_slice %132 {offsets = [3, 0], sizes = [1, 288], strides = [1, 1]} : vector<5x288xf32> to vector<1x288xf32>
    %cst_80 = arith.constant 6.250000e-02 : f32
    %148 = vector.broadcast %cst_80 : f32 to vector<1x288xf32>
    %149 = arith.mulf %147, %148 : vector<1x288xf32>
    %150 = arith.addf %134, %149 : vector<1x288xf32>
    %151 = vector.extract_strided_slice %132 {offsets = [4, 0], sizes = [1, 288], strides = [1, 1]} : vector<5x288xf32> to vector<1x288xf32>
    %cst_81 = arith.constant 0.000000e+00 : f32
    %152 = vector.broadcast %cst_81 : f32 to vector<1x288xf32>
    %153 = arith.subf %152, %151 : vector<1x288xf32>
    %154 = math.exp %153 : vector<1x288xf32>
    %cst_82 = arith.constant 1.000000e+00 : f32
    %155 = vector.broadcast %cst_82 : f32 to vector<1x288xf32>
    %156 = arith.addf %155, %154 : vector<1x288xf32>
    %cst_83 = arith.constant 1.000000e+00 : f32
    %157 = vector.broadcast %cst_83 : f32 to vector<1x288xf32>
    %158 = arith.divf %157, %156 : vector<1x288xf32>
    %cst_84 = arith.constant 1.000000e+00 : f32
    %159 = vector.broadcast %cst_84 : f32 to vector<1x288xf32>
    %160 = arith.addf %138, %159 : vector<1x288xf32>
    %cst_85 = arith.constant 3.500000e+00 : f32
    %161 = vector.broadcast %cst_85 : f32 to vector<1x288xf32>
    %162 = arith.mulf %160, %161 : vector<1x288xf32>
    %cst_86 = arith.constant 1.000000e+00 : f32
    %163 = vector.broadcast %cst_86 : f32 to vector<1x288xf32>
    %164 = arith.addf %142, %163 : vector<1x288xf32>
    %cst_87 = arith.constant 3.500000e+00 : f32
    %165 = vector.broadcast %cst_87 : f32 to vector<1x288xf32>
    %166 = arith.mulf %164, %165 : vector<1x288xf32>
    %167 = math.floor %162 : vector<1x288xf32>
    %168 = math.floor %166 : vector<1x288xf32>
    %169 = arith.subf %162, %167 : vector<1x288xf32>
    %170 = arith.subf %166, %168 : vector<1x288xf32>
    %171 = arith.fptosi %167 : vector<1x288xf32> to vector<1x288xi32>
    %172 = arith.fptosi %168 : vector<1x288xf32> to vector<1x288xi32>
    %173 = tpu.iota {dimensions = array<i32: 0>} : vector<8x288xi32>
    %174 = tpu.iota {dimensions = array<i32: 0>} : vector<8x288xi32>
    %175 = vector.broadcast %171 : vector<1x288xi32> to vector<8x288xi32>
    %176 = arith.cmpi eq, %173, %175 : vector<8x288xi32>
    %177 = arith.extui %176 : vector<8x288xi1> to vector<8x288xi32>
    %178 = arith.sitofp %177 : vector<8x288xi32> to vector<8x288xf32>
    %cst_88 = arith.constant 1.000000e+00 : f32
    %179 = vector.broadcast %cst_88 : f32 to vector<1x288xf32>
    %180 = arith.subf %179, %169 : vector<1x288xf32>
    %181 = vector.broadcast %180 : vector<1x288xf32> to vector<8x288xf32>
    %182 = arith.mulf %178, %181 : vector<8x288xf32>
    %c1_i32_89 = arith.constant 1 : i32
    %183 = vector.broadcast %c1_i32_89 : i32 to vector<1x288xi32>
    %184 = arith.addi %171, %183 : vector<1x288xi32>
    %185 = vector.broadcast %184 : vector<1x288xi32> to vector<8x288xi32>
    %186 = arith.cmpi eq, %173, %185 : vector<8x288xi32>
    %187 = arith.extui %186 : vector<8x288xi1> to vector<8x288xi32>
    %188 = arith.sitofp %187 : vector<8x288xi32> to vector<8x288xf32>
    %189 = vector.broadcast %169 : vector<1x288xf32> to vector<8x288xf32>
    %190 = arith.mulf %188, %189 : vector<8x288xf32>
    %191 = arith.addf %182, %190 : vector<8x288xf32>
    %192 = vector.broadcast %172 : vector<1x288xi32> to vector<8x288xi32>
    %193 = arith.cmpi eq, %174, %192 : vector<8x288xi32>
    %194 = arith.extui %193 : vector<8x288xi1> to vector<8x288xi32>
    %195 = arith.sitofp %194 : vector<8x288xi32> to vector<8x288xf32>
    %cst_90 = arith.constant 1.000000e+00 : f32
    %196 = vector.broadcast %cst_90 : f32 to vector<1x288xf32>
    %197 = arith.subf %196, %170 : vector<1x288xf32>
    %198 = vector.broadcast %197 : vector<1x288xf32> to vector<8x288xf32>
    %199 = arith.mulf %195, %198 : vector<8x288xf32>
    %c1_i32_91 = arith.constant 1 : i32
    %200 = vector.broadcast %c1_i32_91 : i32 to vector<1x288xi32>
    %201 = arith.addi %172, %200 : vector<1x288xi32>
    %202 = vector.broadcast %201 : vector<1x288xi32> to vector<8x288xi32>
    %203 = arith.cmpi eq, %174, %202 : vector<8x288xi32>
    %204 = arith.extui %203 : vector<8x288xi1> to vector<8x288xi32>
    %205 = arith.sitofp %204 : vector<8x288xi32> to vector<8x288xf32>
    %206 = vector.broadcast %170 : vector<1x288xf32> to vector<8x288xf32>
    %207 = arith.mulf %205, %206 : vector<8x288xf32>
    %208 = arith.addf %199, %207 : vector<8x288xf32>
    %c0_92 = arith.constant 0 : index
    %c0_93 = arith.constant 0 : index
    %c0_94 = arith.constant 0 : index
    %c0_95 = arith.constant 0 : index
    %209 = vector.load %arg3[%c0_92, %c0_93, %c0_94, %c0_95] : memref<1x4x8x8xf32, #tpu.memory_space<vmem>>, vector<1x1x8x8xf32>
    %210 = vector.shape_cast %209 : vector<1x1x8x8xf32> to vector<8x8xf32>
    %cst_96 = arith.constant dense<0.000000e+00> : vector<8x288xf32>
    %211 = tpu.matmul %210, %191, %cst_96 {dimension_numbers = #tpu.dot_dimension_numbers<[1], [0], [0], [1], [0, 0, 1, 1], [], []>} : vector<8x8xf32>, vector<8x288xf32>, vector<8x288xf32> -> vector<8x288xf32>
    %212 = arith.mulf %211, %208 : vector<8x288xf32>
    %cst_97 = arith.constant dense<0.000000e+00> : vector<288xf32>
    %213 = vector.multi_reduction <add>, %212, %cst_97 [0] : vector<8x288xf32> to vector<288xf32>
    %214 = vector.shape_cast %213 : vector<288xf32> to vector<1x288xf32>
    %c0_98 = arith.constant 0 : index
    %c1_99 = arith.constant 1 : index
    %c0_100 = arith.constant 0 : index
    %c0_101 = arith.constant 0 : index
    %215 = vector.load %arg3[%c0_98, %c1_99, %c0_100, %c0_101] : memref<1x4x8x8xf32, #tpu.memory_space<vmem>>, vector<1x1x8x8xf32>
    %216 = vector.shape_cast %215 : vector<1x1x8x8xf32> to vector<8x8xf32>
    %cst_102 = arith.constant dense<0.000000e+00> : vector<8x288xf32>
    %217 = tpu.matmul %216, %191, %cst_102 {dimension_numbers = #tpu.dot_dimension_numbers<[1], [0], [0], [1], [0, 0, 1, 1], [], []>} : vector<8x8xf32>, vector<8x288xf32>, vector<8x288xf32> -> vector<8x288xf32>
    %218 = arith.mulf %217, %208 : vector<8x288xf32>
    %cst_103 = arith.constant dense<0.000000e+00> : vector<288xf32>
    %219 = vector.multi_reduction <add>, %218, %cst_103 [0] : vector<8x288xf32> to vector<288xf32>
    %220 = vector.shape_cast %219 : vector<288xf32> to vector<1x288xf32>
    %c0_104 = arith.constant 0 : index
    %c2_105 = arith.constant 2 : index
    %c0_106 = arith.constant 0 : index
    %c0_107 = arith.constant 0 : index
    %221 = vector.load %arg3[%c0_104, %c2_105, %c0_106, %c0_107] : memref<1x4x8x8xf32, #tpu.memory_space<vmem>>, vector<1x1x8x8xf32>
    %222 = vector.shape_cast %221 : vector<1x1x8x8xf32> to vector<8x8xf32>
    %cst_108 = arith.constant dense<0.000000e+00> : vector<8x288xf32>
    %223 = tpu.matmul %222, %191, %cst_108 {dimension_numbers = #tpu.dot_dimension_numbers<[1], [0], [0], [1], [0, 0, 1, 1], [], []>} : vector<8x8xf32>, vector<8x288xf32>, vector<8x288xf32> -> vector<8x288xf32>
    %224 = arith.mulf %223, %208 : vector<8x288xf32>
    %cst_109 = arith.constant dense<0.000000e+00> : vector<288xf32>
    %225 = vector.multi_reduction <add>, %224, %cst_109 [0] : vector<8x288xf32> to vector<288xf32>
    %226 = vector.shape_cast %225 : vector<288xf32> to vector<1x288xf32>
    %c0_110 = arith.constant 0 : index
    %c3_111 = arith.constant 3 : index
    %c0_112 = arith.constant 0 : index
    %c0_113 = arith.constant 0 : index
    %227 = vector.load %arg3[%c0_110, %c3_111, %c0_112, %c0_113] : memref<1x4x8x8xf32, #tpu.memory_space<vmem>>, vector<1x1x8x8xf32>
    %228 = vector.shape_cast %227 : vector<1x1x8x8xf32> to vector<8x8xf32>
    %cst_114 = arith.constant dense<0.000000e+00> : vector<8x288xf32>
    %229 = tpu.matmul %228, %191, %cst_114 {dimension_numbers = #tpu.dot_dimension_numbers<[1], [0], [0], [1], [0, 0, 1, 1], [], []>} : vector<8x8xf32>, vector<8x288xf32>, vector<8x288xf32> -> vector<8x288xf32>
    %230 = arith.mulf %229, %208 : vector<8x288xf32>
    %cst_115 = arith.constant dense<0.000000e+00> : vector<288xf32>
    %231 = vector.multi_reduction <add>, %230, %cst_115 [0] : vector<8x288xf32> to vector<288xf32>
    %232 = vector.shape_cast %231 : vector<288xf32> to vector<1x288xf32>
    %233 = tpu.concatenate %214, %220, %226, %232 in 0 : vector<1x288xf32>, vector<1x288xf32>, vector<1x288xf32>, vector<1x288xf32> -> vector<4x288xf32>
    %cst_116 = arith.constant 1.000000e+00 : f32
    %234 = vector.broadcast %cst_116 : f32 to vector<1x288xf32>
    %235 = arith.addf %146, %234 : vector<1x288xf32>
    %cst_117 = arith.constant 7.500000e+00 : f32
    %236 = vector.broadcast %cst_117 : f32 to vector<1x288xf32>
    %237 = arith.mulf %235, %236 : vector<1x288xf32>
    %cst_118 = arith.constant 1.000000e+00 : f32
    %238 = vector.broadcast %cst_118 : f32 to vector<1x288xf32>
    %239 = arith.addf %150, %238 : vector<1x288xf32>
    %cst_119 = arith.constant 7.500000e+00 : f32
    %240 = vector.broadcast %cst_119 : f32 to vector<1x288xf32>
    %241 = arith.mulf %239, %240 : vector<1x288xf32>
    %242 = math.floor %237 : vector<1x288xf32>
    %243 = math.floor %241 : vector<1x288xf32>
    %244 = arith.subf %237, %242 : vector<1x288xf32>
    %245 = arith.subf %241, %243 : vector<1x288xf32>
    %246 = arith.fptosi %242 : vector<1x288xf32> to vector<1x288xi32>
    %247 = arith.fptosi %243 : vector<1x288xf32> to vector<1x288xi32>
    %248 = tpu.iota {dimensions = array<i32: 0>} : vector<16x288xi32>
    %249 = tpu.iota {dimensions = array<i32: 0>} : vector<16x288xi32>
    %250 = vector.broadcast %246 : vector<1x288xi32> to vector<16x288xi32>
    %251 = arith.cmpi eq, %248, %250 : vector<16x288xi32>
    %252 = arith.extui %251 : vector<16x288xi1> to vector<16x288xi32>
    %253 = arith.sitofp %252 : vector<16x288xi32> to vector<16x288xf32>
    %cst_120 = arith.constant 1.000000e+00 : f32
    %254 = vector.broadcast %cst_120 : f32 to vector<1x288xf32>
    %255 = arith.subf %254, %244 : vector<1x288xf32>
    %256 = vector.broadcast %255 : vector<1x288xf32> to vector<16x288xf32>
    %257 = arith.mulf %253, %256 : vector<16x288xf32>
    %c1_i32_121 = arith.constant 1 : i32
    %258 = vector.broadcast %c1_i32_121 : i32 to vector<1x288xi32>
    %259 = arith.addi %246, %258 : vector<1x288xi32>
    %260 = vector.broadcast %259 : vector<1x288xi32> to vector<16x288xi32>
    %261 = arith.cmpi eq, %248, %260 : vector<16x288xi32>
    %262 = arith.extui %261 : vector<16x288xi1> to vector<16x288xi32>
    %263 = arith.sitofp %262 : vector<16x288xi32> to vector<16x288xf32>
    %264 = vector.broadcast %244 : vector<1x288xf32> to vector<16x288xf32>
    %265 = arith.mulf %263, %264 : vector<16x288xf32>
    %266 = arith.addf %257, %265 : vector<16x288xf32>
    %267 = vector.broadcast %247 : vector<1x288xi32> to vector<16x288xi32>
    %268 = arith.cmpi eq, %249, %267 : vector<16x288xi32>
    %269 = arith.extui %268 : vector<16x288xi1> to vector<16x288xi32>
    %270 = arith.sitofp %269 : vector<16x288xi32> to vector<16x288xf32>
    %cst_122 = arith.constant 1.000000e+00 : f32
    %271 = vector.broadcast %cst_122 : f32 to vector<1x288xf32>
    %272 = arith.subf %271, %245 : vector<1x288xf32>
    %273 = vector.broadcast %272 : vector<1x288xf32> to vector<16x288xf32>
    %274 = arith.mulf %270, %273 : vector<16x288xf32>
    %c1_i32_123 = arith.constant 1 : i32
    %275 = vector.broadcast %c1_i32_123 : i32 to vector<1x288xi32>
    %276 = arith.addi %247, %275 : vector<1x288xi32>
    %277 = vector.broadcast %276 : vector<1x288xi32> to vector<16x288xi32>
    %278 = arith.cmpi eq, %249, %277 : vector<16x288xi32>
    %279 = arith.extui %278 : vector<16x288xi1> to vector<16x288xi32>
    %280 = arith.sitofp %279 : vector<16x288xi32> to vector<16x288xf32>
    %281 = vector.broadcast %245 : vector<1x288xf32> to vector<16x288xf32>
    %282 = arith.mulf %280, %281 : vector<16x288xf32>
    %283 = arith.addf %274, %282 : vector<16x288xf32>
    %c0_124 = arith.constant 0 : index
    %c0_125 = arith.constant 0 : index
    %c0_126 = arith.constant 0 : index
    %c0_127 = arith.constant 0 : index
    %284 = vector.load %arg1[%c0_124, %c0_125, %c0_126, %c0_127] : memref<1x4x16x16xf32, #tpu.memory_space<vmem>>, vector<1x1x16x16xf32>
    %285 = vector.shape_cast %284 : vector<1x1x16x16xf32> to vector<16x16xf32>
    %cst_128 = arith.constant dense<0.000000e+00> : vector<16x288xf32>
    %286 = tpu.matmul %285, %266, %cst_128 {dimension_numbers = #tpu.dot_dimension_numbers<[1], [0], [0], [1], [0, 0, 1, 1], [], []>} : vector<16x16xf32>, vector<16x288xf32>, vector<16x288xf32> -> vector<16x288xf32>
    %287 = arith.mulf %286, %283 : vector<16x288xf32>
    %cst_129 = arith.constant dense<0.000000e+00> : vector<288xf32>
    %288 = vector.multi_reduction <add>, %287, %cst_129 [0] : vector<16x288xf32> to vector<288xf32>
    %289 = vector.shape_cast %288 : vector<288xf32> to vector<1x288xf32>
    %c0_130 = arith.constant 0 : index
    %c1_131 = arith.constant 1 : index
    %c0_132 = arith.constant 0 : index
    %c0_133 = arith.constant 0 : index
    %290 = vector.load %arg1[%c0_130, %c1_131, %c0_132, %c0_133] : memref<1x4x16x16xf32, #tpu.memory_space<vmem>>, vector<1x1x16x16xf32>
    %291 = vector.shape_cast %290 : vector<1x1x16x16xf32> to vector<16x16xf32>
    %cst_134 = arith.constant dense<0.000000e+00> : vector<16x288xf32>
    %292 = tpu.matmul %291, %266, %cst_134 {dimension_numbers = #tpu.dot_dimension_numbers<[1], [0], [0], [1], [0, 0, 1, 1], [], []>} : vector<16x16xf32>, vector<16x288xf32>, vector<16x288xf32> -> vector<16x288xf32>
    %293 = arith.mulf %292, %283 : vector<16x288xf32>
    %cst_135 = arith.constant dense<0.000000e+00> : vector<288xf32>
    %294 = vector.multi_reduction <add>, %293, %cst_135 [0] : vector<16x288xf32> to vector<288xf32>
    %295 = vector.shape_cast %294 : vector<288xf32> to vector<1x288xf32>
    %c0_136 = arith.constant 0 : index
    %c2_137 = arith.constant 2 : index
    %c0_138 = arith.constant 0 : index
    %c0_139 = arith.constant 0 : index
    %296 = vector.load %arg1[%c0_136, %c2_137, %c0_138, %c0_139] : memref<1x4x16x16xf32, #tpu.memory_space<vmem>>, vector<1x1x16x16xf32>
    %297 = vector.shape_cast %296 : vector<1x1x16x16xf32> to vector<16x16xf32>
    %cst_140 = arith.constant dense<0.000000e+00> : vector<16x288xf32>
    %298 = tpu.matmul %297, %266, %cst_140 {dimension_numbers = #tpu.dot_dimension_numbers<[1], [0], [0], [1], [0, 0, 1, 1], [], []>} : vector<16x16xf32>, vector<16x288xf32>, vector<16x288xf32> -> vector<16x288xf32>
    %299 = arith.mulf %298, %283 : vector<16x288xf32>
    %cst_141 = arith.constant dense<0.000000e+00> : vector<288xf32>
    %300 = vector.multi_reduction <add>, %299, %cst_141 [0] : vector<16x288xf32> to vector<288xf32>
    %301 = vector.shape_cast %300 : vector<288xf32> to vector<1x288xf32>
    %c0_142 = arith.constant 0 : index
    %c3_143 = arith.constant 3 : index
    %c0_144 = arith.constant 0 : index
    %c0_145 = arith.constant 0 : index
    %302 = vector.load %arg1[%c0_142, %c3_143, %c0_144, %c0_145] : memref<1x4x16x16xf32, #tpu.memory_space<vmem>>, vector<1x1x16x16xf32>
    %303 = vector.shape_cast %302 : vector<1x1x16x16xf32> to vector<16x16xf32>
    %cst_146 = arith.constant dense<0.000000e+00> : vector<16x288xf32>
    %304 = tpu.matmul %303, %266, %cst_146 {dimension_numbers = #tpu.dot_dimension_numbers<[1], [0], [0], [1], [0, 0, 1, 1], [], []>} : vector<16x16xf32>, vector<16x288xf32>, vector<16x288xf32> -> vector<16x288xf32>
    %305 = arith.mulf %304, %283 : vector<16x288xf32>
    %cst_147 = arith.constant dense<0.000000e+00> : vector<288xf32>
    %306 = vector.multi_reduction <add>, %305, %cst_147 [0] : vector<16x288xf32> to vector<288xf32>
    %307 = vector.shape_cast %306 : vector<288xf32> to vector<1x288xf32>
    %308 = tpu.concatenate %289, %295, %301, %307 in 0 : vector<1x288xf32>, vector<1x288xf32>, vector<1x288xf32>, vector<1x288xf32> -> vector<4x288xf32>
    %309 = vector.broadcast %158 : vector<1x288xf32> to vector<4x288xf32>
    %310 = arith.mulf %233, %309 : vector<4x288xf32>
    %cst_148 = arith.constant 1.000000e+00 : f32
    %311 = vector.broadcast %cst_148 : f32 to vector<1x288xf32>
    %312 = arith.subf %311, %158 : vector<1x288xf32>
    %313 = vector.broadcast %312 : vector<1x288xf32> to vector<4x288xf32>
    %314 = arith.mulf %308, %313 : vector<4x288xf32>
    %315 = arith.addf %310, %314 : vector<4x288xf32>
    %c0_149 = arith.constant 0 : index
    %c0_150 = arith.constant 0 : index
    %c0_151 = arith.constant 0 : index
    %316 = vector.load %arg12[%c0_149, %c0_150, %c0_151] : memref<1x4x288xf32, #tpu.memory_space<vmem>>, vector<1x4x288xf32>
    %317 = vector.shape_cast %316 : vector<1x4x288xf32> to vector<4x288xf32>
    %318 = vector.shape_cast %315 : vector<4x288xf32> to vector<1x4x288xf32>
    tpu.vector_store %arg12[%c0_149, %c0_150, %c0_151], %318 {strides = array<i32>} : memref<1x4x288xf32, #tpu.memory_space<vmem>>, vector<1x4x288xf32>,
    return
  }
  func.func @transform_0(%arg0: i32) -> (i32, i32, i32, i32) {
    %c0_i32 = arith.constant 0 : i32
    %c0_i32_0 = arith.constant 0 : i32
    %c0_i32_1 = arith.constant 0 : i32
    %c0_i32_2 = arith.constant 0 : i32
    return %arg0, %c0_i32, %c0_i32_0, %c0_i32_1 : i32, i32, i32, i32
  }
  func.func @transform_1(%arg0: i32) -> (i32, i32, i32) {
    %c0_i32 = arith.constant 0 : i32
    %c0_i32_0 = arith.constant 0 : i32
    %c0_i32_1 = arith.constant 0 : i32
    return %arg0, %c0_i32, %c0_i32_0 : i32, i32, i32
  }
  func.func @transform_2(%arg0: i32) -> (i32, i32, i32, i32) {
    %c0_i32 = arith.constant 0 : i32
    %c0_i32_0 = arith.constant 0 : i32
    %c0_i32_1 = arith.constant 0 : i32
    %c0_i32_2 = arith.constant 0 : i32
    return %arg0, %c0_i32, %c0_i32_0, %c0_i32_1 : i32, i32, i32, i32
  }
  func.func @transform_3(%arg0: i32) -> (i32, i32) {
    %c0_i32 = arith.constant 0 : i32
    %c0_i32_0 = arith.constant 0 : i32
    %c0_i32_1 = arith.constant 0 : i32
    return %c0_i32, %c0_i32_0 : i32, i32
  }
  func.func @transform_4(%arg0: i32) -> (i32, i32) {
    %c0_i32 = arith.constant 0 : i32
    %c0_i32_0 = arith.constant 0 : i32
    %c0_i32_1 = arith.constant 0 : i32
    return %c0_i32, %c0_i32_0 : i32, i32
  }
  func.func @transform_5(%arg0: i32) -> (i32, i32, i32) {
    %c0_i32 = arith.constant 0 : i32
    %c0_i32_0 = arith.constant 0 : i32
    %c0_i32_1 = arith.constant 0 : i32
    %c0_i32_2 = arith.constant 0 : i32
    return %c0_i32, %c0_i32_0, %c0_i32_1 : i32, i32, i32
  }
  func.func @transform_6(%arg0: i32) -> (i32, i32) {
    %c0_i32 = arith.constant 0 : i32
    %c0_i32_0 = arith.constant 0 : i32
    %c0_i32_1 = arith.constant 0 : i32
    return %c0_i32, %c0_i32_0 : i32, i32
  }
  func.func @transform_7(%arg0: i32) -> (i32, i32) {
    %c0_i32 = arith.constant 0 : i32
    %c0_i32_0 = arith.constant 0 : i32
    %c0_i32_1 = arith.constant 0 : i32
    return %c0_i32, %c0_i32_0 : i32, i32
  }
  func.func @transform_8(%arg0: i32) -> (i32, i32) {
    %c0_i32 = arith.constant 0 : i32
    %c0_i32_0 = arith.constant 0 : i32
    %c0_i32_1 = arith.constant 0 : i32
    return %c0_i32, %c0_i32_0 : i32, i32
  }
  func.func @transform_9(%arg0: i32) -> (i32, i32) {
    %c0_i32 = arith.constant 0 : i32
    %c0_i32_0 = arith.constant 0 : i32
    %c0_i32_1 = arith.constant 0 : i32
    return %c0_i32, %c0_i32_0 : i32, i32
  }
  func.func @transform_10(%arg0: i32) -> (i32, i32) {
    %c0_i32 = arith.constant 0 : i32
    %c0_i32_0 = arith.constant 0 : i32
    %c0_i32_1 = arith.constant 0 : i32
    return %c0_i32, %c0_i32_0 : i32, i32
  }
  func.func @transform_11(%arg0: i32) -> (i32, i32, i32) {
    %c0_i32 = arith.constant 0 : i32
    %c0_i32_0 = arith.constant 0 : i32
    %c0_i32_1 = arith.constant 0 : i32
    return %arg0, %c0_i32, %c0_i32_0 : i32, i32, i32
  }
}

</mosaic_0001>

<llo_original>
// kernel: tile.26
$region0: #{tile.26}
  #allocation0 [shape = 's32[1]{0}', space=sflag, size = 0x4, scoped, tag = 'scoped memory for tile.26']
  %s0 = inlined_call_operand.vmem [shape: f32[18], index: 0, kind: input, shape index: {}]
  %s1 = inlined_call_operand.vmem [shape: f32[16,1,1,18], index: 1, kind: output, shape index: {}]
  // Predicated region
  $region2: #{tile.26} parent=0 // pred_check
    _
  $region3: #{tile.26} parent=0 // pred_check_branch
    %3 = sbr.rel (0) target = $region5
  $region4: #{tile.26} parent=0 // pred_region
    _
  $region5: #{tile.26} parent=0 // pred_fallthru
    _
  %v4 = vld [vmem:[%s0] ss:$0 sm:$0xff]
  %5 = vst [vmem:[%s1] sm:$0xff] %v4
  %s6 = scalar_lea.vmem %s1, 8
  %7 = vst [vmem:[%s6] sm:$0xff] %v4

// kernel: tile.27
$region0: #{tile.27}
  %s0 = inlined_call_operand.vmem [shape: f32[16,1,1,18], index: 0, kind: input, shape index: {}]
  %s1 = inlined_call_operand.vmem [shape: f32[1,288], index: 1, kind: output, shape index: {}]
  $region1: #{tile.27} parent=0
    #allocation0 [shape = 'u8[12288]{0}', space=vmem, size = 0x3000, scoped, tag = 'scoped mem for output reshape']
    %v2 = vld [vmem:[%s0] sm:$0x1]
    %vm3 = vcmask 146432
    %4 = vst.msk [vmem:[#allocation0] sm:$0x1] %vm3, %v2
    %s5 = scalar_lea.vmem %s0, 7
    %v6 = vld [vmem:[%s5] sm:$0x1]
    %s7 = scalar_lea.vmem %s0, 7
    %v8 = vld [vmem:[%s7] sm:$0x1]
    %vm9 = vcmask 15360
    %v10 = vsel %vm9, %v8, %v6
    %11 = vrot.lane.b32.xlu0 %v10, 126
    %v12 = vpop.permute.xlu0 %11
    %vm13 = vcmask 130048
    %s14 = scalar_lea.vmem [#allocation0], 8
    %15 = vst.msk [vmem:[%s14] sm:$0x1] %vm13, %v12
    %vm16 = vcmask 1048560
    %17 = vst.msk [vmem:[#allocation0] sm:$0x1] %vm16, %v12
    %s18 = scalar_lea.vmem %s0, 14
    %v19 = vld [vmem:[%s18] sm:$0x1]
    %s20 = scalar_lea.vmem %s0, 14
    %v21 = vld [vmem:[%s20] sm:$0x1]
    %vm22 = vcmask 31744
    %v23 = vsel %vm22, %v21, %v19
    %24 = vrot.lane.b32.xlu0 %v23, 124
    %v25 = vpop.permute.xlu0 %24
    %vm26 = vcmask 113664
    %s27 = scalar_lea.vmem [#allocation0], 16
    %28 = vst.msk [vmem:[%s27] sm:$0x1] %vm26, %v25
    %vm29 = vcmask 1048544
    %s30 = scalar_lea.vmem [#allocation0], 8
    %31 = vst.msk [vmem:[%s30] sm:$0x1] %vm29, %v25
    %s32 = scalar_lea.vmem %s0, 6
    %v33 = vld [vmem:[%s32] sm:$0x1]
    %34 = vrot.lane.b32.xlu0 %v33, 108
    %v35 = vpop.permute.xlu0 %34
    %vm36 = vcmask 1032032
    %37 = vst.msk [vmem:[#allocation0] sm:$0x1] %vm36, %v35
    %s38 = scalar_lea.vmem %s0, 13
    %v39 = vld [vmem:[%s38] sm:$0x1]
    %40 = vrot.lane.b32.xlu0 %v39, 106
    %v41 = vpop.permute.xlu0 %40
    %vm42 = vcmask 1015632
    %s43 = scalar_lea.vmem [#allocation0], 8
    %44 = vst.msk [vmem:[%s43] sm:$0x1] %vm42, %v41
    %s45 = scalar_lea.vmem %s0, 5
    %v46 = vld [vmem:[%s45] sm:$0x1]
    %47 = vrot.lane.b32.xlu0 %v46, 90
    %v48 = vpop.permute.xlu0 %47
    %vm49 = vcmask 884432
    %50 = vst.msk [vmem:[#allocation0] sm:$0x1] %vm49, %v48
    %s51 = scalar_lea.vmem %s0, 12
    %v52 = vld [vmem:[%s51] sm:$0x1]
    %53 = vrot.lane.b32.xlu0 %v52, 88
    %v54 = vpop.permute.xlu0 %53
    %vm55 = vcmask 868032
    %s56 = scalar_lea.vmem [#allocation0], 8
    %57 = vst.msk [vmem:[%s56] sm:$0x1] %vm55, %v54
    %s58 = scalar_lea.vmem %s0, 4
    %v59 = vld [vmem:[%s58] sm:$0x1]
    %60 = vrot.lane.b32.xlu0 %v59, 72
    %v61 = vpop.permute.xlu0 %60
    %vm62 = vcmask 736832
    %63 = vst.msk [vmem:[#allocation0] sm:$0x1] %vm62, %v61
    %s64 = scalar_lea.vmem %s0, 11
    %v65 = vld [vmem:[%s64] sm:$0x1]
    %66 = vrot.lane.b32.xlu0 %v65, 70
    %v67 = vpop.permute.xlu0 %66
    %vm68 = vcmask 720432
    %s69 = scalar_lea.vmem [#allocation0], 8
    %70 = vst.msk [vmem:[%s69] sm:$0x1] %vm68, %v67
    %s71 = scalar_lea.vmem %s0, 3
    %v72 = vld [vmem:[%s71] sm:$0x1]
    %73 = vrot.lane.b32.xlu0 %v72, 54
    %v74 = vpop.permute.xlu0 %73
    %vm75 = vcmask 589232
    %76 = vst.msk [vmem:[#allocation0] sm:$0x1] %vm75, %v74
    %s77 = scalar_lea.vmem %s0, 10
    %v78 = vld [vmem:[%s77] sm:$0x1]
    %79 = vrot.lane.b32.xlu0 %v78, 52
    %v80 = vpop.permute.xlu0 %79
    %vm81 = vcmask 572832
    %s82 = scalar_lea.vmem [#allocation0], 8
    %83 = vst.msk [vmem:[%s82] sm:$0x1] %vm81, %v80
    %s84 = scalar_lea.vmem %s0, 2
    %v85 = vld [vmem:[%s84] sm:$0x1]
    %86 = vrot.lane.b32.xlu0 %v85, 36
    %v87 = vpop.permute.xlu0 %86
    %vm88 = vcmask 441632
    %89 = vst.msk [vmem:[#allocation0] sm:$0x1] %vm88, %v87
    %s90 = scalar_lea.vmem %s0, 9
    %v91 = vld [vmem:[%s90] sm:$0x1]
    %92 = vrot.lane.b32.xlu0 %v91, 34
    %v93 = vpop.permute.xlu0 %92
    %vm94 = vcmask 425232
    %s95 = scalar_lea.vmem [#allocation0], 8
    %96 = vst.msk [vmem:[%s95] sm:$0x1] %vm94, %v93
    %s97 = scalar_lea.vmem %s0, 1
    %v98 = vld [vmem:[%s97] sm:$0x1]
    %99 = vrot.lane.b32.xlu0 %v98, 18
    %v100 = vpop.permute.xlu0 %99
    %vm101 = vcmask 294032
    %102 = vst.msk [vmem:[#allocation0] sm:$0x1] %vm101, %v100
    %s103 = scalar_lea.vmem %s0, 8
    %v104 = vld [vmem:[%s103] sm:$0x1]
    %105 = vrot.lane.b32.xlu0 %v104, 16
    %v106 = vpop.permute.xlu0 %105
    %vm107 = vcmask 277632
    %s108 = scalar_lea.vmem [#allocation0], 8
    %109 = vst.msk [vmem:[%s108] sm:$0x1] %vm107, %v106
    %s110 = scalar_lea.vmem %s0, 15
    %v111 = vld [vmem:[%s110] sm:$0x1]
    %112 = vrot.lane.b32.xlu0 %v111, 14
    %v113 = vpop.permute.xlu0 %112
    %vm114 = vcmask 261232
    %s115 = scalar_lea.vmem [#allocation0], 16
    %116 = vst.msk [vmem:[%s115] sm:$0x1] %vm114, %v113
    %s118 = sshllo.u32 0, 1
    %v120 = vld [vmem:[#allocation0] sm:%s118]
    %s121 = sshllo.u32 0, 1
    %122 = vst [vmem:[%s1] sm:%s121] %v120
    %s123 = scalar_lea.vmem [#allocation0], 8
    %v124 = vld [vmem:[%s123] sm:%s118]
    %s125 = sshllo.u32 0, 1
    %s126 = scalar_lea.vmem %s1, 1
    %127 = vst [vmem:[%s126] sm:%s125] %v124
    %s128 = scalar_lea.vmem [#allocation0], 16
    %v129 = vld [vmem:[%s128] sm:%s118]
    %s130 = sshllo.u32 0, 1
    %s131 = smul.addr 1, 2
    %s132 = scalar_lea.vmem %s1, %s131
    %133 = vst [vmem:[%s132] sm:%s130] %v129

// kernel: aligned_module_v2_forward.1
$region0: #{aligned_module_v2_forward.1}
  #allocation0 [shape = 'u32[]', space=smem, size = 0x4, offset = 0x4, fixed_abs, tag = 'smem constant byte address 0x4 - core index']
  #allocation1 [shape = 'u32[144,128]{1,0:T(1,128)}', space=vmem, size = 0x12000, scoped, tag = 'internal scratch']
  %s0 = inlined_call_operand.vmem [shape: f32[2,4,16,16], index: 0, kind: input, shape index: {}]
  %s1 = inlined_call_operand.vmem [shape: f32[2,4,342], index: 1, kind: input, shape index: {}]
  %s2 = inlined_call_operand.vmem [shape: f32[2,4,8,8], index: 2, kind: input, shape index: {}]
  %s3 = inlined_call_operand.vmem [shape: f32[4,4], index: 3, kind: input, shape index: {}]
  %s4 = inlined_call_operand.vmem [shape: f32[4,4], index: 4, kind: input, shape index: {}]
  %s5 = inlined_call_operand.vmem [shape: f32[9,5,8], index: 5, kind: input, shape index: {}]
  %s6 = inlined_call_operand.vmem [shape: f32[1,342], index: 6, kind: input, shape index: {}]
  %s7 = inlined_call_operand.vmem [shape: f32[1,342], index: 7, kind: input, shape index: {}]
  %s8 = inlined_call_operand.vmem [shape: f32[1,342], index: 8, kind: input, shape index: {}]
  %s9 = inlined_call_operand.vmem [shape: f32[1,288], index: 9, kind: input, shape index: {}]
  %s10 = inlined_call_operand.vmem [shape: f32[1,288], index: 10, kind: input, shape index: {}]
  %s11 = inlined_call_operand.vmem [shape: f32[2,4,288], index: 11, kind: output, shape index: {}]
  %s12 = sld [smem:[#allocation0]]
  $region77: #{aligned_module_v2_forward.1} parent=0
    _
  %s14 = ssub.s32 1, %s12
  %s15 = scalar_select 0, %s14, %s12
  loop: start=0, step=1, limit=4
  $region2: #{aligned_module_v2_forward.1} parent=0 // loop_pre_header
    _
  $region3: #{aligned_module_v2_forward.1} parent=0 // loop_header
    %s17 = sphi 0, %s21
    %p18 = scmp.ge.s32.totalorder %s17, 4
    %s27 = sphi 0, %s29
    %s30 = sphi 0, %s27
    %s31 = sphi 0, %s30
    %s47 = sphi 0, %s31
    %s53 = sphi 0, %s55
    %s56 = sphi 0, %s53
    %s57 = sphi 0, %s56
    %s73 = sphi 0, %s57
    %s79 = sphi 0, %s81
    %s82 = sphi 0, %s79
    %s83 = sphi 0, %s82
    %s99 = sphi 0, %s83
    %s103 = sphi 0, %s103
    %s105 = sphi 0, %s103
    %s106 = sphi 0, %s105
    %s120 = sphi 0, %s106
    %s124 = sphi 0, %s124
    %s126 = sphi 0, %s124
    %s127 = sphi 0, %s126
    %s141 = sphi 0, %s127
    %s145 = sphi 0, %s145
    %s147 = sphi 0, %s145
    %s148 = sphi 0, %s147
    %s162 = sphi 0, %s148
    %s166 = sphi 0, %s166
    %s168 = sphi 0, %s166
    %s169 = sphi 0, %s168
    %s183 = sphi 0, %s169
    %s187 = sphi 0, %s187
    %s189 = sphi 0, %s187
    %s190 = sphi 0, %s189
    %s204 = sphi 0, %s190
    %s208 = sphi 0, %s208
    %s210 = sphi 0, %s208
    %s211 = sphi 0, %s210
    %s225 = sphi 0, %s211
    %s229 = sphi 0, %s229
    %s231 = sphi 0, %s229
    %s232 = sphi 0, %s231
    %s246 = sphi 0, %s232
    %s250 = sphi 0, %s250
    %s252 = sphi 0, %s250
    %s253 = sphi 0, %s252
    %s267 = sphi 0, %s253
    %s273 = sphi 0, %s275
    %s276 = sphi 0, %s273
    %s277 = sphi 0, %s276
    %s293 = sphi 0, %s277
  $region4: #{aligned_module_v2_forward.1} parent=0 // loop_header_branch
    %20 = sbr.rel (%p18) target = $region8
  $region5: #{aligned_module_v2_forward.1} parent=0 // loop_body
    %s22 = ssub.s32 %s17, 1
    %s23 = ssub.s32 %s17, 2
    %s24 = sadd.s32 %s17, 1
    %s25 = ssub.s32 %s17, %s24
    %p26 = scmp.eq.s32.totalorder %s25, 0
    %s28 = sadd.s32 %s27, 1
    %s29 = scalar_select %p26, %s27, %s28
    %p32 = pneg %p26
    %p33 = scmp.eq.s32.totalorder %s17, 1
    %p34 = por %p32, %p33
    %p35 = scmp.ne.s32.totalorder %s27, %s30
    %p36 = scmp.eq.s32.totalorder %s17, 0
    %p37 = por %p35, %p36
    %p38 = scmp.ne.s32.totalorder %s27, %s30
    %p39 = scmp.eq.s32.totalorder %s22, 1
    %p40 = por %p38, %p39
    %p41 = scmp.ne.s32.totalorder %s30, %s31
    %p42 = scmp.eq.s32.totalorder %s22, 0
    %p43 = por %p41, %p42
    %p44 = scmp.ne.s32.totalorder %s30, %s31
    %p45 = scmp.eq.s32.totalorder %s23, 1
    %p46 = por %p44, %p45
    %p48 = scmp.ne.s32.totalorder %s31, %s47
    %p49 = scmp.eq.s32.totalorder %s23, 0
    %p50 = por %p48, %p49
    %s51 = ssub.s32 %s17, %s24
    %p52 = scmp.eq.s32.totalorder %s51, 0
    %s54 = sadd.s32 %s53, 1
    %s55 = scalar_select %p52, %s53, %s54
    %p58 = pneg %p52
    %p59 = scmp.eq.s32.totalorder %s17, 1
    %p60 = por %p58, %p59
    %p61 = scmp.ne.s32.totalorder %s53, %s56
    %p62 = scmp.eq.s32.totalorder %s17, 0
    %p63 = por %p61, %p62
    %p64 = scmp.ne.s32.totalorder %s53, %s56
    %p65 = scmp.eq.s32.totalorder %s22, 1
    %p66 = por %p64, %p65
    %p67 = scmp.ne.s32.totalorder %s56, %s57
    %p68 = scmp.eq.s32.totalorder %s22, 0
    %p69 = por %p67, %p68
    %p70 = scmp.ne.s32.totalorder %s56, %s57
    %p71 = scmp.eq.s32.totalorder %s23, 1
    %p72 = por %p70, %p71
    %p74 = scmp.ne.s32.totalorder %s57, %s73
    %p75 = scmp.eq.s32.totalorder %s23, 0
    %p76 = por %p74, %p75
    %s77 = ssub.s32 %s17, %s24
    %p78 = scmp.eq.s32.totalorder %s77, 0
    %s80 = sadd.s32 %s79, 1
    %s81 = scalar_select %p78, %s79, %s80
    %p84 = pneg %p78
    %p85 = scmp.eq.s32.totalorder %s17, 1
    %p86 = por %p84, %p85
    %p87 = scmp.ne.s32.totalorder %s79, %s82
    %p88 = scmp.eq.s32.totalorder %s17, 0
    %p89 = por %p87, %p88
    %p90 = scmp.ne.s32.totalorder %s79, %s82
    %p91 = scmp.eq.s32.totalorder %s22, 1
    %p92 = por %p90, %p91
    %p93 = scmp.ne.s32.totalorder %s82, %s83
    %p94 = scmp.eq.s32.totalorder %s22, 0
    %p95 = por %p93, %p94
    %p96 = scmp.ne.s32.totalorder %s82, %s83
    %p97 = scmp.eq.s32.totalorder %s23, 1
    %p98 = por %p96, %p97
    %p100 = scmp.ne.s32.totalorder %s83, %s99
    %p101 = scmp.eq.s32.totalorder %s23, 0
    %p102 = por %p100, %p101
    %s104 = sadd.s32 %s103, 1
    %p107 = scmp.eq.s32.totalorder %s17, 1
    %p108 = scmp.ne.s32.totalorder %s103, %s105
    %p109 = scmp.eq.s32.totalorder %s17, 0
    %p110 = por %p108, %p109
    %p111 = scmp.ne.s32.totalorder %s103, %s105
    %p112 = scmp.eq.s32.totalorder %s22, 1
    %p113 = por %p111, %p112
    %p114 = scmp.ne.s32.totalorder %s105, %s106
    %p115 = scmp.eq.s32.totalorder %s22, 0
    %p116 = por %p114, %p115
    %p117 = scmp.ne.s32.totalorder %s105, %s106
    %p118 = scmp.eq.s32.totalorder %s23, 1
    %p119 = por %p117, %p118
    %p121 = scmp.ne.s32.totalorder %s106, %s120
    %p122 = scmp.eq.s32.totalorder %s23, 0
    %p123 = por %p121, %p122
    %s125 = sadd.s32 %s124, 1
    %p128 = scmp.eq.s32.totalorder %s17, 1
    %p129 = scmp.ne.s32.totalorder %s124, %s126
    %p130 = scmp.eq.s32.totalorder %s17, 0
    %p131 = por %p129, %p130
    %p132 = scmp.ne.s32.totalorder %s124, %s126
    %p133 = scmp.eq.s32.totalorder %s22, 1
    %p134 = por %p132, %p133
    %p135 = scmp.ne.s32.totalorder %s126, %s127
    %p136 = scmp.eq.s32.totalorder %s22, 0
    %p137 = por %p135, %p136
    %p138 = scmp.ne.s32.totalorder %s126, %s127
    %p139 = scmp.eq.s32.totalorder %s23, 1
    %p140 = por %p138, %p139
    %p142 = scmp.ne.s32.totalorder %s127, %s141
    %p143 = scmp.eq.s32.totalorder %s23, 0
    %p144 = por %p142, %p143
    %s146 = sadd.s32 %s145, 1
    %p149 = scmp.eq.s32.totalorder %s17, 1
    %p150 = scmp.ne.s32.totalorder %s145, %s147
    %p151 = scmp.eq.s32.totalorder %s17, 0
    %p152 = por %p150, %p151
    %p153 = scmp.ne.s32.totalorder %s145, %s147
    %p154 = scmp.eq.s32.totalorder %s22, 1
    %p155 = por %p153, %p154
    %p156 = scmp.ne.s32.totalorder %s147, %s148
    %p157 = scmp.eq.s32.totalorder %s22, 0
    %p158 = por %p156, %p157
    %p159 = scmp.ne.s32.totalorder %s147, %s148
    %p160 = scmp.eq.s32.totalorder %s23, 1
    %p161 = por %p159, %p160
    %p163 = scmp.ne.s32.totalorder %s148, %s162
    %p164 = scmp.eq.s32.totalorder %s23, 0
    %p165 = por %p163, %p164
    %s167 = sadd.s32 %s166, 1
    %p170 = scmp.eq.s32.totalorder %s17, 1
    %p171 = scmp.ne.s32.totalorder %s166, %s168
    %p172 = scmp.eq.s32.totalorder %s17, 0
    %p173 = por %p171, %p172
    %p174 = scmp.ne.s32.totalorder %s166, %s168
    %p175 = scmp.eq.s32.totalorder %s22, 1
    %p176 = por %p174, %p175
    %p177 = scmp.ne.s32.totalorder %s168, %s169
    %p178 = scmp.eq.s32.totalorder %s22, 0
    %p179 = por %p177, %p178
    %p180 = scmp.ne.s32.totalorder %s168, %s169
    %p181 = scmp.eq.s32.totalorder %s23, 1
    %p182 = por %p180, %p181
    %p184 = scmp.ne.s32.totalorder %s169, %s183
    %p185 = scmp.eq.s32.totalorder %s23, 0
    %p186 = por %p184, %p185
    %s188 = sadd.s32 %s187, 1
    %p191 = scmp.eq.s32.totalorder %s17, 1
    %p192 = scmp.ne.s32.totalorder %s187, %s189
    %p193 = scmp.eq.s32.totalorder %s17, 0
    %p194 = por %p192, %p193
    %p195 = scmp.ne.s32.totalorder %s187, %s189
    %p196 = scmp.eq.s32.totalorder %s22, 1
    %p197 = por %p195, %p196
    %p198 = scmp.ne.s32.totalorder %s189, %s190
    %p199 = scmp.eq.s32.totalorder %s22, 0
    %p200 = por %p198, %p199
    %p201 = scmp.ne.s32.totalorder %s189, %s190
    %p202 = scmp.eq.s32.totalorder %s23, 1
    %p203 = por %p201, %p202
    %p205 = scmp.ne.s32.totalorder %s190, %s204
    %p206 = scmp.eq.s32.totalorder %s23, 0
    %p207 = por %p205, %p206
    %s209 = sadd.s32 %s208, 1
    %p212 = scmp.eq.s32.totalorder %s17, 1
    %p213 = scmp.ne.s32.totalorder %s208, %s210
    %p214 = scmp.eq.s32.totalorder %s17, 0
    %p215 = por %p213, %p214
    %p216 = scmp.ne.s32.totalorder %s208, %s210
    %p217 = scmp.eq.s32.totalorder %s22, 1
    %p218 = por %p216, %p217
    %p219 = scmp.ne.s32.totalorder %s210, %s211
    %p220 = scmp.eq.s32.totalorder %s22, 0
    %p221 = por %p219, %p220
    %p222 = scmp.ne.s32.totalorder %s210, %s211
    %p223 = scmp.eq.s32.totalorder %s23, 1
    %p224 = por %p222, %p223
    %p226 = scmp.ne.s32.totalorder %s211, %s225
    %p227 = scmp.eq.s32.totalorder %s23, 0
    %p228 = por %p226, %p227
    %s230 = sadd.s32 %s229, 1
    %p233 = scmp.eq.s32.totalorder %s17, 1
    %p234 = scmp.ne.s32.totalorder %s229, %s231
    %p235 = scmp.eq.s32.totalorder %s17, 0
    %p236 = por %p234, %p235
    %p237 = scmp.ne.s32.totalorder %s229, %s231
    %p238 = scmp.eq.s32.totalorder %s22, 1
    %p239 = por %p237, %p238
    %p240 = scmp.ne.s32.totalorder %s231, %s232
    %p241 = scmp.eq.s32.totalorder %s22, 0
    %p242 = por %p240, %p241
    %p243 = scmp.ne.s32.totalorder %s231, %s232
    %p244 = scmp.eq.s32.totalorder %s23, 1
    %p245 = por %p243, %p244
    %p247 = scmp.ne.s32.totalorder %s232, %s246
    %p248 = scmp.eq.s32.totalorder %s23, 0
    %p249 = por %p247, %p248
    %s251 = sadd.s32 %s250, 1
    %p254 = scmp.eq.s32.totalorder %s17, 1
    %p255 = scmp.ne.s32.totalorder %s250, %s252
    %p256 = scmp.eq.s32.totalorder %s17, 0
    %p257 = por %p255, %p256
    %p258 = scmp.ne.s32.totalorder %s250, %s252
    %p259 = scmp.eq.s32.totalorder %s22, 1
    %p260 = por %p258, %p259
    %p261 = scmp.ne.s32.totalorder %s252, %s253
    %p262 = scmp.eq.s32.totalorder %s22, 0
    %p263 = por %p261, %p262
    %p264 = scmp.ne.s32.totalorder %s252, %s253
    %p265 = scmp.eq.s32.totalorder %s23, 1
    %p266 = por %p264, %p265
    %p268 = scmp.ne.s32.totalorder %s253, %s267
    %p269 = scmp.eq.s32.totalorder %s23, 0
    %p270 = por %p268, %p269
    %s271 = ssub.s32 %s17, %s24
    %p272 = scmp.eq.s32.totalorder %s271, 0
    %s274 = sadd.s32 %s273, 1
    %s275 = scalar_select %p272, %s273, %s274
    %p278 = pneg %p272
    %p279 = scmp.eq.s32.totalorder %s17, 1
    %p280 = por %p278, %p279
    %p281 = scmp.ne.s32.totalorder %s273, %s276
    %p282 = scmp.eq.s32.totalorder %s17, 0
    %p283 = por %p281, %p282
    %p284 = scmp.ne.s32.totalorder %s273, %s276
    %p285 = scmp.eq.s32.totalorder %s22, 1
    %p286 = por %p284, %p285
    %p287 = scmp.ne.s32.totalorder %s276, %s277
    %p288 = scmp.eq.s32.totalorder %s22, 0
    %p289 = por %p287, %p288
    %p290 = scmp.ne.s32.totalorder %s276, %s277
    %p291 = scmp.eq.s32.totalorder %s23, 1
    %p292 = por %p290, %p291
    %p294 = scmp.ne.s32.totalorder %s277, %s293
    %p295 = scmp.eq.s32.totalorder %s23, 0
    %p296 = por %p294, %p295
    %p297 = scmp.le.s32.totalorder 1, %s17
    %p298 = scmp.lt.s32.totalorder %s17, 3
    %p299 = pnand %p297, %p298
    %p300 = pneg %p299
    // Predicated region
    $region9: #{aligned_module_v2_forward.1} parent=5 // pred_check
      _
    $region10: #{aligned_module_v2_forward.1} parent=5 // pred_check_branch
      %302 = sbr.rel (%p299) target = $region12
    $region11: #{aligned_module_v2_forward.1} parent=5 // pred_region
      %s303 = ssub.s32 %s17, 1
      // Predicated region
      $region13: #{aligned_module_v2_forward.1} parent=11 // pred_check
        %p304 = pneg %p116
      $region14: #{aligned_module_v2_forward.1} parent=11 // pred_check_branch
        %306 = sbr.rel (%p304) target = $region16
      $region15: #{aligned_module_v2_forward.1} parent=11 // pred_region
        _
      $region16: #{aligned_module_v2_forward.1} parent=11 // pred_fallthru
        _
      // Predicated region
      $region17: #{aligned_module_v2_forward.1} parent=11 // pred_check
        %p307 = pneg %p137
      $region18: #{aligned_module_v2_forward.1} parent=11 // pred_check_branch
        %309 = sbr.rel (%p307) target = $region20
      $region19: #{aligned_module_v2_forward.1} parent=11 // pred_region
        _
      $region20: #{aligned_module_v2_forward.1} parent=11 // pred_fallthru
        _
      // Predicated region
      $region21: #{aligned_module_v2_forward.1} parent=11 // pred_check
        %p310 = pneg %p158
      $region22: #{aligned_module_v2_forward.1} parent=11 // pred_check_branch
        %312 = sbr.rel (%p310) target = $region24
      $region23: #{aligned_module_v2_forward.1} parent=11 // pred_region
        _
      $region24: #{aligned_module_v2_forward.1} parent=11 // pred_fallthru
        _
      // Predicated region
      $region25: #{aligned_module_v2_forward.1} parent=11 // pred_check
        %p313 = pneg %p179
      $region26: #{aligned_module_v2_forward.1} parent=11 // pred_check_branch
        %315 = sbr.rel (%p313) target = $region28
      $region27: #{aligned_module_v2_forward.1} parent=11 // pred_region
        _
      $region28: #{aligned_module_v2_forward.1} parent=11 // pred_fallthru
        _
      // Predicated region
      $region29: #{aligned_module_v2_forward.1} parent=11 // pred_check
        %p316 = pneg %p200
      $region30: #{aligned_module_v2_forward.1} parent=11 // pred_check_branch
        %318 = sbr.rel (%p316) target = $region32
      $region31: #{aligned_module_v2_forward.1} parent=11 // pred_region
        _
      $region32: #{aligned_module_v2_forward.1} parent=11 // pred_fallthru
        _
      // Predicated region
      $region33: #{aligned_module_v2_forward.1} parent=11 // pred_check
        %p319 = pneg %p221
      $region34: #{aligned_module_v2_forward.1} parent=11 // pred_check_branch
        %321 = sbr.rel (%p319) target = $region36
      $region35: #{aligned_module_v2_forward.1} parent=11 // pred_region
        _
      $region36: #{aligned_module_v2_forward.1} parent=11 // pred_fallthru
        _
      // Predicated region
      $region37: #{aligned_module_v2_forward.1} parent=11 // pred_check
        %p322 = pneg %p242
      $region38: #{aligned_module_v2_forward.1} parent=11 // pred_check_branch
        %324 = sbr.rel (%p322) target = $region40
      $region39: #{aligned_module_v2_forward.1} parent=11 // pred_region
        _
      $region40: #{aligned_module_v2_forward.1} parent=11 // pred_fallthru
        _
      // Predicated region
      $region41: #{aligned_module_v2_forward.1} parent=11 // pred_check
        %p325 = pneg %p263
      $region42: #{aligned_module_v2_forward.1} parent=11 // pred_check_branch
        %327 = sbr.rel (%p325) target = $region44
      $region43: #{aligned_module_v2_forward.1} parent=11 // pred_region
        _
      $region44: #{aligned_module_v2_forward.1} parent=11 // pred_fallthru
        _
    $region12: #{aligned_module_v2_forward.1} parent=5 // pred_fallthru
      _
    %p328 = scmp.lt.s32.totalorder %s17, 2
    // Predicated region
    $region45: #{aligned_module_v2_forward.1} parent=5 // pred_check
      %p329 = pneg %p328
    $region46: #{aligned_module_v2_forward.1} parent=5 // pred_check_branch
      %331 = sbr.rel (%p329) target = $region48
    $region47: #{aligned_module_v2_forward.1} parent=5 // pred_region
      // Predicated region
      $region49: #{aligned_module_v2_forward.1} parent=47 // pred_check
        %p332 = pneg %p37
      $region50: #{aligned_module_v2_forward.1} parent=47 // pred_check_branch
        %334 = sbr.rel (%p332) target = $region52
      $region51: #{aligned_module_v2_forward.1} parent=47 // pred_region
        %p335 = scmp.lt.s32.totalorder %s17, 1
        %s336 = scalar_select %p335, %s17, 1
        %s337 = smul.addr %s336, 8
        %s338 = smul.addr %s337, 8
        %s339 = scalar_lea.vmem %s0, %s338
      $region52: #{aligned_module_v2_forward.1} parent=47 // pred_fallthru
        _
      // Predicated region
      $region53: #{aligned_module_v2_forward.1} parent=47 // pred_check
        %p340 = pneg %p63
      $region54: #{aligned_module_v2_forward.1} parent=47 // pred_check_branch
        %342 = sbr.rel (%p340) target = $region56
      $region55: #{aligned_module_v2_forward.1} parent=47 // pred_region
        %p343 = scmp.lt.s32.totalorder %s17, 1
        %s344 = scalar_select %p343, %s17, 1
        %s345 = smul.addr %s344, 3
        %s346 = smul.addr %s345, 4
        %s347 = scalar_lea.vmem %s1, %s346
      $region56: #{aligned_module_v2_forward.1} parent=47 // pred_fallthru
        _
      // Predicated region
      $region57: #{aligned_module_v2_forward.1} parent=47 // pred_check
        %p348 = pneg %p89
      $region58: #{aligned_module_v2_forward.1} parent=47 // pred_check_branch
        %350 = sbr.rel (%p348) target = $region60
      $region59: #{aligned_module_v2_forward.1} parent=47 // pred_region
        %p351 = scmp.lt.s32.totalorder %s17, 1
        %s352 = scalar_select %p351, %s17, 1
        %s353 = smul.addr %s352, 4
        %s354 = smul.addr %s353, 8
        %s355 = scalar_lea.vmem %s2, %s354
      $region60: #{aligned_module_v2_forward.1} parent=47 // pred_fallthru
        _
    $region48: #{aligned_module_v2_forward.1} parent=5 // pred_fallthru
      _
    %p356 = scmp.le.s32.totalorder 1, %s17
    %p357 = scmp.lt.s32.totalorder %s17, 3
    %p358 = pnand %p356, %p357
    %p359 = pneg %p358
    // Predicated region
    $region61: #{aligned_module_v2_forward.1} parent=5 // pred_check
      _
    $region62: #{aligned_module_v2_forward.1} parent=5 // pred_check_branch
      %361 = sbr.rel (%p358) target = $region64
    $region63: #{aligned_module_v2_forward.1} parent=5 // pred_region
      %s362 = ssub.s32 %s17, 1
      %p363 = scmp.lt.s32.totalorder %s22, 1
      %s364 = scalar_select %p363, %s22, 1
      %s365 = smul.addr %s364, 8
      %s366 = smul.addr %s365, 8
      %s367 = scalar_lea.vmem %s0, %s366
      %p368 = pneg %p43
      %p369 = pneg %p40
      %p370 = scmp.lt.s32.totalorder %s22, 1
      %s371 = scalar_select %p370, %s22, 1
      %s372 = smul.addr %s371, 3
      %s373 = smul.addr %s372, 4
      %s374 = scalar_lea.vmem %s1, %s373
      %p375 = pneg %p69
      %p376 = pneg %p66
      %p377 = scmp.lt.s32.totalorder %s22, 1
      %s378 = scalar_select %p377, %s22, 1
      %s379 = smul.addr %s378, 4
      %s380 = smul.addr %s379, 8
      %s381 = scalar_lea.vmem %s2, %s380
      %p382 = pneg %p95
      %p383 = pneg %p92
      %p384 = pneg %p116
      %p385 = pneg %p113
      %p386 = pneg %p137
      %p387 = pneg %p134
      %p388 = pneg %p158
      %p389 = pneg %p155
      %p390 = pneg %p179
      %p391 = pneg %p176
      %p392 = pneg %p200
      %p393 = pneg %p197
      %p394 = pneg %p221
      %p395 = pneg %p218
      %p396 = pneg %p242
      %p397 = pneg %p239
      %p398 = pneg %p263
      %p399 = pneg %p260
      %p400 = pneg %p289
      %p401 = pneg %p286
      %p402 = scmp.lt.s32.totalorder %s22, 1
      %s403 = scalar_select %p402, %s22, 1
      %s404 = smul.addr %s403, 3
      %s405 = smul.addr %s404, 4
      %s406 = scalar_lea.vmem %s11, %s405
      %p407 = scmp.lt.s32.totalorder %s22, 1
      %s408 = scalar_select %p407, %s22, 1
      %s409 = smul.addr %s408, 8
      %s410 = smul.addr %s409, 8
      %s411 = scalar_lea.vmem %s0, %s410
      %p412 = scmp.lt.s32.totalorder %s22, 1
      %s413 = scalar_select %p412, %s22, 1
      %s414 = smul.addr %s413, 3
      %s415 = smul.addr %s414, 4
      %s416 = scalar_lea.vmem %s1, %s415
      %p417 = scmp.lt.s32.totalorder %s22, 1
      %s418 = scalar_select %p417, %s22, 1
      %s419 = smul.addr %s418, 4
      %s420 = smul.addr %s419, 8
      %s421 = scalar_lea.vmem %s2, %s420
      %p422 = scmp.lt.s32.totalorder %s22, 1
      %s423 = scalar_select %p422, %s22, 1
      %s424 = smul.addr %s423, 3
      %s425 = smul.addr %s424, 4
      %s426 = scalar_lea.vmem %s11, %s425
      %v427 = vld [vmem:[%s6] sm:$0x7]
      %v428 = vld [vmem:[%s7] sm:$0x7]
      %v429 = vadd.f32 %v427, 1.0
      %v430 = vmul.f32 %v429, 3.5
      %v431 = vadd.f32 %v428, 1.0
      %v432 = vmul.f32 %v431, 3.5
      %v433 = vfloor.f32 %v430
      %v434 = vfloor.f32 %v432
      %v435 = vsub.f32 %v430, %v433
      %v436 = vsub.f32 %v432, %v434
      %v437 = vcvt.f32.s32.to.zero.pseudo %v433
      %v438 = vcvt.f32.s32.to.zero.pseudo %v434
      %v439 = vlaneseq
      %v440 = vshrl.u32 %v439, 7
      %v441 = vlaneseq
      %v442 = vshrl.u32 %v441, 7
      %v443 = vsub.s32 0, %v442
      %v444 = vrot.slane %v437, %v443
      %v445 = vlaneseq
      %v446 = vshrl.u32 %v445, 7
      %v447 = vsub.s32 1, %v446
      %v448 = vrot.slane %v437, %v447
      %v449 = vlaneseq
      %v450 = vshrl.u32 %v449, 7
      %v451 = vsub.s32 2, %v450
      %v452 = vrot.slane %v437, %v451
      %vm453 = vcmp.eq.s32.totalorder %v440, %v444
      %vm454 = vcmp.eq.s32.totalorder %v440, %v448
      %vm455 = vcmp.eq.s32.totalorder %v440, %v452
      %v456 = vsel %vm453, 1, 0
      %v457 = vsel %vm454, 1, 0
      %v458 = vsel %vm455, 1, 0
      %v459 = vcvt.s32.f32 %v456
      %v460 = vcvt.s32.f32 %v457
      %v461 = vcvt.s32.f32 %v458
      %v462 = vsub.f32 1.0, %v435
      %v464 = vlaneseq
      %v465 = vshrl.u32 %v464, 7
      %v466 = vsub.s32 0, %v465
      %v467 = vrot.slane %v462, %v466
      %v468 = vlaneseq
      %v469 = vshrl.u32 %v468, 7
      %v470 = vsub.s32 1, %v469
      %v471 = vrot.slane %v462, %v470
      %v472 = vlaneseq
      %v473 = vshrl.u32 %v472, 7
      %v474 = vsub.s32 2, %v473
      %v475 = vrot.slane %v462, %v474
      %v479 = vmul.f32 %v459, %v467
      %v480 = vmul.f32 %v460, %v471
      %v481 = vmul.f32 %v461, %v475
      %v482 = vadd.s32 %v437, 1
      %v483 = vlaneseq
      %v484 = vshrl.u32 %v483, 7
      %v485 = vsub.s32 0, %v484
      %v486 = vrot.slane %v482, %v485
      %v487 = vlaneseq
      %v488 = vshrl.u32 %v487, 7
      %v489 = vsub.s32 1, %v488
      %v490 = vrot.slane %v482, %v489
      %v491 = vlaneseq
      %v492 = vshrl.u32 %v491, 7
      %v493 = vsub.s32 2, %v492
      %v494 = vrot.slane %v482, %v493
      %vm495 = vcmp.eq.s32.totalorder %v440, %v486
      %vm496 = vcmp.eq.s32.totalorder %v440, %v490
      %vm497 = vcmp.eq.s32.totalorder %v440, %v494
      %v498 = vsel %vm495, 1, 0
      %v499 = vsel %vm496, 1, 0
      %v500 = vsel %vm497, 1, 0
      %v501 = vcvt.s32.f32 %v498
      %v502 = vcvt.s32.f32 %v499
      %v503 = vcvt.s32.f32 %v500
      %v505 = vlaneseq
      %v506 = vshrl.u32 %v505, 7
      %v507 = vsub.s32 0, %v506
      %v508 = vrot.slane %v435, %v507
      %v509 = vlaneseq
      %v510 = vshrl.u32 %v509, 7
      %v511 = vsub.s32 1, %v510
      %v512 = vrot.slane %v435, %v511
      %v513 = vlaneseq
      %v514 = vshrl.u32 %v513, 7
      %v515 = vsub.s32 2, %v514
      %v516 = vrot.slane %v435, %v515
      %v520 = vmul.f32 %v501, %v508
      %v521 = vmul.f32 %v502, %v512
      %v522 = vmul.f32 %v503, %v516
      %v523 = vadd.f32 %v479, %v520
      %v524 = vadd.f32 %v480, %v521
      %v525 = vadd.f32 %v481, %v522
      %v526 = vlaneseq
      %v527 = vshrl.u32 %v526, 7
      %v528 = vsub.s32 0, %v527
      %v529 = vrot.slane %v438, %v528
      %v530 = vlaneseq
      %v531 = vshrl.u32 %v530, 7
      %v532 = vsub.s32 1, %v531
      %v533 = vrot.slane %v438, %v532
      %v534 = vlaneseq
      %v535 = vshrl.u32 %v534, 7
      %v536 = vsub.s32 2, %v535
      %v537 = vrot.slane %v438, %v536
      %vm538 = vcmp.eq.s32.totalorder %v440, %v529
      %vm539 = vcmp.eq.s32.totalorder %v440, %v533
      %vm540 = vcmp.eq.s32.totalorder %v440, %v537
      %v541 = vsel %vm538, 1, 0
      %v542 = vsel %vm539, 1, 0
      %v543 = vsel %vm540, 1, 0
      %v544 = vcvt.s32.f32 %v541
      %v545 = vcvt.s32.f32 %v542
      %v546 = vcvt.s32.f32 %v543
      %v547 = vsub.f32 1.0, %v436
      %v549 = vlaneseq
      %v550 = vshrl.u32 %v549, 7
      %v551 = vsub.s32 0, %v550
      %v552 = vrot.slane %v547, %v551
      %v553 = vlaneseq
      %v554 = vshrl.u32 %v553, 7
      %v555 = vsub.s32 1, %v554
      %v556 = vrot.slane %v547, %v555
      %v557 = vlaneseq
      %v558 = vshrl.u32 %v557, 7
      %v559 = vsub.s32 2, %v558
      %v560 = vrot.slane %v547, %v559
      %v564 = vmul.f32 %v544, %v552
      %v565 = vmul.f32 %v545, %v556
      %v566 = vmul.f32 %v546, %v560
      %v567 = vadd.s32 %v438, 1
      %v568 = vlaneseq
      %v569 = vshrl.u32 %v568, 7
      %v570 = vsub.s32 0, %v569
      %v571 = vrot.slane %v567, %v570
      %v572 = vlaneseq
      %v573 = vshrl.u32 %v572, 7
      %v574 = vsub.s32 1, %v573
      %v575 = vrot.slane %v567, %v574
      %v576 = vlaneseq
      %v577 = vshrl.u32 %v576, 7
      %v578 = vsub.s32 2, %v577
      %v579 = vrot.slane %v567, %v578
      %vm580 = vcmp.eq.s32.totalorder %v440, %v571
      %vm581 = vcmp.eq.s32.totalorder %v440, %v575
      %vm582 = vcmp.eq.s32.totalorder %v440, %v579
      %v583 = vsel %vm580, 1, 0
      %v584 = vsel %vm581, 1, 0
      %v585 = vsel %vm582, 1, 0
      %v586 = vcvt.s32.f32 %v583
      %v587 = vcvt.s32.f32 %v584
      %v588 = vcvt.s32.f32 %v585
      %v590 = vlaneseq
      %v591 = vshrl.u32 %v590, 7
      %v592 = vsub.s32 0, %v591
      %v593 = vrot.slane %v436, %v592
      %v594 = vlaneseq
      %v595 = vshrl.u32 %v594, 7
      %v596 = vsub.s32 1, %v595
      %v597 = vrot.slane %v436, %v596
      %v598 = vlaneseq
      %v599 = vshrl.u32 %v598, 7
      %v600 = vsub.s32 2, %v599
      %v601 = vrot.slane %v436, %v600
      %v605 = vmul.f32 %v586, %v593
      %v606 = vmul.f32 %v587, %v597
      %v607 = vmul.f32 %v588, %v601
      %v608 = vadd.f32 %v564, %v605
      %v609 = vadd.f32 %v565, %v606
      %v610 = vadd.f32 %v566, %v607
      %v611 = vld [vmem:[%s421] sm:$0xff]
      %vm612 = vcmask 64512
      %v614 = vsel %vm612, %v611, 0
      %616 = vmatprep.subr.mxu0 %v524
      %617 = vmatpush1.msra.mxu0 %v523
      %618 = vmatprep.subr.mxu0 0.0
      %619 = vmatpush1.msra.mxu0 0.0
      %620 = vmatprep.subr.mxu0 0.0
      %621 = vmatpush1.msra.mxu0 0.0
      %622 = vmatprep.subr.mxu0 0.0
      %623 = vmatpush1.msra.mxu0 0.0
      %624 = vmatprep.subr.mxu0 0.0
      %625 = vmatpush1.msra.mxu0 0.0
      %626 = vmatprep.subr.mxu0 0.0
      %627 = vmatpush1.msra.mxu0 0.0
      %628 = vmatprep.subr.mxu0 0.0
      %629 = vmatpush1.msra.mxu0 0.0
      %630 = vmatprep.subr.mxu0 0.0
      %631 = vmatpush1.msra.mxu0 0.0
      %632 = vmatprep.subr.mxu0 0.0
      %633 = vmatpush1.msra.mxu0 0.0
      %634 = vmatprep.subr.mxu0 0.0
      %635 = vmatpush1.msra.mxu0 0.0
      %636 = vmatprep.subr.mxu0 0.0
      %637 = vmatpush1.msra.mxu0 0.0
      %638 = vmatprep.subr.mxu0 0.0
      %639 = vmatpush1.msra.mxu0 0.0
      %640 = vmatprep.subr.mxu0 0.0
      %641 = vmatpush1.msra.mxu0 0.0
      %642 = vmatprep.subr.mxu0 0.0
      %643 = vmatpush1.msra.mxu0 0.0
      %644 = vmatprep.subr.mxu0 0.0
      %645 = vmatpush1.msra.mxu0 0.0
      %646 = vmatprep.subr.mxu0 0.0
      %647 = vmatpush1.msra.mxu0 0.0
      %648 = vmatprep.subr.mxu0 0.0
      %649 = vmatpush1.msra.mxu0 0.0
      %650 = vmatprep.subr.mxu0 0.0
      %651 = vmatpush1.msra.mxu0 0.0
      %652 = vmatprep.subr.mxu0 0.0
      %653 = vmatpush1.msra.mxu0 0.0
      %654 = vmatprep.subr.mxu0 0.0
      %655 = vmatpush1.msra.mxu0 0.0
      %656 = vmatprep.subr.mxu0 0.0
      %657 = vmatpush1.msra.mxu0 0.0
      %658 = vmatprep.subr.mxu0 0.0
      %659 = vmatpush1.msra.mxu0 0.0
      %660 = vmatprep.subr.mxu0 0.0
      %661 = vmatpush1.msra.mxu0 0.0
      %662 = vmatprep.subr.mxu0 0.0
      %663 = vmatpush1.msra.mxu0 0.0
      %664 = vmatprep.subr.mxu0 0.0
      %665 = vmatpush1.msra.mxu0 0.0
      %666 = vmatprep.subr.mxu0 0.0
      %667 = vmatpush1.msra.mxu0 0.0
      %668 = vmatprep.subr.mxu0 0.0
      %669 = vmatpush1.msra.mxu0 0.0
      %670 = vmatprep.subr.mxu0 0.0
      %671 = vmatpush1.msra.mxu0 0.0
      %672 = vmatprep.subr.mxu0 0.0
      %673 = vmatpush1.msra.mxu0 0.0
      %674 = vmatprep.subr.mxu0 0.0
      %675 = vmatpush1.msra.mxu0 0.0
      %676 = vmatprep.subr.mxu0 0.0
      %677 = vmatpush1.msra.mxu0 0.0
      %678 = vmatprep.subr.mxu0 0.0
      %679 = vmatpush1.msra.mxu0 0.0
      %680 = vmatprep.mubr.f32.mxu0 0.0
      %681 = vmatmul.mubr.f32.gmra.mrb[0].mxu0 %v614
      %v682 = vpop.f32.mrb[0].mxu0
      %v683 = vadd.f32 0.0, %v682
      %v684 = vpop.f32.mrb[0].mxu0
      %v685 = vadd.f32 0.0, %v684
      %686 = vdwg.mxu0
      %687 = vmatprep.subr.mxu0 0.0
      %688 = vmatpush1.msra.mxu0 %v525
      %689 = vmatprep.subr.mxu0 0.0
      %690 = vmatpush1.msra.mxu0 0.0
      %691 = vmatprep.subr.mxu0 0.0
      %692 = vmatpush1.msra.mxu0 0.0
      %693 = vmatprep.subr.mxu0 0.0
      %694 = vmatpush1.msra.mxu0 0.0
      %695 = vmatprep.subr.mxu0 0.0
      %696 = vmatpush1.msra.mxu0 0.0
      %697 = vmatprep.subr.mxu0 0.0
      %698 = vmatpush1.msra.mxu0 0.0
      %699 = vmatprep.subr.mxu0 0.0
      %700 = vmatpush1.msra.mxu0 0.0
      %701 = vmatprep.subr.mxu0 0.0
      %702 = vmatpush1.msra.mxu0 0.0
      %703 = vmatprep.subr.mxu0 0.0
      %704 = vmatpush1.msra.mxu0 0.0
      %705 = vmatprep.subr.mxu0 0.0
      %706 = vmatpush1.msra.mxu0 0.0
      %707 = vmatprep.subr.mxu0 0.0
      %708 = vmatpush1.msra.mxu0 0.0
      %709 = vmatprep.subr.mxu0 0.0
      %710 = vmatpush1.msra.mxu0 0.0
      %711 = vmatprep.subr.mxu0 0.0
      %712 = vmatpush1.msra.mxu0 0.0
      %713 = vmatprep.subr.mxu0 0.0
      %714 = vmatpush1.msra.mxu0 0.0
      %715 = vmatprep.subr.mxu0 0.0
      %716 = vmatpush1.msra.mxu0 0.0
      %717 = vmatprep.subr.mxu0 0.0
      %718 = vmatpush1.msra.mxu0 0.0
      %719 = vmatprep.subr.mxu0 0.0
      %720 = vmatpush1.msra.mxu0 0.0
      %721 = vmatprep.subr.mxu0 0.0
      %722 = vmatpush1.msra.mxu0 0.0
      %723 = vmatprep.subr.mxu0 0.0
      %724 = vmatpush1.msra.mxu0 0.0
      %725 = vmatprep.subr.mxu0 0.0
      %726 = vmatpush1.msra.mxu0 0.0
      %727 = vmatprep.subr.mxu0 0.0
      %728 = vmatpush1.msra.mxu0 0.0
      %729 = vmatprep.subr.mxu0 0.0
      %730 = vmatpush1.msra.mxu0 0.0
      %731 = vmatprep.subr.mxu0 0.0
      %732 = vmatpush1.msra.mxu0 0.0
      %733 = vmatprep.subr.mxu0 0.0
      %734 = vmatpush1.msra.mxu0 0.0
      %735 = vmatprep.subr.mxu0 0.0
      %736 = vmatpush1.msra.mxu0 0.0
      %737 = vmatprep.subr.mxu0 0.0
      %738 = vmatpush1.msra.mxu0 0.0
      %739 = vmatprep.subr.mxu0 0.0
      %740 = vmatpush1.msra.mxu0 0.0
      %741 = vmatprep.subr.mxu0 0.0
      %742 = vmatpush1.msra.mxu0 0.0
      %743 = vmatprep.subr.mxu0 0.0
      %744 = vmatpush1.msra.mxu0 0.0
      %745 = vmatprep.subr.mxu0 0.0
      %746 = vmatpush1.msra.mxu0 0.0
      %747 = vmatprep.subr.mxu0 0.0
      %748 = vmatpush1.msra.mxu0 0.0
      %749 = vmatprep.subr.mxu0 0.0
      %750 = vmatpush1.msra.mxu0 0.0
      %751 = vmatprep.mubr.f32.mxu0 0.0
      %752 = vmatmul.mubr.f32.gmra.mrb[0].mxu0 %v614
      %v753 = vpop.f32.mrb[0].mxu0
      %v754 = vadd.f32 0.0, %v753
      %v755 = vpop.f32.mrb[0].mxu0
      %756 = vdwg.mxu0
      %v757 = vmul.f32 %v683, %v608
      %v758 = vmul.f32 %v685, %v609
      %v759 = vmul.f32 %v754, %v610
      %v760 = vrot.slane %v757, 4
      %v761 = vadd.f32 %v757, %v760
      %v762 = vrot.slane %v761, 2
      %v763 = vadd.f32 %v761, %v762
      %v764 = vrot.slane %v763, 1
      %v765 = vadd.f32 %v763, %v764
      %v766 = vrot.slane %v758, 4
      %v767 = vadd.f32 %v758, %v766
      %v768 = vrot.slane %v767, 2
      %v769 = vadd.f32 %v767, %v768
      %v770 = vrot.slane %v769, 1
      %v771 = vadd.f32 %v769, %v770
      %vm772 = vcmask 703488
      %v773 = vsel %vm772, %v759, 0.0
      %v774 = vrot.slane %v773, 4
      %v775 = vadd.f32 %v773, %v774
      %v776 = vrot.slane %v775, 2
      %v777 = vadd.f32 %v775, %v776
      %v778 = vrot.slane %v777, 1
      %v779 = vadd.f32 %v777, %v778
      %s780 = scalar_lea.vmem %s421, 8
      %v781 = vld [vmem:[%s780] sm:$0xff]
      %v783 = vsel %vm612, %v781, 0
      %785 = vmatprep.subr.mxu0 %v524
      %786 = vmatpush1.msra.mxu0 %v523
      %787 = vmatprep.subr.mxu0 0.0
      %788 = vmatpush1.msra.mxu0 0.0
      %789 = vmatprep.subr.mxu0 0.0
      %790 = vmatpush1.msra.mxu0 0.0
      %791 = vmatprep.subr.mxu0 0.0
      %792 = vmatpush1.msra.mxu0 0.0
      %793 = vmatprep.subr.mxu0 0.0
      %794 = vmatpush1.msra.mxu0 0.0
      %795 = vmatprep.subr.mxu0 0.0
      %796 = vmatpush1.msra.mxu0 0.0
      %797 = vmatprep.subr.mxu0 0.0
      %798 = vmatpush1.msra.mxu0 0.0
      %799 = vmatprep.subr.mxu0 0.0
      %800 = vmatpush1.msra.mxu0 0.0
      %801 = vmatprep.subr.mxu0 0.0
      %802 = vmatpush1.msra.mxu0 0.0
      %803 = vmatprep.subr.mxu0 0.0
      %804 = vmatpush1.msra.mxu0 0.0
      %805 = vmatprep.subr.mxu0 0.0
      %806 = vmatpush1.msra.mxu0 0.0
      %807 = vmatprep.subr.mxu0 0.0
      %808 = vmatpush1.msra.mxu0 0.0
      %809 = vmatprep.subr.mxu0 0.0
      %810 = vmatpush1.msra.mxu0 0.0
      %811 = vmatprep.subr.mxu0 0.0
      %812 = vmatpush1.msra.mxu0 0.0
      %813 = vmatprep.subr.mxu0 0.0
      %814 = vmatpush1.msra.mxu0 0.0
      %815 = vmatprep.subr.mxu0 0.0
      %816 = vmatpush1.msra.mxu0 0.0
      %817 = vmatprep.subr.mxu0 0.0
      %818 = vmatpush1.msra.mxu0 0.0
      %819 = vmatprep.subr.mxu0 0.0
      %820 = vmatpush1.msra.mxu0 0.0
      %821 = vmatprep.subr.mxu0 0.0
      %822 = vmatpush1.msra.mxu0 0.0
      %823 = vmatprep.subr.mxu0 0.0
      %824 = vmatpush1.msra.mxu0 0.0
      %825 = vmatprep.subr.mxu0 0.0
      %826 = vmatpush1.msra.mxu0 0.0
      %827 = vmatprep.subr.mxu0 0.0
      %828 = vmatpush1.msra.mxu0 0.0
      %829 = vmatprep.subr.mxu0 0.0
      %830 = vmatpush1.msra.mxu0 0.0
      %831 = vmatprep.subr.mxu0 0.0
      %832 = vmatpush1.msra.mxu0 0.0
      %833 = vmatprep.subr.mxu0 0.0
      %834 = vmatpush1.msra.mxu0 0.0
      %835 = vmatprep.subr.mxu0 0.0
      %836 = vmatpush1.msra.mxu0 0.0
      %837 = vmatprep.subr.mxu0 0.0
      %838 = vmatpush1.msra.mxu0 0.0
      %839 = vmatprep.subr.mxu0 0.0
      %840 = vmatpush1.msra.mxu0 0.0
      %841 = vmatprep.subr.mxu0 0.0
      %842 = vmatpush1.msra.mxu0 0.0
      %843 = vmatprep.subr.mxu0 0.0
      %844 = vmatpush1.msra.mxu0 0.0
      %845 = vmatprep.subr.mxu0 0.0
      %846 = vmatpush1.msra.mxu0 0.0
      %847 = vmatprep.subr.mxu0 0.0
      %848 = vmatpush1.msra.mxu0 0.0
      %849 = vmatprep.mubr.f32.mxu0 0.0
      %850 = vmatmul.mubr.f32.gmra.mrb[0].mxu0 %v783
      %v851 = vpop.f32.mrb[0].mxu0
      %v852 = vadd.f32 0.0, %v851
      %v853 = vpop.f32.mrb[0].mxu0
      %v854 = vadd.f32 0.0, %v853
      %855 = vdwg.mxu0
      %856 = vmatprep.subr.mxu0 0.0
      %857 = vmatpush1.msra.mxu0 %v525
      %858 = vmatprep.subr.mxu0 0.0
      %859 = vmatpush1.msra.mxu0 0.0
      %860 = vmatprep.subr.mxu0 0.0
      %861 = vmatpush1.msra.mxu0 0.0
      %862 = vmatprep.subr.mxu0 0.0
      %863 = vmatpush1.msra.mxu0 0.0
      %864 = vmatprep.subr.mxu0 0.0
      %865 = vmatpush1.msra.mxu0 0.0
      %866 = vmatprep.subr.mxu0 0.0
      %867 = vmatpush1.msra.mxu0 0.0
      %868 = vmatprep.subr.mxu0 0.0
      %869 = vmatpush1.msra.mxu0 0.0
      %870 = vmatprep.subr.mxu0 0.0
      %871 = vmatpush1.msra.mxu0 0.0
      %872 = vmatprep.subr.mxu0 0.0
      %873 = vmatpush1.msra.mxu0 0.0
      %874 = vmatprep.subr.mxu0 0.0
      %875 = vmatpush1.msra.mxu0 0.0
      %876 = vmatprep.subr.mxu0 0.0
      %877 = vmatpush1.msra.mxu0 0.0
      %878 = vmatprep.subr.mxu0 0.0
      %879 = vmatpush1.msra.mxu0 0.0
      %880 = vmatprep.subr.mxu0 0.0
      %881 = vmatpush1.msra.mxu0 0.0
      %882 = vmatprep.subr.mxu0 0.0
      %883 = vmatpush1.msra.mxu0 0.0
      %884 = vmatprep.subr.mxu0 0.0
      %885 = vmatpush1.msra.mxu0 0.0
      %886 = vmatprep.subr.mxu0 0.0
      %887 = vmatpush1.msra.mxu0 0.0
      %888 = vmatprep.subr.mxu0 0.0
      %889 = vmatpush1.msra.mxu0 0.0
      %890 = vmatprep.subr.mxu0 0.0
      %891 = vmatpush1.msra.mxu0 0.0
      %892 = vmatprep.subr.mxu0 0.0
      %893 = vmatpush1.msra.mxu0 0.0
      %894 = vmatprep.subr.mxu0 0.0
      %895 = vmatpush1.msra.mxu0 0.0
      %896 = vmatprep.subr.mxu0 0.0
      %897 = vmatpush1.msra.mxu0 0.0
      %898 = vmatprep.subr.mxu0 0.0
      %899 = vmatpush1.msra.mxu0 0.0
      %900 = vmatprep.subr.mxu0 0.0
      %901 = vmatpush1.msra.mxu0 0.0
      %902 = vmatprep.subr.mxu0 0.0
      %903 = vmatpush1.msra.mxu0 0.0
      %904 = vmatprep.subr.mxu0 0.0
      %905 = vmatpush1.msra.mxu0 0.0
      %906 = vmatprep.subr.mxu0 0.0
      %907 = vmatpush1.msra.mxu0 0.0
      %908 = vmatprep.subr.mxu0 0.0
      %909 = vmatpush1.msra.mxu0 0.0
      %910 = vmatprep.subr.mxu0 0.0
      %911 = vmatpush1.msra.mxu0 0.0
      %912 = vmatprep.subr.mxu0 0.0
      %913 = vmatpush1.msra.mxu0 0.0
      %914 = vmatprep.subr.mxu0 0.0
      %915 = vmatpush1.msra.mxu0 0.0
      %916 = vmatprep.subr.mxu0 0.0
      %917 = vmatpush1.msra.mxu0 0.0
      %918 = vmatprep.subr.mxu0 0.0
      %919 = vmatpush1.msra.mxu0 0.0
      %920 = vmatprep.mubr.f32.mxu0 0.0
      %921 = vmatmul.mubr.f32.gmra.mrb[0].mxu0 %v783
      %v922 = vpop.f32.mrb[0].mxu0
      %v923 = vadd.f32 0.0, %v922
      %v924 = vpop.f32.mrb[0].mxu0
      %925 = vdwg.mxu0
      %v926 = vmul.f32 %v852, %v608
      %v927 = vmul.f32 %v854, %v609
      %v928 = vmul.f32 %v923, %v610
      %v929 = vrot.slane %v926, 4
      %v930 = vadd.f32 %v926, %v929
      %v931 = vrot.slane %v930, 2
      %v932 = vadd.f32 %v930, %v931
      %v933 = vrot.slane %v932, 1
      %v934 = vadd.f32 %v932, %v933
      %v935 = vrot.slane %v927, 4
      %v936 = vadd.f32 %v927, %v935
      %v937 = vrot.slane %v936, 2
      %v938 = vadd.f32 %v936, %v937
      %v939 = vrot.slane %v938, 1
      %v940 = vadd.f32 %v938, %v939
      %v941 = vsel %vm772, %v928, 0.0
      %v942 = vrot.slane %v941, 4
      %v943 = vadd.f32 %v941, %v942
      %v944 = vrot.slane %v943, 2
      %v945 = vadd.f32 %v943, %v944
      %v946 = vrot.slane %v945, 1
      %v947 = vadd.f32 %v945, %v946
      %s948 = scalar_lea.vmem %s421, 16
      %v949 = vld [vmem:[%s948] sm:$0xff]
      %v951 = vsel %vm612, %v949, 0
      %953 = vmatprep.subr.mxu0 %v524
      %954 = vmatpush1.msra.mxu0 %v523
      %955 = vmatprep.subr.mxu0 0.0
      %956 = vmatpush1.msra.mxu0 0.0
      %957 = vmatprep.subr.mxu0 0.0
      %958 = vmatpush1.msra.mxu0 0.0
      %959 = vmatprep.subr.mxu0 0.0
      %960 = vmatpush1.msra.mxu0 0.0
      %961 = vmatprep.subr.mxu0 0.0
      %962 = vmatpush1.msra.mxu0 0.0
      %963 = vmatprep.subr.mxu0 0.0
      %964 = vmatpush1.msra.mxu0 0.0
      %965 = vmatprep.subr.mxu0 0.0
      %966 = vmatpush1.msra.mxu0 0.0
      %967 = vmatprep.subr.mxu0 0.0
      %968 = vmatpush1.msra.mxu0 0.0
      %969 = vmatprep.subr.mxu0 0.0
      %970 = vmatpush1.msra.mxu0 0.0
      %971 = vmatprep.subr.mxu0 0.0
      %972 = vmatpush1.msra.mxu0 0.0
      %973 = vmatprep.subr.mxu0 0.0
      %974 = vmatpush1.msra.mxu0 0.0
      %975 = vmatprep.subr.mxu0 0.0
      %976 = vmatpush1.msra.mxu0 0.0
      %977 = vmatprep.subr.mxu0 0.0
      %978 = vmatpush1.msra.mxu0 0.0
      %979 = vmatprep.subr.mxu0 0.0
      %980 = vmatpush1.msra.mxu0 0.0
      %981 = vmatprep.subr.mxu0 0.0
      %982 = vmatpush1.msra.mxu0 0.0
      %983 = vmatprep.subr.mxu0 0.0
      %984 = vmatpush1.msra.mxu0 0.0
      %985 = vmatprep.subr.mxu0 0.0
      %986 = vmatpush1.msra.mxu0 0.0
      %987 = vmatprep.subr.mxu0 0.0
      %988 = vmatpush1.msra.mxu0 0.0
      %989 = vmatprep.subr.mxu0 0.0
      %990 = vmatpush1.msra.mxu0 0.0
      %991 = vmatprep.subr.mxu0 0.0
      %992 = vmatpush1.msra.mxu0 0.0
      %993 = vmatprep.subr.mxu0 0.0
      %994 = vmatpush1.msra.mxu0 0.0
      %995 = vmatprep.subr.mxu0 0.0
      %996 = vmatpush1.msra.mxu0 0.0
      %997 = vmatprep.subr.mxu0 0.0
      %998 = vmatpush1.msra.mxu0 0.0
      %999 = vmatprep.subr.mxu0 0.0
      %1000 = vmatpush1.msra.mxu0 0.0
      %1001 = vmatprep.subr.mxu0 0.0
      %1002 = vmatpush1.msra.mxu0 0.0
      %1003 = vmatprep.subr.mxu0 0.0
      %1004 = vmatpush1.msra.mxu0 0.0
      %1005 = vmatprep.subr.mxu0 0.0
      %1006 = vmatpush1.msra.mxu0 0.0
      %1007 = vmatprep.subr.mxu0 0.0
      %1008 = vmatpush1.msra.mxu0 0.0
      %1009 = vmatprep.subr.mxu0 0.0
      %1010 = vmatpush1.msra.mxu0 0.0
      %1011 = vmatprep.subr.mxu0 0.0
      %1012 = vmatpush1.msra.mxu0 0.0
      %1013 = vmatprep.subr.mxu0 0.0
      %1014 = vmatpush1.msra.mxu0 0.0
      %1015 = vmatprep.subr.mxu0 0.0
      %1016 = vmatpush1.msra.mxu0 0.0
      %1017 = vmatprep.mubr.f32.mxu0 0.0
      %1018 = vmatmul.mubr.f32.gmra.mrb[0].mxu0 %v951
      %v1019 = vpop.f32.mrb[0].mxu0
      %v1020 = vadd.f32 0.0, %v1019
      %v1021 = vpop.f32.mrb[0].mxu0
      %v1022 = vadd.f32 0.0, %v1021
      %1023 = vdwg.mxu0
      %1024 = vmatprep.subr.mxu0 0.0
      %1025 = vmatpush1.msra.mxu0 %v525
      %1026 = vmatprep.subr.mxu0 0.0
      %1027 = vmatpush1.msra.mxu0 0.0
      %1028 = vmatprep.subr.mxu0 0.0
      %1029 = vmatpush1.msra.mxu0 0.0
      %1030 = vmatprep.subr.mxu0 0.0
      %1031 = vmatpush1.msra.mxu0 0.0
      %1032 = vmatprep.subr.mxu0 0.0
      %1033 = vmatpush1.msra.mxu0 0.0
      %1034 = vmatprep.subr.mxu0 0.0
      %1035 = vmatpush1.msra.mxu0 0.0
      %1036 = vmatprep.subr.mxu0 0.0
      %1037 = vmatpush1.msra.mxu0 0.0
      %1038 = vmatprep.subr.mxu0 0.0
      %1039 = vmatpush1.msra.mxu0 0.0
      %1040 = vmatprep.subr.mxu0 0.0
      %1041 = vmatpush1.msra.mxu0 0.0
      %1042 = vmatprep.subr.mxu0 0.0
      %1043 = vmatpush1.msra.mxu0 0.0
      %1044 = vmatprep.subr.mxu0 0.0
      %1045 = vmatpush1.msra.mxu0 0.0
      %1046 = vmatprep.subr.mxu0 0.0
      %1047 = vmatpush1.msra.mxu0 0.0
      %1048 = vmatprep.subr.mxu0 0.0
      %1049 = vmatpush1.msra.mxu0 0.0
      %1050 = vmatprep.subr.mxu0 0.0
      %1051 = vmatpush1.msra.mxu0 0.0
      %1052 = vmatprep.subr.mxu0 0.0
      %1053 = vmatpush1.msra.mxu0 0.0
      %1054 = vmatprep.subr.mxu0 0.0
      %1055 = vmatpush1.msra.mxu0 0.0
      %1056 = vmatprep.subr.mxu0 0.0
      %1057 = vmatpush1.msra.mxu0 0.0
      %1058 = vmatprep.subr.mxu0 0.0
      %1059 = vmatpush1.msra.mxu0 0.0
      %1060 = vmatprep.subr.mxu0 0.0
      %1061 = vmatpush1.msra.mxu0 0.0
      %1062 = vmatprep.subr.mxu0 0.0
      %1063 = vmatpush1.msra.mxu0 0.0
      %1064 = vmatprep.subr.mxu0 0.0
      %1065 = vmatpush1.msra.mxu0 0.0
      %1066 = vmatprep.subr.mxu0 0.0
      %1067 = vmatpush1.msra.mxu0 0.0
      %1068 = vmatprep.subr.mxu0 0.0
      %1069 = vmatpush1.msra.mxu0 0.0
      %1070 = vmatprep.subr.mxu0 0.0
      %1071 = vmatpush1.msra.mxu0 0.0
      %1072 = vmatprep.subr.mxu0 0.0
      %1073 = vmatpush1.msra.mxu0 0.0
      %1074 = vmatprep.subr.mxu0 0.0
      %1075 = vmatpush1.msra.mxu0 0.0
      %1076 = vmatprep.subr.mxu0 0.0
      %1077 = vmatpush1.msra.mxu0 0.0
      %1078 = vmatprep.subr.mxu0 0.0
      %1079 = vmatpush1.msra.mxu0 0.0
      %1080 = vmatprep.subr.mxu0 0.0
      %1081 = vmatpush1.msra.mxu0 0.0
      %1082 = vmatprep.subr.mxu0 0.0
      %1083 = vmatpush1.msra.mxu0 0.0
      %1084 = vmatprep.subr.mxu0 0.0
      %1085 = vmatpush1.msra.mxu0 0.0
      %1086 = vmatprep.subr.mxu0 0.0
      %1087 = vmatpush1.msra.mxu0 0.0
      %1088 = vmatprep.mubr.f32.mxu0 0.0
      %1089 = vmatmul.mubr.f32.gmra.mrb[0].mxu0 %v951
      %v1090 = vpop.f32.mrb[0].mxu0
      %v1091 = vadd.f32 0.0, %v1090
      %v1092 = vpop.f32.mrb[0].mxu0
      %1093 = vdwg.mxu0
      %v1094 = vmul.f32 %v1020, %v608
      %v1095 = vmul.f32 %v1022, %v609
      %v1096 = vmul.f32 %v1091, %v610
      %v1097 = vrot.slane %v1094, 4
      %v1098 = vadd.f32 %v1094, %v1097
      %v1099 = vrot.slane %v1098, 2
      %v1100 = vadd.f32 %v1098, %v1099
      %v1101 = vrot.slane %v1100, 1
      %v1102 = vadd.f32 %v1100, %v1101
      %v1103 = vrot.slane %v1095, 4
      %v1104 = vadd.f32 %v1095, %v1103
      %v1105 = vrot.slane %v1104, 2
      %v1106 = vadd.f32 %v1104, %v1105
      %v1107 = vrot.slane %v1106, 1
      %v1108 = vadd.f32 %v1106, %v1107
      %v1109 = vsel %vm772, %v1096, 0.0
      %v1110 = vrot.slane %v1109, 4
      %v1111 = vadd.f32 %v1109, %v1110
      %v1112 = vrot.slane %v1111, 2
      %v1113 = vadd.f32 %v1111, %v1112
      %v1114 = vrot.slane %v1113, 1
      %v1115 = vadd.f32 %v1113, %v1114
      %s1116 = scalar_lea.vmem %s421, 24
      %v1117 = vld [vmem:[%s1116] sm:$0xff]
      %v1119 = vsel %vm612, %v1117, 0
      %1121 = vmatprep.subr.mxu0 %v524
      %1122 = vmatpush1.msra.mxu0 %v523
      %1123 = vmatprep.subr.mxu0 0.0
      %1124 = vmatpush1.msra.mxu0 0.0
      %1125 = vmatprep.subr.mxu0 0.0
      %1126 = vmatpush1.msra.mxu0 0.0
      %1127 = vmatprep.subr.mxu0 0.0
      %1128 = vmatpush1.msra.mxu0 0.0
      %1129 = vmatprep.subr.mxu0 0.0
      %1130 = vmatpush1.msra.mxu0 0.0
      %1131 = vmatprep.subr.mxu0 0.0
      %1132 = vmatpush1.msra.mxu0 0.0
      %1133 = vmatprep.subr.mxu0 0.0
      %1134 = vmatpush1.msra.mxu0 0.0
      %1135 = vmatprep.subr.mxu0 0.0
      %1136 = vmatpush1.msra.mxu0 0.0
      %1137 = vmatprep.subr.mxu0 0.0
      %1138 = vmatpush1.msra.mxu0 0.0
      %1139 = vmatprep.subr.mxu0 0.0
      %1140 = vmatpush1.msra.mxu0 0.0
      %1141 = vmatprep.subr.mxu0 0.0
      %1142 = vmatpush1.msra.mxu0 0.0
      %1143 = vmatprep.subr.mxu0 0.0
      %1144 = vmatpush1.msra.mxu0 0.0
      %1145 = vmatprep.subr.mxu0 0.0
      %1146 = vmatpush1.msra.mxu0 0.0
      %1147 = vmatprep.subr.mxu0 0.0
      %1148 = vmatpush1.msra.mxu0 0.0
      %1149 = vmatprep.subr.mxu0 0.0
      %1150 = vmatpush1.msra.mxu0 0.0
      %1151 = vmatprep.subr.mxu0 0.0
      %1152 = vmatpush1.msra.mxu0 0.0
      %1153 = vmatprep.subr.mxu0 0.0
      %1154 = vmatpush1.msra.mxu0 0.0
      %1155 = vmatprep.subr.mxu0 0.0
      %1156 = vmatpush1.msra.mxu0 0.0
      %1157 = vmatprep.subr.mxu0 0.0
      %1158 = vmatpush1.msra.mxu0 0.0
      %1159 = vmatprep.subr.mxu0 0.0
      %1160 = vmatpush1.msra.mxu0 0.0
      %1161 = vmatprep.subr.mxu0 0.0
      %1162 = vmatpush1.msra.mxu0 0.0
      %1163 = vmatprep.subr.mxu0 0.0
      %1164 = vmatpush1.msra.mxu0 0.0
      %1165 = vmatprep.subr.mxu0 0.0
      %1166 = vmatpush1.msra.mxu0 0.0
      %1167 = vmatprep.subr.mxu0 0.0
      %1168 = vmatpush1.msra.mxu0 0.0
      %1169 = vmatprep.subr.mxu0 0.0
      %1170 = vmatpush1.msra.mxu0 0.0
      %1171 = vmatprep.subr.mxu0 0.0
      %1172 = vmatpush1.msra.mxu0 0.0
      %1173 = vmatprep.subr.mxu0 0.0
      %1174 = vmatpush1.msra.mxu0 0.0
      %1175 = vmatprep.subr.mxu0 0.0
      %1176 = vmatpush1.msra.mxu0 0.0
      %1177 = vmatprep.subr.mxu0 0.0
      %1178 = vmatpush1.msra.mxu0 0.0
      %1179 = vmatprep.subr.mxu0 0.0
      %1180 = vmatpush1.msra.mxu0 0.0
      %1181 = vmatprep.subr.mxu0 0.0
      %1182 = vmatpush1.msra.mxu0 0.0
      %1183 = vmatprep.subr.mxu0 0.0
      %1184 = vmatpush1.msra.mxu0 0.0
      %1185 = vmatprep.mubr.f32.mxu0 0.0
      %1186 = vmatmul.mubr.f32.gmra.mrb[0].mxu0 %v1119
      %v1187 = vpop.f32.mrb[0].mxu0
      %v1188 = vadd.f32 0.0, %v1187
      %v1189 = vpop.f32.mrb[0].mxu0
      %v1190 = vadd.f32 0.0, %v1189
      %1191 = vdwg.mxu0
      %1192 = vmatprep.subr.mxu0 0.0
      %1193 = vmatpush1.msra.mxu0 %v525
      %1194 = vmatprep.subr.mxu0 0.0
      %1195 = vmatpush1.msra.mxu0 0.0
      %1196 = vmatprep.subr.mxu0 0.0
      %1197 = vmatpush1.msra.mxu0 0.0
      %1198 = vmatprep.subr.mxu0 0.0
      %1199 = vmatpush1.msra.mxu0 0.0
      %1200 = vmatprep.subr.mxu0 0.0
      %1201 = vmatpush1.msra.mxu0 0.0
      %1202 = vmatprep.subr.mxu0 0.0
      %1203 = vmatpush1.msra.mxu0 0.0
      %1204 = vmatprep.subr.mxu0 0.0
      %1205 = vmatpush1.msra.mxu0 0.0
      %1206 = vmatprep.subr.mxu0 0.0
      %1207 = vmatpush1.msra.mxu0 0.0
      %1208 = vmatprep.subr.mxu0 0.0
      %1209 = vmatpush1.msra.mxu0 0.0
      %1210 = vmatprep.subr.mxu0 0.0
      %1211 = vmatpush1.msra.mxu0 0.0
      %1212 = vmatprep.subr.mxu0 0.0
      %1213 = vmatpush1.msra.mxu0 0.0
      %1214 = vmatprep.subr.mxu0 0.0
      %1215 = vmatpush1.msra.mxu0 0.0
      %1216 = vmatprep.subr.mxu0 0.0
      %1217 = vmatpush1.msra.mxu0 0.0
      %1218 = vmatprep.subr.mxu0 0.0
      %1219 = vmatpush1.msra.mxu0 0.0
      %1220 = vmatprep.subr.mxu0 0.0
      %1221 = vmatpush1.msra.mxu0 0.0
      %1222 = vmatprep.subr.mxu0 0.0
      %1223 = vmatpush1.msra.mxu0 0.0
      %1224 = vmatprep.subr.mxu0 0.0
      %1225 = vmatpush1.msra.mxu0 0.0
      %1226 = vmatprep.subr.mxu0 0.0
      %1227 = vmatpush1.msra.mxu0 0.0
      %1228 = vmatprep.subr.mxu0 0.0
      %1229 = vmatpush1.msra.mxu0 0.0
      %1230 = vmatprep.subr.mxu0 0.0
      %1231 = vmatpush1.msra.mxu0 0.0
      %1232 = vmatprep.subr.mxu0 0.0
      %1233 = vmatpush1.msra.mxu0 0.0
      %1234 = vmatprep.subr.mxu0 0.0
      %1235 = vmatpush1.msra.mxu0 0.0
      %1236 = vmatprep.subr.mxu0 0.0
      %1237 = vmatpush1.msra.mxu0 0.0
      %1238 = vmatprep.subr.mxu0 0.0
      %1239 = vmatpush1.msra.mxu0 0.0
      %1240 = vmatprep.subr.mxu0 0.0
      %1241 = vmatpush1.msra.mxu0 0.0
      %1242 = vmatprep.subr.mxu0 0.0
      %1243 = vmatpush1.msra.mxu0 0.0
      %1244 = vmatprep.subr.mxu0 0.0
      %1245 = vmatpush1.msra.mxu0 0.0
      %1246 = vmatprep.subr.mxu0 0.0
      %1247 = vmatpush1.msra.mxu0 0.0
      %1248 = vmatprep.subr.mxu0 0.0
      %1249 = vmatpush1.msra.mxu0 0.0
      %1250 = vmatprep.subr.mxu0 0.0
      %1251 = vmatpush1.msra.mxu0 0.0
      %1252 = vmatprep.subr.mxu0 0.0
      %1253 = vmatpush1.msra.mxu0 0.0
      %1254 = vmatprep.subr.mxu0 0.0
      %1255 = vmatpush1.msra.mxu0 0.0
      %1256 = vmatprep.mubr.f32.mxu0 0.0
      %1257 = vmatmul.mubr.f32.gmra.mrb[0].mxu0 %v1119
      %v1258 = vpop.f32.mrb[0].mxu0
      %v1259 = vadd.f32 0.0, %v1258
      %v1260 = vpop.f32.mrb[0].mxu0
      %1261 = vdwg.mxu0
      %v1262 = vmul.f32 %v1188, %v608
      %v1263 = vmul.f32 %v1190, %v609
      %v1264 = vmul.f32 %v1259, %v610
      %v1265 = vrot.slane %v1262, 4
      %v1266 = vadd.f32 %v1262, %v1265
      %v1267 = vrot.slane %v1266, 2
      %v1268 = vadd.f32 %v1266, %v1267
      %v1269 = vrot.slane %v1268, 1
      %v1270 = vadd.f32 %v1268, %v1269
      %v1271 = vrot.slane %v1263, 4
      %v1272 = vadd.f32 %v1263, %v1271
      %v1273 = vrot.slane %v1272, 2
      %v1274 = vadd.f32 %v1272, %v1273
      %v1275 = vrot.slane %v1274, 1
      %v1276 = vadd.f32 %v1274, %v1275
      %v1277 = vsel %vm772, %v1264, 0.0
      %v1278 = vrot.slane %v1277, 4
      %v1279 = vadd.f32 %v1277, %v1278
      %v1280 = vrot.slane %v1279, 2
      %v1281 = vadd.f32 %v1279, %v1280
      %v1282 = vrot.slane %v1281, 1
      %v1283 = vadd.f32 %v1281, %v1282
      %vm1284 = vcmask 1040384
      %v1285 = vsel %vm1284, %v765, %v934
      %v1286 = vsel %vm1284, %v771, %v940
      %v1287 = vsel %vm1284, %v779, %v947
      %vm1288 = vcmask 1041408
      %v1289 = vsel %vm1288, %v1285, %v1102
      %v1290 = vsel %vm1288, %v1286, %v1108
      %v1291 = vsel %vm1288, %v1287, %v1115
      %vm1292 = vcmask 1042432
      %v1293 = vsel %vm1292, %v1289, %v1270
      %v1294 = vsel %vm1292, %v1290, %v1276
      %v1295 = vsel %vm1292, %v1291, %v1283
      %v1296 = vld [vmem:[%s8] sm:$0x7]
      %v1298 = vlaneseq
      %v1299 = vshrl.u32 %v1298, 7
      %v1300 = vsub.s32 0, %v1299
      %v1301 = vrot.slane %v1296, %v1300
      %v1302 = vlaneseq
      %v1303 = vshrl.u32 %v1302, 7
      %v1304 = vsub.s32 1, %v1303
      %v1305 = vrot.slane %v1296, %v1304
      %v1306 = vlaneseq
      %v1307 = vshrl.u32 %v1306, 7
      %v1308 = vsub.s32 2, %v1307
      %v1309 = vrot.slane %v1296, %v1308
      %v1313 = vmul.f32 %v1293, %v1301
      %v1314 = vmul.f32 %v1294, %v1305
      %v1315 = vmul.f32 %v1295, %v1309
      %v1316 = vld [vmem:[%s4] sm:$0xf]
      %vm1317 = vcmask 31744
      %v1319 = vsel %vm1317, %v1316, 0
      %vm1321 = vcmask 1043456
      %v1323 = vsel %vm1321, %v1313, 0
      %v1326 = vsel %vm1321, %v1314, 0
      %v1329 = vsel %vm1321, %v1315, 0
      %1331 = vmatprep.subr.mxu0 %v1326
      %1332 = vmatpush1.msra.mxu0 %v1323
      %1333 = vmatprep.subr.mxu0 0.0
      %1334 = vmatpush1.msra.mxu0 0.0
      %1335 = vmatprep.subr.mxu0 0.0
      %1336 = vmatpush1.msra.mxu0 0.0
      %1337 = vmatprep.subr.mxu0 0.0
      %1338 = vmatpush1.msra.mxu0 0.0
      %1339 = vmatprep.subr.mxu0 0.0
      %1340 = vmatpush1.msra.mxu0 0.0
      %1341 = vmatprep.subr.mxu0 0.0
      %1342 = vmatpush1.msra.mxu0 0.0
      %1343 = vmatprep.subr.mxu0 0.0
      %1344 = vmatpush1.msra.mxu0 0.0
      %1345 = vmatprep.subr.mxu0 0.0
      %1346 = vmatpush1.msra.mxu0 0.0
      %1347 = vmatprep.subr.mxu0 0.0
      %1348 = vmatpush1.msra.mxu0 0.0
      %1349 = vmatprep.subr.mxu0 0.0
      %1350 = vmatpush1.msra.mxu0 0.0
      %1351 = vmatprep.subr.mxu0 0.0
      %1352 = vmatpush1.msra.mxu0 0.0
      %1353 = vmatprep.subr.mxu0 0.0
      %1354 = vmatpush1.msra.mxu0 0.0
      %1355 = vmatprep.subr.mxu0 0.0
      %1356 = vmatpush1.msra.mxu0 0.0
      %1357 = vmatprep.subr.mxu0 0.0
      %1358 = vmatpush1.msra.mxu0 0.0
      %1359 = vmatprep.subr.mxu0 0.0
      %1360 = vmatpush1.msra.mxu0 0.0
      %1361 = vmatprep.subr.mxu0 0.0
      %1362 = vmatpush1.msra.mxu0 0.0
      %1363 = vmatprep.subr.mxu0 0.0
      %1364 = vmatpush1.msra.mxu0 0.0
      %1365 = vmatprep.subr.mxu0 0.0
      %1366 = vmatpush1.msra.mxu0 0.0
      %1367 = vmatprep.subr.mxu0 0.0
      %1368 = vmatpush1.msra.mxu0 0.0
      %1369 = vmatprep.subr.mxu0 0.0
      %1370 = vmatpush1.msra.mxu0 0.0
      %1371 = vmatprep.subr.mxu0 0.0
      %1372 = vmatpush1.msra.mxu0 0.0
      %1373 = vmatprep.subr.mxu0 0.0
      %1374 = vmatpush1.msra.mxu0 0.0
      %1375 = vmatprep.subr.mxu0 0.0
      %1376 = vmatpush1.msra.mxu0 0.0
      %1377 = vmatprep.subr.mxu0 0.0
      %1378 = vmatpush1.msra.mxu0 0.0
      %1379 = vmatprep.subr.mxu0 0.0
      %1380 = vmatpush1.msra.mxu0 0.0
      %1381 = vmatprep.subr.mxu0 0.0
      %1382 = vmatpush1.msra.mxu0 0.0
      %1383 = vmatprep.subr.mxu0 0.0
      %1384 = vmatpush1.msra.mxu0 0.0
      %1385 = vmatprep.subr.mxu0 0.0
      %1386 = vmatpush1.msra.mxu0 0.0
      %1387 = vmatprep.subr.mxu0 0.0
      %1388 = vmatpush1.msra.mxu0 0.0
      %1389 = vmatprep.subr.mxu0 0.0
      %1390 = vmatpush1.msra.mxu0 0.0
      %1391 = vmatprep.subr.mxu0 0.0
      %1392 = vmatpush1.msra.mxu0 0.0
      %1393 = vmatprep.subr.mxu0 0.0
      %1394 = vmatpush1.msra.mxu0 0.0
      %1395 = vmatprep.mubr.f32.mxu0 0.0
      %1396 = vmatmul.mubr.f32.gmra.mrb[0].mxu0 %v1319
      %v1397 = vpop.f32.mrb[0].mxu0
      %v1398 = vadd.f32 0.0, %v1397
      %v1399 = vpop.f32.mrb[0].mxu0
      %v1400 = vadd.f32 0.0, %v1399
      %1401 = vdwg.mxu0
      %1402 = vmatprep.subr.mxu0 0.0
      %1403 = vmatpush1.msra.mxu0 %v1329
      %1404 = vmatprep.subr.mxu0 0.0
      %1405 = vmatpush1.msra.mxu0 0.0
      %1406 = vmatprep.subr.mxu0 0.0
      %1407 = vmatpush1.msra.mxu0 0.0
      %1408 = vmatprep.subr.mxu0 0.0
      %1409 = vmatpush1.msra.mxu0 0.0
      %1410 = vmatprep.subr.mxu0 0.0
      %1411 = vmatpush1.msra.mxu0 0.0
      %1412 = vmatprep.subr.mxu0 0.0
      %1413 = vmatpush1.msra.mxu0 0.0
      %1414 = vmatprep.subr.mxu0 0.0
      %1415 = vmatpush1.msra.mxu0 0.0
      %1416 = vmatprep.subr.mxu0 0.0
      %1417 = vmatpush1.msra.mxu0 0.0
      %1418 = vmatprep.subr.mxu0 0.0
      %1419 = vmatpush1.msra.mxu0 0.0
      %1420 = vmatprep.subr.mxu0 0.0
      %1421 = vmatpush1.msra.mxu0 0.0
      %1422 = vmatprep.subr.mxu0 0.0
      %1423 = vmatpush1.msra.mxu0 0.0
      %1424 = vmatprep.subr.mxu0 0.0
      %1425 = vmatpush1.msra.mxu0 0.0
      %1426 = vmatprep.subr.mxu0 0.0
      %1427 = vmatpush1.msra.mxu0 0.0
      %1428 = vmatprep.subr.mxu0 0.0
      %1429 = vmatpush1.msra.mxu0 0.0
      %1430 = vmatprep.subr.mxu0 0.0
      %1431 = vmatpush1.msra.mxu0 0.0
      %1432 = vmatprep.subr.mxu0 0.0
      %1433 = vmatpush1.msra.mxu0 0.0
      %1434 = vmatprep.subr.mxu0 0.0
      %1435 = vmatpush1.msra.mxu0 0.0
      %1436 = vmatprep.subr.mxu0 0.0
      %1437 = vmatpush1.msra.mxu0 0.0
      %1438 = vmatprep.subr.mxu0 0.0
      %1439 = vmatpush1.msra.mxu0 0.0
      %1440 = vmatprep.subr.mxu0 0.0
      %1441 = vmatpush1.msra.mxu0 0.0
      %1442 = vmatprep.subr.mxu0 0.0
      %1443 = vmatpush1.msra.mxu0 0.0
      %1444 = vmatprep.subr.mxu0 0.0
      %1445 = vmatpush1.msra.mxu0 0.0
      %1446 = vmatprep.subr.mxu0 0.0
      %1447 = vmatpush1.msra.mxu0 0.0
      %1448 = vmatprep.subr.mxu0 0.0
      %1449 = vmatpush1.msra.mxu0 0.0
      %1450 = vmatprep.subr.mxu0 0.0
      %1451 = vmatpush1.msra.mxu0 0.0
      %1452 = vmatprep.subr.mxu0 0.0
      %1453 = vmatpush1.msra.mxu0 0.0
      %1454 = vmatprep.subr.mxu0 0.0
      %1455 = vmatpush1.msra.mxu0 0.0
      %1456 = vmatprep.subr.mxu0 0.0
      %1457 = vmatpush1.msra.mxu0 0.0
      %1458 = vmatprep.subr.mxu0 0.0
      %1459 = vmatpush1.msra.mxu0 0.0
      %1460 = vmatprep.subr.mxu0 0.0
      %1461 = vmatpush1.msra.mxu0 0.0
      %1462 = vmatprep.subr.mxu0 0.0
      %1463 = vmatpush1.msra.mxu0 0.0
      %1464 = vmatprep.subr.mxu0 0.0
      %1465 = vmatpush1.msra.mxu0 0.0
      %1466 = vmatprep.mubr.f32.mxu0 0.0
      %1467 = vmatmul.mubr.f32.gmra.mrb[0].mxu0 %v1319
      %v1468 = vpop.f32.mrb[0].mxu0
      %v1469 = vadd.f32 0.0, %v1468
      %v1470 = vpop.f32.mrb[0].mxu0
      %1471 = vdwg.mxu0
      %v1472 = vld [vmem:[%s3] sm:$0xf]
      %v1473 = vld [vmem:[%s416] sm:$0xff]
      %v1474 = vld [vmem:[%s416 + $0x8] sm:$0xf]
      %v1477 = vcombine.high %v1473, %v1473
      %v1479 = vsel %vm1317, %v1472, 0
      %v1481 = vsel %vm1321, %v1473, 0
      %v1483 = vsel %vm1321, %v1477, 0
      %v1485 = vsel %vm1321, %v1474, 0
      %1487 = vmatprep.subr.mxu0 %v1483
      %1488 = vmatpush1.msra.mxu0 %v1481
      %1489 = vmatprep.subr.mxu0 0.0
      %1490 = vmatpush1.msra.mxu0 0.0
      %1491 = vmatprep.subr.mxu0 0.0
      %1492 = vmatpush1.msra.mxu0 0.0
      %1493 = vmatprep.subr.mxu0 0.0
      %1494 = vmatpush1.msra.mxu0 0.0
      %1495 = vmatprep.subr.mxu0 0.0
      %1496 = vmatpush1.msra.mxu0 0.0
      %1497 = vmatprep.subr.mxu0 0.0
      %1498 = vmatpush1.msra.mxu0 0.0
      %1499 = vmatprep.subr.mxu0 0.0
      %1500 = vmatpush1.msra.mxu0 0.0
      %1501 = vmatprep.subr.mxu0 0.0
      %1502 = vmatpush1.msra.mxu0 0.0
      %1503 = vmatprep.subr.mxu0 0.0
      %1504 = vmatpush1.msra.mxu0 0.0
      %1505 = vmatprep.subr.mxu0 0.0
      %1506 = vmatpush1.msra.mxu0 0.0
      %1507 = vmatprep.subr.mxu0 0.0
      %1508 = vmatpush1.msra.mxu0 0.0
      %1509 = vmatprep.subr.mxu0 0.0
      %1510 = vmatpush1.msra.mxu0 0.0
      %1511 = vmatprep.subr.mxu0 0.0
      %1512 = vmatpush1.msra.mxu0 0.0
      %1513 = vmatprep.subr.mxu0 0.0
      %1514 = vmatpush1.msra.mxu0 0.0
      %1515 = vmatprep.subr.mxu0 0.0
      %1516 = vmatpush1.msra.mxu0 0.0
      %1517 = vmatprep.subr.mxu0 0.0
      %1518 = vmatpush1.msra.mxu0 0.0
      %1519 = vmatprep.subr.mxu0 0.0
      %1520 = vmatpush1.msra.mxu0 0.0
      %1521 = vmatprep.subr.mxu0 0.0
      %1522 = vmatpush1.msra.mxu0 0.0
      %1523 = vmatprep.subr.mxu0 0.0
      %1524 = vmatpush1.msra.mxu0 0.0
      %1525 = vmatprep.subr.mxu0 0.0
      %1526 = vmatpush1.msra.mxu0 0.0
      %1527 = vmatprep.subr.mxu0 0.0
      %1528 = vmatpush1.msra.mxu0 0.0
      %1529 = vmatprep.subr.mxu0 0.0
      %1530 = vmatpush1.msra.mxu0 0.0
      %1531 = vmatprep.subr.mxu0 0.0
      %1532 = vmatpush1.msra.mxu0 0.0
      %1533 = vmatprep.subr.mxu0 0.0
      %1534 = vmatpush1.msra.mxu0 0.0
      %1535 = vmatprep.subr.mxu0 0.0
      %1536 = vmatpush1.msra.mxu0 0.0
      %1537 = vmatprep.subr.mxu0 0.0
      %1538 = vmatpush1.msra.mxu0 0.0
      %1539 = vmatprep.subr.mxu0 0.0
      %1540 = vmatpush1.msra.mxu0 0.0
      %1541 = vmatprep.subr.mxu0 0.0
      %1542 = vmatpush1.msra.mxu0 0.0
      %1543 = vmatprep.subr.mxu0 0.0
      %1544 = vmatpush1.msra.mxu0 0.0
      %1545 = vmatprep.subr.mxu0 0.0
      %1546 = vmatpush1.msra.mxu0 0.0
      %1547 = vmatprep.subr.mxu0 0.0
      %1548 = vmatpush1.msra.mxu0 0.0
      %1549 = vmatprep.subr.mxu0 0.0
      %1550 = vmatpush1.msra.mxu0 0.0
      %1551 = vmatprep.mubr.f32.mxu0 0.0
      %1552 = vmatmul.mubr.f32.gmra.mrb[0].mxu0 %v1479
      %v1553 = vpop.f32.mrb[0].mxu0
      %v1554 = vadd.f32 0.0, %v1553
      %v1555 = vpop.f32.mrb[0].mxu0
      %v1556 = vadd.f32 0.0, %v1555
      %1557 = vdwg.mxu0
      %1558 = vmatprep.subr.mxu0 0.0
      %1559 = vmatpush1.msra.mxu0 %v1485
      %1560 = vmatprep.subr.mxu0 0.0
      %1561 = vmatpush1.msra.mxu0 0.0
      %1562 = vmatprep.subr.mxu0 0.0
      %1563 = vmatpush1.msra.mxu0 0.0
      %1564 = vmatprep.subr.mxu0 0.0
      %1565 = vmatpush1.msra.mxu0 0.0
      %1566 = vmatprep.subr.mxu0 0.0
      %1567 = vmatpush1.msra.mxu0 0.0
      %1568 = vmatprep.subr.mxu0 0.0
      %1569 = vmatpush1.msra.mxu0 0.0
      %1570 = vmatprep.subr.mxu0 0.0
      %1571 = vmatpush1.msra.mxu0 0.0
      %1572 = vmatprep.subr.mxu0 0.0
      %1573 = vmatpush1.msra.mxu0 0.0
      %1574 = vmatprep.subr.mxu0 0.0
      %1575 = vmatpush1.msra.mxu0 0.0
      %1576 = vmatprep.subr.mxu0 0.0
      %1577 = vmatpush1.msra.mxu0 0.0
      %1578 = vmatprep.subr.mxu0 0.0
      %1579 = vmatpush1.msra.mxu0 0.0
      %1580 = vmatprep.subr.mxu0 0.0
      %1581 = vmatpush1.msra.mxu0 0.0
      %1582 = vmatprep.subr.mxu0 0.0
      %1583 = vmatpush1.msra.mxu0 0.0
      %1584 = vmatprep.subr.mxu0 0.0
      %1585 = vmatpush1.msra.mxu0 0.0
      %1586 = vmatprep.subr.mxu0 0.0
      %1587 = vmatpush1.msra.mxu0 0.0
      %1588 = vmatprep.subr.mxu0 0.0
      %1589 = vmatpush1.msra.mxu0 0.0
      %1590 = vmatprep.subr.mxu0 0.0
      %1591 = vmatpush1.msra.mxu0 0.0
      %1592 = vmatprep.subr.mxu0 0.0
      %1593 = vmatpush1.msra.mxu0 0.0
      %1594 = vmatprep.subr.mxu0 0.0
      %1595 = vmatpush1.msra.mxu0 0.0
      %1596 = vmatprep.subr.mxu0 0.0
      %1597 = vmatpush1.msra.mxu0 0.0
      %1598 = vmatprep.subr.mxu0 0.0
      %1599 = vmatpush1.msra.mxu0 0.0
      %1600 = vmatprep.subr.mxu0 0.0
      %1601 = vmatpush1.msra.mxu0 0.0
      %1602 = vmatprep.subr.mxu0 0.0
      %1603 = vmatpush1.msra.mxu0 0.0
      %1604 = vmatprep.subr.mxu0 0.0
      %1605 = vmatpush1.msra.mxu0 0.0
      %1606 = vmatprep.subr.mxu0 0.0
      %1607 = vmatpush1.msra.mxu0 0.0
      %1608 = vmatprep.subr.mxu0 0.0
      %1609 = vmatpush1.msra.mxu0 0.0
      %1610 = vmatprep.subr.mxu0 0.0
      %1611 = vmatpush1.msra.mxu0 0.0
      %1612 = vmatprep.subr.mxu0 0.0
      %1613 = vmatpush1.msra.mxu0 0.0
      %1614 = vmatprep.subr.mxu0 0.0
      %1615 = vmatpush1.msra.mxu0 0.0
      %1616 = vmatprep.subr.mxu0 0.0
      %1617 = vmatpush1.msra.mxu0 0.0
      %1618 = vmatprep.subr.mxu0 0.0
      %1619 = vmatpush1.msra.mxu0 0.0
      %1620 = vmatprep.subr.mxu0 0.0
      %1621 = vmatpush1.msra.mxu0 0.0
      %1622 = vmatprep.mubr.f32.mxu0 0.0
      %1623 = vmatmul.mubr.f32.gmra.mrb[0].mxu0 %v1479
      %v1624 = vpop.f32.mrb[0].mxu0
      %v1625 = vadd.f32 0.0, %v1624
      %v1626 = vpop.f32.mrb[0].mxu0
      %1627 = vdwg.mxu0
      %v1631 = vrot.slane %v1554, 4
      %v1632 = vrot.slane %v1556, 4
      %v1633 = vrot.slane %v1625, 4
      %v1637 = vsel %vm1321, %v1398, %v1631
      %v1638 = vsel %vm1321, %v1400, %v1632
      %v1639 = vsel %vm1321, %v1469, %v1633
      %v1640 = vld [vmem:[%s5] sm:$0x1f]
      %s1641 = scalar_lea.vmem %s5, 8
      %v1642 = vld [vmem:[%s1641] sm:$0x1f]
      %1646 = vrot.lane.b32.xlu0 %v1637, 127
      %v1647 = vpop.permute.xlu0 %1646
      %1648 = vrot.lane.b32.xlu0 %v1638, 127
      %v1649 = vpop.permute.xlu0 %1648
      %1650 = vrot.lane.b32.xlu0 %v1639, 127
      %v1651 = vpop.permute.xlu0 %1650
      %vm1652 = vcmask 1039360
      %v1653 = vsel %vm1652, %v1647, %v1649
      %v1654 = vsel %vm1652, %v1649, %v1651
      %v1659 = vsel %vm612, %v1642, 0
      %1661 = vmatprep.subr.mxu0 %v1654
      %1662 = vmatpush1.msra.mxu0 %v1653
      %1663 = vmatprep.subr.mxu0 0.0
      %1664 = vmatpush1.msra.mxu0 0.0
      %1665 = vmatprep.subr.mxu0 0.0
      %1666 = vmatpush1.msra.mxu0 0.0
      %1667 = vmatprep.subr.mxu0 0.0
      %1668 = vmatpush1.msra.mxu0 0.0
      %1669 = vmatprep.subr.mxu0 0.0
      %1670 = vmatpush1.msra.mxu0 0.0
      %1671 = vmatprep.subr.mxu0 0.0
      %1672 = vmatpush1.msra.mxu0 0.0
      %1673 = vmatprep.subr.mxu0 0.0
      %1674 = vmatpush1.msra.mxu0 0.0
      %1675 = vmatprep.subr.mxu0 0.0
      %1676 = vmatpush1.msra.mxu0 0.0
      %1677 = vmatprep.subr.mxu0 0.0
      %1678 = vmatpush1.msra.mxu0 0.0
      %1679 = vmatprep.subr.mxu0 0.0
      %1680 = vmatpush1.msra.mxu0 0.0
      %1681 = vmatprep.subr.mxu0 0.0
      %1682 = vmatpush1.msra.mxu0 0.0
      %1683 = vmatprep.subr.mxu0 0.0
      %1684 = vmatpush1.msra.mxu0 0.0
      %1685 = vmatprep.subr.mxu0 0.0
      %1686 = vmatpush1.msra.mxu0 0.0
      %1687 = vmatprep.subr.mxu0 0.0
      %1688 = vmatpush1.msra.mxu0 0.0
      %1689 = vmatprep.subr.mxu0 0.0
      %1690 = vmatpush1.msra.mxu0 0.0
      %1691 = vmatprep.subr.mxu0 0.0
      %1692 = vmatpush1.msra.mxu0 0.0
      %1693 = vmatprep.subr.mxu0 0.0
      %1694 = vmatpush1.msra.mxu0 0.0
      %1695 = vmatprep.subr.mxu0 0.0
      %1696 = vmatpush1.msra.mxu0 0.0
      %1697 = vmatprep.subr.mxu0 0.0
      %1698 = vmatpush1.msra.mxu0 0.0
      %1699 = vmatprep.subr.mxu0 0.0
      %1700 = vmatpush1.msra.mxu0 0.0
      %1701 = vmatprep.subr.mxu0 0.0
      %1702 = vmatpush1.msra.mxu0 0.0
      %1703 = vmatprep.subr.mxu0 0.0
      %1704 = vmatpush1.msra.mxu0 0.0
      %1705 = vmatprep.subr.mxu0 0.0
      %1706 = vmatpush1.msra.mxu0 0.0
      %1707 = vmatprep.subr.mxu0 0.0
      %1708 = vmatpush1.msra.mxu0 0.0
      %1709 = vmatprep.subr.mxu0 0.0
      %1710 = vmatpush1.msra.mxu0 0.0
      %1711 = vmatprep.subr.mxu0 0.0
      %1712 = vmatpush1.msra.mxu0 0.0
      %1713 = vmatprep.subr.mxu0 0.0
      %1714 = vmatpush1.msra.mxu0 0.0
      %1715 = vmatprep.subr.mxu0 0.0
      %1716 = vmatpush1.msra.mxu0 0.0
      %1717 = vmatprep.subr.mxu0 0.0
      %1718 = vmatpush1.msra.mxu0 0.0
      %1719 = vmatprep.subr.mxu0 0.0
      %1720 = vmatpush1.msra.mxu0 0.0
      %1721 = vmatprep.subr.mxu0 0.0
      %1722 = vmatpush1.msra.mxu0 0.0
      %1723 = vmatprep.subr.mxu0 0.0
      %1724 = vmatpush1.msra.mxu0 0.0
      %1725 = vmatprep.mubr.f32.mxu0 0.0
      %1726 = vmatmul.mubr.f32.gmra.mrb[0].mxu0 %v1659
      %v1727 = vpop.f32.mrb[0].mxu0
      %v1728 = vadd.f32 0.0, %v1727
      %v1729 = vpop.f32.mrb[0].mxu0
      %v1730 = vadd.f32 0.0, %v1729
      %1731 = vdwg.mxu0
      %1732 = vmatprep.subr.mxu0 0.0
      %1733 = vmatpush1.msra.mxu0 %v1651
      %1734 = vmatprep.subr.mxu0 0.0
      %1735 = vmatpush1.msra.mxu0 0.0
      %1736 = vmatprep.subr.mxu0 0.0
      %1737 = vmatpush1.msra.mxu0 0.0
      %1738 = vmatprep.subr.mxu0 0.0
      %1739 = vmatpush1.msra.mxu0 0.0
      %1740 = vmatprep.subr.mxu0 0.0
      %1741 = vmatpush1.msra.mxu0 0.0
      %1742 = vmatprep.subr.mxu0 0.0
      %1743 = vmatpush1.msra.mxu0 0.0
      %1744 = vmatprep.subr.mxu0 0.0
      %1745 = vmatpush1.msra.mxu0 0.0
      %1746 = vmatprep.subr.mxu0 0.0
      %1747 = vmatpush1.msra.mxu0 0.0
      %1748 = vmatprep.subr.mxu0 0.0
      %1749 = vmatpush1.msra.mxu0 0.0
      %1750 = vmatprep.subr.mxu0 0.0
      %1751 = vmatpush1.msra.mxu0 0.0
      %1752 = vmatprep.subr.mxu0 0.0
      %1753 = vmatpush1.msra.mxu0 0.0
      %1754 = vmatprep.subr.mxu0 0.0
      %1755 = vmatpush1.msra.mxu0 0.0
      %1756 = vmatprep.subr.mxu0 0.0
      %1757 = vmatpush1.msra.mxu0 0.0
      %1758 = vmatprep.subr.mxu0 0.0
      %1759 = vmatpush1.msra.mxu0 0.0
      %1760 = vmatprep.subr.mxu0 0.0
      %1761 = vmatpush1.msra.mxu0 0.0
      %1762 = vmatprep.subr.mxu0 0.0
      %1763 = vmatpush1.msra.mxu0 0.0
      %1764 = vmatprep.subr.mxu0 0.0
      %1765 = vmatpush1.msra.mxu0 0.0
      %1766 = vmatprep.subr.mxu0 0.0
      %1767 = vmatpush1.msra.mxu0 0.0
      %1768 = vmatprep.subr.mxu0 0.0
      %1769 = vmatpush1.msra.mxu0 0.0
      %1770 = vmatprep.subr.mxu0 0.0
      %1771 = vmatpush1.msra.mxu0 0.0
      %1772 = vmatprep.subr.mxu0 0.0
      %1773 = vmatpush1.msra.mxu0 0.0
      %1774 = vmatprep.subr.mxu0 0.0
      %1775 = vmatpush1.msra.mxu0 0.0
      %1776 = vmatprep.subr.mxu0 0.0
      %1777 = vmatpush1.msra.mxu0 0.0
      %1778 = vmatprep.subr.mxu0 0.0
      %1779 = vmatpush1.msra.mxu0 0.0
      %1780 = vmatprep.subr.mxu0 0.0
      %1781 = vmatpush1.msra.mxu0 0.0
      %1782 = vmatprep.subr.mxu0 0.0
      %1783 = vmatpush1.msra.mxu0 0.0
      %1784 = vmatprep.subr.mxu0 0.0
      %1785 = vmatpush1.msra.mxu0 0.0
      %1786 = vmatprep.subr.mxu0 0.0
      %1787 = vmatpush1.msra.mxu0 0.0
      %1788 = vmatprep.subr.mxu0 0.0
      %1789 = vmatpush1.msra.mxu0 0.0
      %1790 = vmatprep.subr.mxu0 0.0
      %1791 = vmatpush1.msra.mxu0 0.0
      %1792 = vmatprep.subr.mxu0 0.0
      %1793 = vmatpush1.msra.mxu0 0.0
      %1794 = vmatprep.subr.mxu0 0.0
      %1795 = vmatpush1.msra.mxu0 0.0
      %1796 = vmatprep.mubr.f32.mxu0 0.0
      %1797 = vmatmul.mubr.f32.gmra.mrb[0].mxu0 %v1659
      %v1798 = vpop.f32.mrb[0].mxu0
      %v1799 = vadd.f32 0.0, %v1798
      %v1800 = vpop.f32.mrb[0].mxu0
      %1801 = vdwg.mxu0
      %v1803 = vsel %vm612, %v1640, 0
      %1805 = vmatprep.subr.mxu0 %v1638
      %1806 = vmatpush1.msra.mxu0 %v1637
      %1807 = vmatprep.subr.mxu0 0.0
      %1808 = vmatpush1.msra.mxu0 0.0
      %1809 = vmatprep.subr.mxu0 0.0
      %1810 = vmatpush1.msra.mxu0 0.0
      %1811 = vmatprep.subr.mxu0 0.0
      %1812 = vmatpush1.msra.mxu0 0.0
      %1813 = vmatprep.subr.mxu0 0.0
      %1814 = vmatpush1.msra.mxu0 0.0
      %1815 = vmatprep.subr.mxu0 0.0
      %1816 = vmatpush1.msra.mxu0 0.0
      %1817 = vmatprep.subr.mxu0 0.0
      %1818 = vmatpush1.msra.mxu0 0.0
      %1819 = vmatprep.subr.mxu0 0.0
      %1820 = vmatpush1.msra.mxu0 0.0
      %1821 = vmatprep.subr.mxu0 0.0
      %1822 = vmatpush1.msra.mxu0 0.0
      %1823 = vmatprep.subr.mxu0 0.0
      %1824 = vmatpush1.msra.mxu0 0.0
      %1825 = vmatprep.subr.mxu0 0.0
      %1826 = vmatpush1.msra.mxu0 0.0
      %1827 = vmatprep.subr.mxu0 0.0
      %1828 = vmatpush1.msra.mxu0 0.0
      %1829 = vmatprep.subr.mxu0 0.0
      %1830 = vmatpush1.msra.mxu0 0.0
      %1831 = vmatprep.subr.mxu0 0.0
      %1832 = vmatpush1.msra.mxu0 0.0
      %1833 = vmatprep.subr.mxu0 0.0
      %1834 = vmatpush1.msra.mxu0 0.0
      %1835 = vmatprep.subr.mxu0 0.0
      %1836 = vmatpush1.msra.mxu0 0.0
      %1837 = vmatprep.subr.mxu0 0.0
      %1838 = vmatpush1.msra.mxu0 0.0
      %1839 = vmatprep.subr.mxu0 0.0
      %1840 = vmatpush1.msra.mxu0 0.0
      %1841 = vmatprep.subr.mxu0 0.0
      %1842 = vmatpush1.msra.mxu0 0.0
      %1843 = vmatprep.subr.mxu0 0.0
      %1844 = vmatpush1.msra.mxu0 0.0
      %1845 = vmatprep.subr.mxu0 0.0
      %1846 = vmatpush1.msra.mxu0 0.0
      %1847 = vmatprep.subr.mxu0 0.0
      %1848 = vmatpush1.msra.mxu0 0.0
      %1849 = vmatprep.subr.mxu0 0.0
      %1850 = vmatpush1.msra.mxu0 0.0
      %1851 = vmatprep.subr.mxu0 0.0
      %1852 = vmatpush1.msra.mxu0 0.0
      %1853 = vmatprep.subr.mxu0 0.0
      %1854 = vmatpush1.msra.mxu0 0.0
      %1855 = vmatprep.subr.mxu0 0.0
      %1856 = vmatpush1.msra.mxu0 0.0
      %1857 = vmatprep.subr.mxu0 0.0
      %1858 = vmatpush1.msra.mxu0 0.0
      %1859 = vmatprep.subr.mxu0 0.0
      %1860 = vmatpush1.msra.mxu0 0.0
      %1861 = vmatprep.subr.mxu0 0.0
      %1862 = vmatpush1.msra.mxu0 0.0
      %1863 = vmatprep.subr.mxu0 0.0
      %1864 = vmatpush1.msra.mxu0 0.0
      %1865 = vmatprep.subr.mxu0 0.0
      %1866 = vmatpush1.msra.mxu0 0.0
      %1867 = vmatprep.subr.mxu0 0.0
      %1868 = vmatpush1.msra.mxu0 0.0
      %1869 = vmatprep.mubr.f32.mxu0 0.0
      %1870 = vmatmul.mubr.f32.gmra.mrb[0].mxu0 %v1803
      %v1871 = vpop.f32.mrb[0].mxu0
      %v1872 = vadd.f32 %v1728, %v1871
      %v1873 = vpop.f32.mrb[0].mxu0
      %v1874 = vadd.f32 %v1730, %v1873
      %1875 = vdwg.mxu0
      %1876 = vmatprep.subr.mxu0 0.0
      %1877 = vmatpush1.msra.mxu0 %v1639
      %1878 = vmatprep.subr.mxu0 0.0
      %1879 = vmatpush1.msra.mxu0 0.0
      %1880 = vmatprep.subr.mxu0 0.0
      %1881 = vmatpush1.msra.mxu0 0.0
      %1882 = vmatprep.subr.mxu0 0.0
      %1883 = vmatpush1.msra.mxu0 0.0
      %1884 = vmatprep.subr.mxu0 0.0
      %1885 = vmatpush1.msra.mxu0 0.0
      %1886 = vmatprep.subr.mxu0 0.0
      %1887 = vmatpush1.msra.mxu0 0.0
      %1888 = vmatprep.subr.mxu0 0.0
      %1889 = vmatpush1.msra.mxu0 0.0
      %1890 = vmatprep.subr.mxu0 0.0
      %1891 = vmatpush1.msra.mxu0 0.0
      %1892 = vmatprep.subr.mxu0 0.0
      %1893 = vmatpush1.msra.mxu0 0.0
      %1894 = vmatprep.subr.mxu0 0.0
      %1895 = vmatpush1.msra.mxu0 0.0
      %1896 = vmatprep.subr.mxu0 0.0
      %1897 = vmatpush1.msra.mxu0 0.0
      %1898 = vmatprep.subr.mxu0 0.0
      %1899 = vmatpush1.msra.mxu0 0.0
      %1900 = vmatprep.subr.mxu0 0.0
      %1901 = vmatpush1.msra.mxu0 0.0
      %1902 = vmatprep.subr.mxu0 0.0
      %1903 = vmatpush1.msra.mxu0 0.0
      %1904 = vmatprep.subr.mxu0 0.0
      %1905 = vmatpush1.msra.mxu0 0.0
      %1906 = vmatprep.subr.mxu0 0.0
      %1907 = vmatpush1.msra.mxu0 0.0
      %1908 = vmatprep.subr.mxu0 0.0
      %1909 = vmatpush1.msra.mxu0 0.0
      %1910 = vmatprep.subr.mxu0 0.0
      %1911 = vmatpush1.msra.mxu0 0.0
      %1912 = vmatprep.subr.mxu0 0.0
      %1913 = vmatpush1.msra.mxu0 0.0
      %1914 = vmatprep.subr.mxu0 0.0
      %1915 = vmatpush1.msra.mxu0 0.0
      %1916 = vmatprep.subr.mxu0 0.0
      %1917 = vmatpush1.msra.mxu0 0.0
      %1918 = vmatprep.subr.mxu0 0.0
      %1919 = vmatpush1.msra.mxu0 0.0
      %1920 = vmatprep.subr.mxu0 0.0
      %1921 = vmatpush1.msra.mxu0 0.0
      %1922 = vmatprep.subr.mxu0 0.0
      %1923 = vmatpush1.msra.mxu0 0.0
      %1924 = vmatprep.subr.mxu0 0.0
      %1925 = vmatpush1.msra.mxu0 0.0
      %1926 = vmatprep.subr.mxu0 0.0
      %1927 = vmatpush1.msra.mxu0 0.0
      %1928 = vmatprep.subr.mxu0 0.0
      %1929 = vmatpush1.msra.mxu0 0.0
      %1930 = vmatprep.subr.mxu0 0.0
      %1931 = vmatpush1.msra.mxu0 0.0
      %1932 = vmatprep.subr.mxu0 0.0
      %1933 = vmatpush1.msra.mxu0 0.0
      %1934 = vmatprep.subr.mxu0 0.0
      %1935 = vmatpush1.msra.mxu0 0.0
      %1936 = vmatprep.subr.mxu0 0.0
      %1937 = vmatpush1.msra.mxu0 0.0
      %1938 = vmatprep.subr.mxu0 0.0
      %1939 = vmatpush1.msra.mxu0 0.0
      %1940 = vmatprep.mubr.f32.mxu0 0.0
      %1941 = vmatmul.mubr.f32.gmra.mrb[0].mxu0 %v1803
      %v1942 = vpop.f32.mrb[0].mxu0
      %v1943 = vadd.f32 %v1799, %v1942
      %v1944 = vpop.f32.mrb[0].mxu0
      %1945 = vdwg.mxu0
      %s1946 = scalar_lea.vmem %s5, 16
      %v1947 = vld [vmem:[%s1946] sm:$0x1f]
      %1948 = vrot.lane.b32.xlu0 %v1637, 126
      %v1949 = vpop.permute.xlu0 %1948
      %1950 = vrot.lane.b32.xlu0 %v1638, 126
      %v1951 = vpop.permute.xlu0 %1950
      %1952 = vrot.lane.b32.xlu0 %v1639, 126
      %v1953 = vpop.permute.xlu0 %1952
      %vm1954 = vcmask 1031168
      %v1955 = vsel %vm1954, %v1949, %v1951
      %v1956 = vsel %vm1954, %v1951, %v1953
      %v1961 = vsel %vm612, %v1947, 0
      %1963 = vmatprep.subr.mxu0 %v1956
      %1964 = vmatpush1.msra.mxu0 %v1955
      %1965 = vmatprep.subr.mxu0 0.0
      %1966 = vmatpush1.msra.mxu0 0.0
      %1967 = vmatprep.subr.mxu0 0.0
      %1968 = vmatpush1.msra.mxu0 0.0
      %1969 = vmatprep.subr.mxu0 0.0
      %1970 = vmatpush1.msra.mxu0 0.0
      %1971 = vmatprep.subr.mxu0 0.0
      %1972 = vmatpush1.msra.mxu0 0.0
      %1973 = vmatprep.subr.mxu0 0.0
      %1974 = vmatpush1.msra.mxu0 0.0
      %1975 = vmatprep.subr.mxu0 0.0
      %1976 = vmatpush1.msra.mxu0 0.0
      %1977 = vmatprep.subr.mxu0 0.0
      %1978 = vmatpush1.msra.mxu0 0.0
      %1979 = vmatprep.subr.mxu0 0.0
      %1980 = vmatpush1.msra.mxu0 0.0
      %1981 = vmatprep.subr.mxu0 0.0
      %1982 = vmatpush1.msra.mxu0 0.0
      %1983 = vmatprep.subr.mxu0 0.0
      %1984 = vmatpush1.msra.mxu0 0.0
      %1985 = vmatprep.subr.mxu0 0.0
      %1986 = vmatpush1.msra.mxu0 0.0
      %1987 = vmatprep.subr.mxu0 0.0
      %1988 = vmatpush1.msra.mxu0 0.0
      %1989 = vmatprep.subr.mxu0 0.0
      %1990 = vmatpush1.msra.mxu0 0.0
      %1991 = vmatprep.subr.mxu0 0.0
      %1992 = vmatpush1.msra.mxu0 0.0
      %1993 = vmatprep.subr.mxu0 0.0
      %1994 = vmatpush1.msra.mxu0 0.0
      %1995 = vmatprep.subr.mxu0 0.0
      %1996 = vmatpush1.msra.mxu0 0.0
      %1997 = vmatprep.subr.mxu0 0.0
      %1998 = vmatpush1.msra.mxu0 0.0
      %1999 = vmatprep.subr.mxu0 0.0
      %2000 = vmatpush1.msra.mxu0 0.0
      %2001 = vmatprep.subr.mxu0 0.0
      %2002 = vmatpush1.msra.mxu0 0.0
      %2003 = vmatprep.subr.mxu0 0.0
      %2004 = vmatpush1.msra.mxu0 0.0
      %2005 = vmatprep.subr.mxu0 0.0
      %2006 = vmatpush1.msra.mxu0 0.0
      %2007 = vmatprep.subr.mxu0 0.0
      %2008 = vmatpush1.msra.mxu0 0.0
      %2009 = vmatprep.subr.mxu0 0.0
      %2010 = vmatpush1.msra.mxu0 0.0
      %2011 = vmatprep.subr.mxu0 0.0
      %2012 = vmatpush1.msra.mxu0 0.0
      %2013 = vmatprep.subr.mxu0 0.0
      %2014 = vmatpush1.msra.mxu0 0.0
      %2015 = vmatprep.subr.mxu0 0.0
      %2016 = vmatpush1.msra.mxu0 0.0
      %2017 = vmatprep.subr.mxu0 0.0
      %2018 = vmatpush1.msra.mxu0 0.0
      %2019 = vmatprep.subr.mxu0 0.0
      %2020 = vmatpush1.msra.mxu0 0.0
      %2021 = vmatprep.subr.mxu0 0.0
      %2022 = vmatpush1.msra.mxu0 0.0
      %2023 = vmatprep.subr.mxu0 0.0
      %2024 = vmatpush1.msra.mxu0 0.0
      %2025 = vmatprep.subr.mxu0 0.0
      %2026 = vmatpush1.msra.mxu0 0.0
      %2027 = vmatprep.mubr.f32.mxu0 0.0
      %2028 = vmatmul.mubr.f32.gmra.mrb[0].mxu0 %v1961
      %v2029 = vpop.f32.mrb[0].mxu0
      %v2030 = vadd.f32 0.0, %v2029
      %v2031 = vpop.f32.mrb[0].mxu0
      %v2032 = vadd.f32 0.0, %v2031
      %2033 = vdwg.mxu0
      %2034 = vmatprep.subr.mxu0 0.0
      %2035 = vmatpush1.msra.mxu0 %v1953
      %2036 = vmatprep.subr.mxu0 0.0
      %2037 = vmatpush1.msra.mxu0 0.0
      %2038 = vmatprep.subr.mxu0 0.0
      %2039 = vmatpush1.msra.mxu0 0.0
      %2040 = vmatprep.subr.mxu0 0.0
      %2041 = vmatpush1.msra.mxu0 0.0
      %2042 = vmatprep.subr.mxu0 0.0
      %2043 = vmatpush1.msra.mxu0 0.0
      %2044 = vmatprep.subr.mxu0 0.0
      %2045 = vmatpush1.msra.mxu0 0.0
      %2046 = vmatprep.subr.mxu0 0.0
      %2047 = vmatpush1.msra.mxu0 0.0
      %2048 = vmatprep.subr.mxu0 0.0
      %2049 = vmatpush1.msra.mxu0 0.0
      %2050 = vmatprep.subr.mxu0 0.0
      %2051 = vmatpush1.msra.mxu0 0.0
      %2052 = vmatprep.subr.mxu0 0.0
      %2053 = vmatpush1.msra.mxu0 0.0
      %2054 = vmatprep.subr.mxu0 0.0
      %2055 = vmatpush1.msra.mxu0 0.0
      %2056 = vmatprep.subr.mxu0 0.0
      %2057 = vmatpush1.msra.mxu0 0.0
      %2058 = vmatprep.subr.mxu0 0.0
      %2059 = vmatpush1.msra.mxu0 0.0
      %2060 = vmatprep.subr.mxu0 0.0
      %2061 = vmatpush1.msra.mxu0 0.0
      %2062 = vmatprep.subr.mxu0 0.0
      %2063 = vmatpush1.msra.mxu0 0.0
      %2064 = vmatprep.subr.mxu0 0.0
      %2065 = vmatpush1.msra.mxu0 0.0
      %2066 = vmatprep.subr.mxu0 0.0
      %2067 = vmatpush1.msra.mxu0 0.0
      %2068 = vmatprep.subr.mxu0 0.0
      %2069 = vmatpush1.msra.mxu0 0.0
      %2070 = vmatprep.subr.mxu0 0.0
      %2071 = vmatpush1.msra.mxu0 0.0
      %2072 = vmatprep.subr.mxu0 0.0
      %2073 = vmatpush1.msra.mxu0 0.0
      %2074 = vmatprep.subr.mxu0 0.0
      %2075 = vmatpush1.msra.mxu0 0.0
      %2076 = vmatprep.subr.mxu0 0.0
      %2077 = vmatpush1.msra.mxu0 0.0
      %2078 = vmatprep.subr.mxu0 0.0
      %2079 = vmatpush1.msra.mxu0 0.0
      %2080 = vmatprep.subr.mxu0 0.0
      %2081 = vmatpush1.msra.mxu0 0.0
      %2082 = vmatprep.subr.mxu0 0.0
      %2083 = vmatpush1.msra.mxu0 0.0
      %2084 = vmatprep.subr.mxu0 0.0
      %2085 = vmatpush1.msra.mxu0 0.0
      %2086 = vmatprep.subr.mxu0 0.0
      %2087 = vmatpush1.msra.mxu0 0.0
      %2088 = vmatprep.subr.mxu0 0.0
      %2089 = vmatpush1.msra.mxu0 0.0
      %2090 = vmatprep.subr.mxu0 0.0
      %2091 = vmatpush1.msra.mxu0 0.0
      %2092 = vmatprep.subr.mxu0 0.0
      %2093 = vmatpush1.msra.mxu0 0.0
      %2094 = vmatprep.subr.mxu0 0.0
      %2095 = vmatpush1.msra.mxu0 0.0
      %2096 = vmatprep.subr.mxu0 0.0
      %2097 = vmatpush1.msra.mxu0 0.0
      %2098 = vmatprep.mubr.f32.mxu0 0.0
      %2099 = vmatmul.mubr.f32.gmra.mrb[0].mxu0 %v1961
      %v2100 = vpop.f32.mrb[0].mxu0
      %v2101 = vadd.f32 0.0, %v2100
      %v2102 = vpop.f32.mrb[0].mxu0
      %2103 = vdwg.mxu0
      %v2104 = vadd.f32 %v1872, %v2030
      %v2105 = vadd.f32 %v1874, %v2032
      %v2106 = vadd.f32 %v1943, %v2101
      %s2107 = scalar_lea.vmem %s5, 24
      %v2108 = vld [vmem:[%s2107] sm:$0x1f]
      %2109 = vrot.lane.b32.xlu0 %v1637, 110
      %v2110 = vpop.permute.xlu0 %2109
      %2111 = vrot.lane.b32.xlu0 %v1638, 110
      %v2112 = vpop.permute.xlu0 %2111
      %2113 = vrot.lane.b32.xlu0 %v1639, 110
      %v2114 = vpop.permute.xlu0 %2113
      %vm2115 = vcmask 900096
      %v2116 = vsel %vm2115, %v2110, %v2112
      %v2117 = vsel %vm2115, %v2112, %v2114
      %v2122 = vsel %vm612, %v2108, 0
      %2124 = vmatprep.subr.mxu0 %v2117
      %2125 = vmatpush1.msra.mxu0 %v2116
      %2126 = vmatprep.subr.mxu0 0.0
      %2127 = vmatpush1.msra.mxu0 0.0
      %2128 = vmatprep.subr.mxu0 0.0
      %2129 = vmatpush1.msra.mxu0 0.0
      %2130 = vmatprep.subr.mxu0 0.0
      %2131 = vmatpush1.msra.mxu0 0.0
      %2132 = vmatprep.subr.mxu0 0.0
      %2133 = vmatpush1.msra.mxu0 0.0
      %2134 = vmatprep.subr.mxu0 0.0
      %2135 = vmatpush1.msra.mxu0 0.0
      %2136 = vmatprep.subr.mxu0 0.0
      %2137 = vmatpush1.msra.mxu0 0.0
      %2138 = vmatprep.subr.mxu0 0.0
      %2139 = vmatpush1.msra.mxu0 0.0
      %2140 = vmatprep.subr.mxu0 0.0
      %2141 = vmatpush1.msra.mxu0 0.0
      %2142 = vmatprep.subr.mxu0 0.0
      %2143 = vmatpush1.msra.mxu0 0.0
      %2144 = vmatprep.subr.mxu0 0.0
      %2145 = vmatpush1.msra.mxu0 0.0
      %2146 = vmatprep.subr.mxu0 0.0
      %2147 = vmatpush1.msra.mxu0 0.0
      %2148 = vmatprep.subr.mxu0 0.0
      %2149 = vmatpush1.msra.mxu0 0.0
      %2150 = vmatprep.subr.mxu0 0.0
      %2151 = vmatpush1.msra.mxu0 0.0
      %2152 = vmatprep.subr.mxu0 0.0
      %2153 = vmatpush1.msra.mxu0 0.0
      %2154 = vmatprep.subr.mxu0 0.0
      %2155 = vmatpush1.msra.mxu0 0.0
      %2156 = vmatprep.subr.mxu0 0.0
      %2157 = vmatpush1.msra.mxu0 0.0
      %2158 = vmatprep.subr.mxu0 0.0
      %2159 = vmatpush1.msra.mxu0 0.0
      %2160 = vmatprep.subr.mxu0 0.0
      %2161 = vmatpush1.msra.mxu0 0.0
      %2162 = vmatprep.subr.mxu0 0.0
      %2163 = vmatpush1.msra.mxu0 0.0
      %2164 = vmatprep.subr.mxu0 0.0
      %2165 = vmatpush1.msra.mxu0 0.0
      %2166 = vmatprep.subr.mxu0 0.0
      %2167 = vmatpush1.msra.mxu0 0.0
      %2168 = vmatprep.subr.mxu0 0.0
      %2169 = vmatpush1.msra.mxu0 0.0
      %2170 = vmatprep.subr.mxu0 0.0
      %2171 = vmatpush1.msra.mxu0 0.0
      %2172 = vmatprep.subr.mxu0 0.0
      %2173 = vmatpush1.msra.mxu0 0.0
      %2174 = vmatprep.subr.mxu0 0.0
      %2175 = vmatpush1.msra.mxu0 0.0
      %2176 = vmatprep.subr.mxu0 0.0
      %2177 = vmatpush1.msra.mxu0 0.0
      %2178 = vmatprep.subr.mxu0 0.0
      %2179 = vmatpush1.msra.mxu0 0.0
      %2180 = vmatprep.subr.mxu0 0.0
      %2181 = vmatpush1.msra.mxu0 0.0
      %2182 = vmatprep.subr.mxu0 0.0
      %2183 = vmatpush1.msra.mxu0 0.0
      %2184 = vmatprep.subr.mxu0 0.0
      %2185 = vmatpush1.msra.mxu0 0.0
      %2186 = vmatprep.subr.mxu0 0.0
      %2187 = vmatpush1.msra.mxu0 0.0
      %2188 = vmatprep.mubr.f32.mxu0 0.0
      %2189 = vmatmul.mubr.f32.gmra.mrb[0].mxu0 %v2122
      %v2190 = vpop.f32.mrb[0].mxu0
      %v2191 = vadd.f32 0.0, %v2190
      %v2192 = vpop.f32.mrb[0].mxu0
      %v2193 = vadd.f32 0.0, %v2192
      %2194 = vdwg.mxu0
      %2195 = vmatprep.subr.mxu0 0.0
      %2196 = vmatpush1.msra.mxu0 %v2114
      %2197 = vmatprep.subr.mxu0 0.0
      %2198 = vmatpush1.msra.mxu0 0.0
      %2199 = vmatprep.subr.mxu0 0.0
      %2200 = vmatpush1.msra.mxu0 0.0
      %2201 = vmatprep.subr.mxu0 0.0
      %2202 = vmatpush1.msra.mxu0 0.0
      %2203 = vmatprep.subr.mxu0 0.0
      %2204 = vmatpush1.msra.mxu0 0.0
      %2205 = vmatprep.subr.mxu0 0.0
      %2206 = vmatpush1.msra.mxu0 0.0
      %2207 = vmatprep.subr.mxu0 0.0
      %2208 = vmatpush1.msra.mxu0 0.0
      %2209 = vmatprep.subr.mxu0 0.0
      %2210 = vmatpush1.msra.mxu0 0.0
      %2211 = vmatprep.subr.mxu0 0.0
      %2212 = vmatpush1.msra.mxu0 0.0
      %2213 = vmatprep.subr.mxu0 0.0
      %2214 = vmatpush1.msra.mxu0 0.0
      %2215 = vmatprep.subr.mxu0 0.0
      %2216 = vmatpush1.msra.mxu0 0.0
      %2217 = vmatprep.subr.mxu0 0.0
      %2218 = vmatpush1.msra.mxu0 0.0
      %2219 = vmatprep.subr.mxu0 0.0
      %2220 = vmatpush1.msra.mxu0 0.0
      %2221 = vmatprep.subr.mxu0 0.0
      %2222 = vmatpush1.msra.mxu0 0.0
      %2223 = vmatprep.subr.mxu0 0.0
      %2224 = vmatpush1.msra.mxu0 0.0
      %2225 = vmatprep.subr.mxu0 0.0
      %2226 = vmatpush1.msra.mxu0 0.0
      %2227 = vmatprep.subr.mxu0 0.0
      %2228 = vmatpush1.msra.mxu0 0.0
      %2229 = vmatprep.subr.mxu0 0.0
      %2230 = vmatpush1.msra.mxu0 0.0
      %2231 = vmatprep.subr.mxu0 0.0
      %2232 = vmatpush1.msra.mxu0 0.0
      %2233 = vmatprep.subr.mxu0 0.0
      %2234 = vmatpush1.msra.mxu0 0.0
      %2235 = vmatprep.subr.mxu0 0.0
      %2236 = vmatpush1.msra.mxu0 0.0
      %2237 = vmatprep.subr.mxu0 0.0
      %2238 = vmatpush1.msra.mxu0 0.0
      %2239 = vmatprep.subr.mxu0 0.0
      %2240 = vmatpush1.msra.mxu0 0.0
      %2241 = vmatprep.subr.mxu0 0.0
      %2242 = vmatpush1.msra.mxu0 0.0
      %2243 = vmatprep.subr.mxu0 0.0
      %2244 = vmatpush1.msra.mxu0 0.0
      %2245 = vmatprep.subr.mxu0 0.0
      %2246 = vmatpush1.msra.mxu0 0.0
      %2247 = vmatprep.subr.mxu0 0.0
      %2248 = vmatpush1.msra.mxu0 0.0
      %2249 = vmatprep.subr.mxu0 0.0
      %2250 = vmatpush1.msra.mxu0 0.0
      %2251 = vmatprep.subr.mxu0 0.0
      %2252 = vmatpush1.msra.mxu0 0.0
      %2253 = vmatprep.subr.mxu0 0.0
      %2254 = vmatpush1.msra.mxu0 0.0
      %2255 = vmatprep.subr.mxu0 0.0
      %2256 = vmatpush1.msra.mxu0 0.0
      %2257 = vmatprep.subr.mxu0 0.0
      %2258 = vmatpush1.msra.mxu0 0.0
      %2259 = vmatprep.mubr.f32.mxu0 0.0
      %2260 = vmatmul.mubr.f32.gmra.mrb[0].mxu0 %v2122
      %v2261 = vpop.f32.mrb[0].mxu0
      %v2262 = vadd.f32 0.0, %v2261
      %v2263 = vpop.f32.mrb[0].mxu0
      %2264 = vdwg.mxu0
      %v2265 = vadd.f32 %v2104, %v2191
      %v2266 = vadd.f32 %v2105, %v2193
      %v2267 = vadd.f32 %v2106, %v2262
      %s2268 = scalar_lea.vmem %s5, 32
      %v2269 = vld [vmem:[%s2268] sm:$0x1f]
      %2270 = vrot.lane.b32.xlu0 %v1637, 109
      %v2271 = vpop.permute.xlu0 %2270
      %2272 = vrot.lane.b32.xlu0 %v1638, 109
      %v2273 = vpop.permute.xlu0 %2272
      %2274 = vrot.lane.b32.xlu0 %v1639, 109
      %v2275 = vpop.permute.xlu0 %2274
      %vm2276 = vcmask 891904
      %v2277 = vsel %vm2276, %v2271, %v2273
      %v2278 = vsel %vm2276, %v2273, %v2275
      %v2283 = vsel %vm612, %v2269, 0
      %2285 = vmatprep.subr.mxu0 %v2278
      %2286 = vmatpush1.msra.mxu0 %v2277
      %2287 = vmatprep.subr.mxu0 0.0
      %2288 = vmatpush1.msra.mxu0 0.0
      %2289 = vmatprep.subr.mxu0 0.0
      %2290 = vmatpush1.msra.mxu0 0.0
      %2291 = vmatprep.subr.mxu0 0.0
      %2292 = vmatpush1.msra.mxu0 0.0
      %2293 = vmatprep.subr.mxu0 0.0
      %2294 = vmatpush1.msra.mxu0 0.0
      %2295 = vmatprep.subr.mxu0 0.0
      %2296 = vmatpush1.msra.mxu0 0.0
      %2297 = vmatprep.subr.mxu0 0.0
      %2298 = vmatpush1.msra.mxu0 0.0
      %2299 = vmatprep.subr.mxu0 0.0
      %2300 = vmatpush1.msra.mxu0 0.0
      %2301 = vmatprep.subr.mxu0 0.0
      %2302 = vmatpush1.msra.mxu0 0.0
      %2303 = vmatprep.subr.mxu0 0.0
      %2304 = vmatpush1.msra.mxu0 0.0
      %2305 = vmatprep.subr.mxu0 0.0
      %2306 = vmatpush1.msra.mxu0 0.0
      %2307 = vmatprep.subr.mxu0 0.0
      %2308 = vmatpush1.msra.mxu0 0.0
      %2309 = vmatprep.subr.mxu0 0.0
      %2310 = vmatpush1.msra.mxu0 0.0
      %2311 = vmatprep.subr.mxu0 0.0
      %2312 = vmatpush1.msra.mxu0 0.0
      %2313 = vmatprep.subr.mxu0 0.0
      %2314 = vmatpush1.msra.mxu0 0.0
      %2315 = vmatprep.subr.mxu0 0.0
      %2316 = vmatpush1.msra.mxu0 0.0
      %2317 = vmatprep.subr.mxu0 0.0
      %2318 = vmatpush1.msra.mxu0 0.0
      %2319 = vmatprep.subr.mxu0 0.0
      %2320 = vmatpush1.msra.mxu0 0.0
      %2321 = vmatprep.subr.mxu0 0.0
      %2322 = vmatpush1.msra.mxu0 0.0
      %2323 = vmatprep.subr.mxu0 0.0
      %2324 = vmatpush1.msra.mxu0 0.0
      %2325 = vmatprep.subr.mxu0 0.0
      %2326 = vmatpush1.msra.mxu0 0.0
      %2327 = vmatprep.subr.mxu0 0.0
      %2328 = vmatpush1.msra.mxu0 0.0
      %2329 = vmatprep.subr.mxu0 0.0
      %2330 = vmatpush1.msra.mxu0 0.0
      %2331 = vmatprep.subr.mxu0 0.0
      %2332 = vmatpush1.msra.mxu0 0.0
      %2333 = vmatprep.subr.mxu0 0.0
      %2334 = vmatpush1.msra.mxu0 0.0
      %2335 = vmatprep.subr.mxu0 0.0
      %2336 = vmatpush1.msra.mxu0 0.0
      %2337 = vmatprep.subr.mxu0 0.0
      %2338 = vmatpush1.msra.mxu0 0.0
      %2339 = vmatprep.subr.mxu0 0.0
      %2340 = vmatpush1.msra.mxu0 0.0
      %2341 = vmatprep.subr.mxu0 0.0
      %2342 = vmatpush1.msra.mxu0 0.0
      %2343 = vmatprep.subr.mxu0 0.0
      %2344 = vmatpush1.msra.mxu0 0.0
      %2345 = vmatprep.subr.mxu0 0.0
      %2346 = vmatpush1.msra.mxu0 0.0
      %2347 = vmatprep.subr.mxu0 0.0
      %2348 = vmatpush1.msra.mxu0 0.0
      %2349 = vmatprep.mubr.f32.mxu0 0.0
      %2350 = vmatmul.mubr.f32.gmra.mrb[0].mxu0 %v2283
      %v2351 = vpop.f32.mrb[0].mxu0
      %v2352 = vadd.f32 0.0, %v2351
      %v2353 = vpop.f32.mrb[0].mxu0
      %v2354 = vadd.f32 0.0, %v2353
      %2355 = vdwg.mxu0
      %2356 = vmatprep.subr.mxu0 0.0
      %2357 = vmatpush1.msra.mxu0 %v2275
      %2358 = vmatprep.subr.mxu0 0.0
      %2359 = vmatpush1.msra.mxu0 0.0
      %2360 = vmatprep.subr.mxu0 0.0
      %2361 = vmatpush1.msra.mxu0 0.0
      %2362 = vmatprep.subr.mxu0 0.0
      %2363 = vmatpush1.msra.mxu0 0.0
      %2364 = vmatprep.subr.mxu0 0.0
      %2365 = vmatpush1.msra.mxu0 0.0
      %2366 = vmatprep.subr.mxu0 0.0
      %2367 = vmatpush1.msra.mxu0 0.0
      %2368 = vmatprep.subr.mxu0 0.0
      %2369 = vmatpush1.msra.mxu0 0.0
      %2370 = vmatprep.subr.mxu0 0.0
      %2371 = vmatpush1.msra.mxu0 0.0
      %2372 = vmatprep.subr.mxu0 0.0
      %2373 = vmatpush1.msra.mxu0 0.0
      %2374 = vmatprep.subr.mxu0 0.0
      %2375 = vmatpush1.msra.mxu0 0.0
      %2376 = vmatprep.subr.mxu0 0.0
      %2377 = vmatpush1.msra.mxu0 0.0
      %2378 = vmatprep.subr.mxu0 0.0
      %2379 = vmatpush1.msra.mxu0 0.0
      %2380 = vmatprep.subr.mxu0 0.0
      %2381 = vmatpush1.msra.mxu0 0.0
      %2382 = vmatprep.subr.mxu0 0.0
      %2383 = vmatpush1.msra.mxu0 0.0
      %2384 = vmatprep.subr.mxu0 0.0
      %2385 = vmatpush1.msra.mxu0 0.0
      %2386 = vmatprep.subr.mxu0 0.0
      %2387 = vmatpush1.msra.mxu0 0.0
      %2388 = vmatprep.subr.mxu0 0.0
      %2389 = vmatpush1.msra.mxu0 0.0
      %2390 = vmatprep.subr.mxu0 0.0
      %2391 = vmatpush1.msra.mxu0 0.0
      %2392 = vmatprep.subr.mxu0 0.0
      %2393 = vmatpush1.msra.mxu0 0.0
      %2394 = vmatprep.subr.mxu0 0.0
      %2395 = vmatpush1.msra.mxu0 0.0
      %2396 = vmatprep.subr.mxu0 0.0
      %2397 = vmatpush1.msra.mxu0 0.0
      %2398 = vmatprep.subr.mxu0 0.0
      %2399 = vmatpush1.msra.mxu0 0.0
      %2400 = vmatprep.subr.mxu0 0.0
      %2401 = vmatpush1.msra.mxu0 0.0
      %2402 = vmatprep.subr.mxu0 0.0
      %2403 = vmatpush1.msra.mxu0 0.0
      %2404 = vmatprep.subr.mxu0 0.0
      %2405 = vmatpush1.msra.mxu0 0.0
      %2406 = vmatprep.subr.mxu0 0.0
      %2407 = vmatpush1.msra.mxu0 0.0
      %2408 = vmatprep.subr.mxu0 0.0
      %2409 = vmatpush1.msra.mxu0 0.0
      %2410 = vmatprep.subr.mxu0 0.0
      %2411 = vmatpush1.msra.mxu0 0.0
      %2412 = vmatprep.subr.mxu0 0.0
      %2413 = vmatpush1.msra.mxu0 0.0
      %2414 = vmatprep.subr.mxu0 0.0
      %2415 = vmatpush1.msra.mxu0 0.0
      %2416 = vmatprep.subr.mxu0 0.0
      %2417 = vmatpush1.msra.mxu0 0.0
      %2418 = vmatprep.subr.mxu0 0.0
      %2419 = vmatpush1.msra.mxu0 0.0
      %2420 = vmatprep.mubr.f32.mxu0 0.0
      %2421 = vmatmul.mubr.f32.gmra.mrb[0].mxu0 %v2283
      %v2422 = vpop.f32.mrb[0].mxu0
      %v2423 = vadd.f32 0.0, %v2422
      %v2424 = vpop.f32.mrb[0].mxu0
      %2425 = vdwg.mxu0
      %v2426 = vadd.f32 %v2265, %v2352
      %v2427 = vadd.f32 %v2266, %v2354
      %v2428 = vadd.f32 %v2267, %v2423
      %s2429 = scalar_lea.vmem %s5, 40
      %v2430 = vld [vmem:[%s2429] sm:$0x1f]
      %2431 = vrot.lane.b32.xlu0 %v1637, 108
      %v2432 = vpop.permute.xlu0 %2431
      %2433 = vrot.lane.b32.xlu0 %v1638, 108
      %v2434 = vpop.permute.xlu0 %2433
      %2435 = vrot.lane.b32.xlu0 %v1639, 108
      %v2436 = vpop.permute.xlu0 %2435
      %vm2437 = vcmask 883712
      %v2438 = vsel %vm2437, %v2432, %v2434
      %v2439 = vsel %vm2437, %v2434, %v2436
      %v2444 = vsel %vm612, %v2430, 0
      %2446 = vmatprep.subr.mxu0 %v2439
      %2447 = vmatpush1.msra.mxu0 %v2438
      %2448 = vmatprep.subr.mxu0 0.0
      %2449 = vmatpush1.msra.mxu0 0.0
      %2450 = vmatprep.subr.mxu0 0.0
      %2451 = vmatpush1.msra.mxu0 0.0
      %2452 = vmatprep.subr.mxu0 0.0
      %2453 = vmatpush1.msra.mxu0 0.0
      %2454 = vmatprep.subr.mxu0 0.0
      %2455 = vmatpush1.msra.mxu0 0.0
      %2456 = vmatprep.subr.mxu0 0.0
      %2457 = vmatpush1.msra.mxu0 0.0
      %2458 = vmatprep.subr.mxu0 0.0
      %2459 = vmatpush1.msra.mxu0 0.0
      %2460 = vmatprep.subr.mxu0 0.0
      %2461 = vmatpush1.msra.mxu0 0.0
      %2462 = vmatprep.subr.mxu0 0.0
      %2463 = vmatpush1.msra.mxu0 0.0
      %2464 = vmatprep.subr.mxu0 0.0
      %2465 = vmatpush1.msra.mxu0 0.0
      %2466 = vmatprep.subr.mxu0 0.0
      %2467 = vmatpush1.msra.mxu0 0.0
      %2468 = vmatprep.subr.mxu0 0.0
      %2469 = vmatpush1.msra.mxu0 0.0
      %2470 = vmatprep.subr.mxu0 0.0
      %2471 = vmatpush1.msra.mxu0 0.0
      %2472 = vmatprep.subr.mxu0 0.0
      %2473 = vmatpush1.msra.mxu0 0.0
      %2474 = vmatprep.subr.mxu0 0.0
      %2475 = vmatpush1.msra.mxu0 0.0
      %2476 = vmatprep.subr.mxu0 0.0
      %2477 = vmatpush1.msra.mxu0 0.0
      %2478 = vmatprep.subr.mxu0 0.0
      %2479 = vmatpush1.msra.mxu0 0.0
      %2480 = vmatprep.subr.mxu0 0.0
      %2481 = vmatpush1.msra.mxu0 0.0
      %2482 = vmatprep.subr.mxu0 0.0
      %2483 = vmatpush1.msra.mxu0 0.0
      %2484 = vmatprep.subr.mxu0 0.0
      %2485 = vmatpush1.msra.mxu0 0.0
      %2486 = vmatprep.subr.mxu0 0.0
      %2487 = vmatpush1.msra.mxu0 0.0
      %2488 = vmatprep.subr.mxu0 0.0
      %2489 = vmatpush1.msra.mxu0 0.0
      %2490 = vmatprep.subr.mxu0 0.0
      %2491 = vmatpush1.msra.mxu0 0.0
      %2492 = vmatprep.subr.mxu0 0.0
      %2493 = vmatpush1.msra.mxu0 0.0
      %2494 = vmatprep.subr.mxu0 0.0
      %2495 = vmatpush1.msra.mxu0 0.0
      %2496 = vmatprep.subr.mxu0 0.0
      %2497 = vmatpush1.msra.mxu0 0.0
      %2498 = vmatprep.subr.mxu0 0.0
      %2499 = vmatpush1.msra.mxu0 0.0
      %2500 = vmatprep.subr.mxu0 0.0
      %2501 = vmatpush1.msra.mxu0 0.0
      %2502 = vmatprep.subr.mxu0 0.0
      %2503 = vmatpush1.msra.mxu0 0.0
      %2504 = vmatprep.subr.mxu0 0.0
      %2505 = vmatpush1.msra.mxu0 0.0
      %2506 = vmatprep.subr.mxu0 0.0
      %2507 = vmatpush1.msra.mxu0 0.0
      %2508 = vmatprep.subr.mxu0 0.0
      %2509 = vmatpush1.msra.mxu0 0.0
      %2510 = vmatprep.mubr.f32.mxu0 0.0
      %2511 = vmatmul.mubr.f32.gmra.mrb[0].mxu0 %v2444
      %v2512 = vpop.f32.mrb[0].mxu0
      %v2513 = vadd.f32 0.0, %v2512
      %v2514 = vpop.f32.mrb[0].mxu0
      %v2515 = vadd.f32 0.0, %v2514
      %2516 = vdwg.mxu0
      %2517 = vmatprep.subr.mxu0 0.0
      %2518 = vmatpush1.msra.mxu0 %v2436
      %2519 = vmatprep.subr.mxu0 0.0
      %2520 = vmatpush1.msra.mxu0 0.0
      %2521 = vmatprep.subr.mxu0 0.0
      %2522 = vmatpush1.msra.mxu0 0.0
      %2523 = vmatprep.subr.mxu0 0.0
      %2524 = vmatpush1.msra.mxu0 0.0
      %2525 = vmatprep.subr.mxu0 0.0
      %2526 = vmatpush1.msra.mxu0 0.0
      %2527 = vmatprep.subr.mxu0 0.0
      %2528 = vmatpush1.msra.mxu0 0.0
      %2529 = vmatprep.subr.mxu0 0.0
      %2530 = vmatpush1.msra.mxu0 0.0
      %2531 = vmatprep.subr.mxu0 0.0
      %2532 = vmatpush1.msra.mxu0 0.0
      %2533 = vmatprep.subr.mxu0 0.0
      %2534 = vmatpush1.msra.mxu0 0.0
      %2535 = vmatprep.subr.mxu0 0.0
      %2536 = vmatpush1.msra.mxu0 0.0
      %2537 = vmatprep.subr.mxu0 0.0
      %2538 = vmatpush1.msra.mxu0 0.0
      %2539 = vmatprep.subr.mxu0 0.0
      %2540 = vmatpush1.msra.mxu0 0.0
      %2541 = vmatprep.subr.mxu0 0.0
      %2542 = vmatpush1.msra.mxu0 0.0
      %2543 = vmatprep.subr.mxu0 0.0
      %2544 = vmatpush1.msra.mxu0 0.0
      %2545 = vmatprep.subr.mxu0 0.0
      %2546 = vmatpush1.msra.mxu0 0.0
      %2547 = vmatprep.subr.mxu0 0.0
      %2548 = vmatpush1.msra.mxu0 0.0
      %2549 = vmatprep.subr.mxu0 0.0
      %2550 = vmatpush1.msra.mxu0 0.0
      %2551 = vmatprep.subr.mxu0 0.0
      %2552 = vmatpush1.msra.mxu0 0.0
      %2553 = vmatprep.subr.mxu0 0.0
      %2554 = vmatpush1.msra.mxu0 0.0
      %2555 = vmatprep.subr.mxu0 0.0
      %2556 = vmatpush1.msra.mxu0 0.0
      %2557 = vmatprep.subr.mxu0 0.0
      %2558 = vmatpush1.msra.mxu0 0.0
      %2559 = vmatprep.subr.mxu0 0.0
      %2560 = vmatpush1.msra.mxu0 0.0
      %2561 = vmatprep.subr.mxu0 0.0
      %2562 = vmatpush1.msra.mxu0 0.0
      %2563 = vmatprep.subr.mxu0 0.0
      %2564 = vmatpush1.msra.mxu0 0.0
      %2565 = vmatprep.subr.mxu0 0.0
      %2566 = vmatpush1.msra.mxu0 0.0
      %2567 = vmatprep.subr.mxu0 0.0
      %2568 = vmatpush1.msra.mxu0 0.0
      %2569 = vmatprep.subr.mxu0 0.0
      %2570 = vmatpush1.msra.mxu0 0.0
      %2571 = vmatprep.subr.mxu0 0.0
      %2572 = vmatpush1.msra.mxu0 0.0
      %2573 = vmatprep.subr.mxu0 0.0
      %2574 = vmatpush1.msra.mxu0 0.0
      %2575 = vmatprep.subr.mxu0 0.0
      %2576 = vmatpush1.msra.mxu0 0.0
      %2577 = vmatprep.subr.mxu0 0.0
      %2578 = vmatpush1.msra.mxu0 0.0
      %2579 = vmatprep.subr.mxu0 0.0
      %2580 = vmatpush1.msra.mxu0 0.0
      %2581 = vmatprep.mubr.f32.mxu0 0.0
      %2582 = vmatmul.mubr.f32.gmra.mrb[0].mxu0 %v2444
      %v2583 = vpop.f32.mrb[0].mxu0
      %v2584 = vadd.f32 0.0, %v2583
      %v2585 = vpop.f32.mrb[0].mxu0
      %2586 = vdwg.mxu0
      %v2587 = vadd.f32 %v2426, %v2513
      %v2588 = vadd.f32 %v2427, %v2515
      %v2589 = vadd.f32 %v2428, %v2584
      %s2590 = scalar_lea.vmem %s5, 48
      %v2591 = vld [vmem:[%s2590] sm:$0x1f]
      %2592 = vrot.lane.b32.xlu0 %v1637, 92
      %v2593 = vpop.permute.xlu0 %2592
      %2594 = vrot.lane.b32.xlu0 %v1638, 92
      %v2595 = vpop.permute.xlu0 %2594
      %2596 = vrot.lane.b32.xlu0 %v1639, 92
      %v2597 = vpop.permute.xlu0 %2596
      %vm2598 = vcmask 752640
      %v2599 = vsel %vm2598, %v2593, %v2595
      %v2600 = vsel %vm2598, %v2595, %v2597
      %v2605 = vsel %vm612, %v2591, 0
      %2607 = vmatprep.subr.mxu0 %v2600
      %2608 = vmatpush1.msra.mxu0 %v2599
      %2609 = vmatprep.subr.mxu0 0.0
      %2610 = vmatpush1.msra.mxu0 0.0
      %2611 = vmatprep.subr.mxu0 0.0
      %2612 = vmatpush1.msra.mxu0 0.0
      %2613 = vmatprep.subr.mxu0 0.0
      %2614 = vmatpush1.msra.mxu0 0.0
      %2615 = vmatprep.subr.mxu0 0.0
      %2616 = vmatpush1.msra.mxu0 0.0
      %2617 = vmatprep.subr.mxu0 0.0
      %2618 = vmatpush1.msra.mxu0 0.0
      %2619 = vmatprep.subr.mxu0 0.0
      %2620 = vmatpush1.msra.mxu0 0.0
      %2621 = vmatprep.subr.mxu0 0.0
      %2622 = vmatpush1.msra.mxu0 0.0
      %2623 = vmatprep.subr.mxu0 0.0
      %2624 = vmatpush1.msra.mxu0 0.0
      %2625 = vmatprep.subr.mxu0 0.0
      %2626 = vmatpush1.msra.mxu0 0.0
      %2627 = vmatprep.subr.mxu0 0.0
      %2628 = vmatpush1.msra.mxu0 0.0
      %2629 = vmatprep.subr.mxu0 0.0
      %2630 = vmatpush1.msra.mxu0 0.0
      %2631 = vmatprep.subr.mxu0 0.0
      %2632 = vmatpush1.msra.mxu0 0.0
      %2633 = vmatprep.subr.mxu0 0.0
      %2634 = vmatpush1.msra.mxu0 0.0
      %2635 = vmatprep.subr.mxu0 0.0
      %2636 = vmatpush1.msra.mxu0 0.0
      %2637 = vmatprep.subr.mxu0 0.0
      %2638 = vmatpush1.msra.mxu0 0.0
      %2639 = vmatprep.subr.mxu0 0.0
      %2640 = vmatpush1.msra.mxu0 0.0
      %2641 = vmatprep.subr.mxu0 0.0
      %2642 = vmatpush1.msra.mxu0 0.0
      %2643 = vmatprep.subr.mxu0 0.0
      %2644 = vmatpush1.msra.mxu0 0.0
      %2645 = vmatprep.subr.mxu0 0.0
      %2646 = vmatpush1.msra.mxu0 0.0
      %2647 = vmatprep.subr.mxu0 0.0
      %2648 = vmatpush1.msra.mxu0 0.0
      %2649 = vmatprep.subr.mxu0 0.0
      %2650 = vmatpush1.msra.mxu0 0.0
      %2651 = vmatprep.subr.mxu0 0.0
      %2652 = vmatpush1.msra.mxu0 0.0
      %2653 = vmatprep.subr.mxu0 0.0
      %2654 = vmatpush1.msra.mxu0 0.0
      %2655 = vmatprep.subr.mxu0 0.0
      %2656 = vmatpush1.msra.mxu0 0.0
      %2657 = vmatprep.subr.mxu0 0.0
      %2658 = vmatpush1.msra.mxu0 0.0
      %2659 = vmatprep.subr.mxu0 0.0
      %2660 = vmatpush1.msra.mxu0 0.0
      %2661 = vmatprep.subr.mxu0 0.0
      %2662 = vmatpush1.msra.mxu0 0.0
      %2663 = vmatprep.subr.mxu0 0.0
      %2664 = vmatpush1.msra.mxu0 0.0
      %2665 = vmatprep.subr.mxu0 0.0
      %2666 = vmatpush1.msra.mxu0 0.0
      %2667 = vmatprep.subr.mxu0 0.0
      %2668 = vmatpush1.msra.mxu0 0.0
      %2669 = vmatprep.subr.mxu0 0.0
      %2670 = vmatpush1.msra.mxu0 0.0
      %2671 = vmatprep.mubr.f32.mxu0 0.0
      %2672 = vmatmul.mubr.f32.gmra.mrb[0].mxu0 %v2605
      %v2673 = vpop.f32.mrb[0].mxu0
      %v2674 = vadd.f32 0.0, %v2673
      %v2675 = vpop.f32.mrb[0].mxu0
      %v2676 = vadd.f32 0.0, %v2675
      %2677 = vdwg.mxu0
      %2678 = vmatprep.subr.mxu0 0.0
      %2679 = vmatpush1.msra.mxu0 %v2597
      %2680 = vmatprep.subr.mxu0 0.0
      %2681 = vmatpush1.msra.mxu0 0.0
      %2682 = vmatprep.subr.mxu0 0.0
      %2683 = vmatpush1.msra.mxu0 0.0
      %2684 = vmatprep.subr.mxu0 0.0
      %2685 = vmatpush1.msra.mxu0 0.0
      %2686 = vmatprep.subr.mxu0 0.0
      %2687 = vmatpush1.msra.mxu0 0.0
      %2688 = vmatprep.subr.mxu0 0.0
      %2689 = vmatpush1.msra.mxu0 0.0
      %2690 = vmatprep.subr.mxu0 0.0
      %2691 = vmatpush1.msra.mxu0 0.0
      %2692 = vmatprep.subr.mxu0 0.0
      %2693 = vmatpush1.msra.mxu0 0.0
      %2694 = vmatprep.subr.mxu0 0.0
      %2695 = vmatpush1.msra.mxu0 0.0
      %2696 = vmatprep.subr.mxu0 0.0
      %2697 = vmatpush1.msra.mxu0 0.0
      %2698 = vmatprep.subr.mxu0 0.0
      %2699 = vmatpush1.msra.mxu0 0.0
      %2700 = vmatprep.subr.mxu0 0.0
      %2701 = vmatpush1.msra.mxu0 0.0
      %2702 = vmatprep.subr.mxu0 0.0
      %2703 = vmatpush1.msra.mxu0 0.0
      %2704 = vmatprep.subr.mxu0 0.0
      %2705 = vmatpush1.msra.mxu0 0.0
      %2706 = vmatprep.subr.mxu0 0.0
      %2707 = vmatpush1.msra.mxu0 0.0
      %2708 = vmatprep.subr.mxu0 0.0
      %2709 = vmatpush1.msra.mxu0 0.0
      %2710 = vmatprep.subr.mxu0 0.0
      %2711 = vmatpush1.msra.mxu0 0.0
      %2712 = vmatprep.subr.mxu0 0.0
      %2713 = vmatpush1.msra.mxu0 0.0
      %2714 = vmatprep.subr.mxu0 0.0
      %2715 = vmatpush1.msra.mxu0 0.0
      %2716 = vmatprep.subr.mxu0 0.0
      %2717 = vmatpush1.msra.mxu0 0.0
      %2718 = vmatprep.subr.mxu0 0.0
      %2719 = vmatpush1.msra.mxu0 0.0
      %2720 = vmatprep.subr.mxu0 0.0
      %2721 = vmatpush1.msra.mxu0 0.0
      %2722 = vmatprep.subr.mxu0 0.0
      %2723 = vmatpush1.msra.mxu0 0.0
      %2724 = vmatprep.subr.mxu0 0.0
      %2725 = vmatpush1.msra.mxu0 0.0
      %2726 = vmatprep.subr.mxu0 0.0
      %2727 = vmatpush1.msra.mxu0 0.0
      %2728 = vmatprep.subr.mxu0 0.0
      %2729 = vmatpush1.msra.mxu0 0.0
      %2730 = vmatprep.subr.mxu0 0.0
      %2731 = vmatpush1.msra.mxu0 0.0
      %2732 = vmatprep.subr.mxu0 0.0
      %2733 = vmatpush1.msra.mxu0 0.0
      %2734 = vmatprep.subr.mxu0 0.0
      %2735 = vmatpush1.msra.mxu0 0.0
      %2736 = vmatprep.subr.mxu0 0.0
      %2737 = vmatpush1.msra.mxu0 0.0
      %2738 = vmatprep.subr.mxu0 0.0
      %2739 = vmatpush1.msra.mxu0 0.0
      %2740 = vmatprep.subr.mxu0 0.0
      %2741 = vmatpush1.msra.mxu0 0.0
      %2742 = vmatprep.mubr.f32.mxu0 0.0
      %2743 = vmatmul.mubr.f32.gmra.mrb[0].mxu0 %v2605
      %v2744 = vpop.f32.mrb[0].mxu0
      %v2745 = vadd.f32 0.0, %v2744
      %v2746 = vpop.f32.mrb[0].mxu0
      %2747 = vdwg.mxu0
      %v2748 = vadd.f32 %v2587, %v2674
      %v2749 = vadd.f32 %v2588, %v2676
      %v2750 = vadd.f32 %v2589, %v2745
      %s2751 = scalar_lea.vmem %s5, 56
      %v2752 = vld [vmem:[%s2751] sm:$0x1f]
      %2753 = vrot.lane.b32.xlu0 %v1637, 91
      %v2754 = vpop.permute.xlu0 %2753
      %2755 = vrot.lane.b32.xlu0 %v1638, 91
      %v2756 = vpop.permute.xlu0 %2755
      %2757 = vrot.lane.b32.xlu0 %v1639, 91
      %v2758 = vpop.permute.xlu0 %2757
      %vm2759 = vcmask 744448
      %v2760 = vsel %vm2759, %v2754, %v2756
      %v2761 = vsel %vm2759, %v2756, %v2758
      %v2766 = vsel %vm612, %v2752, 0
      %2768 = vmatprep.subr.mxu0 %v2761
      %2769 = vmatpush1.msra.mxu0 %v2760
      %2770 = vmatprep.subr.mxu0 0.0
      %2771 = vmatpush1.msra.mxu0 0.0
      %2772 = vmatprep.subr.mxu0 0.0
      %2773 = vmatpush1.msra.mxu0 0.0
      %2774 = vmatprep.subr.mxu0 0.0
      %2775 = vmatpush1.msra.mxu0 0.0
      %2776 = vmatprep.subr.mxu0 0.0
      %2777 = vmatpush1.msra.mxu0 0.0
      %2778 = vmatprep.subr.mxu0 0.0
      %2779 = vmatpush1.msra.mxu0 0.0
      %2780 = vmatprep.subr.mxu0 0.0
      %2781 = vmatpush1.msra.mxu0 0.0
      %2782 = vmatprep.subr.mxu0 0.0
      %2783 = vmatpush1.msra.mxu0 0.0
      %2784 = vmatprep.subr.mxu0 0.0
      %2785 = vmatpush1.msra.mxu0 0.0
      %2786 = vmatprep.subr.mxu0 0.0
      %2787 = vmatpush1.msra.mxu0 0.0
      %2788 = vmatprep.subr.mxu0 0.0
      %2789 = vmatpush1.msra.mxu0 0.0
      %2790 = vmatprep.subr.mxu0 0.0
      %2791 = vmatpush1.msra.mxu0 0.0
      %2792 = vmatprep.subr.mxu0 0.0
      %2793 = vmatpush1.msra.mxu0 0.0
      %2794 = vmatprep.subr.mxu0 0.0
      %2795 = vmatpush1.msra.mxu0 0.0
      %2796 = vmatprep.subr.mxu0 0.0
      %2797 = vmatpush1.msra.mxu0 0.0
      %2798 = vmatprep.subr.mxu0 0.0
      %2799 = vmatpush1.msra.mxu0 0.0
      %2800 = vmatprep.subr.mxu0 0.0
      %2801 = vmatpush1.msra.mxu0 0.0
      %2802 = vmatprep.subr.mxu0 0.0
      %2803 = vmatpush1.msra.mxu0 0.0
      %2804 = vmatprep.subr.mxu0 0.0
      %2805 = vmatpush1.msra.mxu0 0.0
      %2806 = vmatprep.subr.mxu0 0.0
      %2807 = vmatpush1.msra.mxu0 0.0
      %2808 = vmatprep.subr.mxu0 0.0
      %2809 = vmatpush1.msra.mxu0 0.0
      %2810 = vmatprep.subr.mxu0 0.0
      %2811 = vmatpush1.msra.mxu0 0.0
      %2812 = vmatprep.subr.mxu0 0.0
      %2813 = vmatpush1.msra.mxu0 0.0
      %2814 = vmatprep.subr.mxu0 0.0
      %2815 = vmatpush1.msra.mxu0 0.0
      %2816 = vmatprep.subr.mxu0 0.0
      %2817 = vmatpush1.msra.mxu0 0.0
      %2818 = vmatprep.subr.mxu0 0.0
      %2819 = vmatpush1.msra.mxu0 0.0
      %2820 = vmatprep.subr.mxu0 0.0
      %2821 = vmatpush1.msra.mxu0 0.0
      %2822 = vmatprep.subr.mxu0 0.0
      %2823 = vmatpush1.msra.mxu0 0.0
      %2824 = vmatprep.subr.mxu0 0.0
      %2825 = vmatpush1.msra.mxu0 0.0
      %2826 = vmatprep.subr.mxu0 0.0
      %2827 = vmatpush1.msra.mxu0 0.0
      %2828 = vmatprep.subr.mxu0 0.0
      %2829 = vmatpush1.msra.mxu0 0.0
      %2830 = vmatprep.subr.mxu0 0.0
      %2831 = vmatpush1.msra.mxu0 0.0
      %2832 = vmatprep.mubr.f32.mxu0 0.0
      %2833 = vmatmul.mubr.f32.gmra.mrb[0].mxu0 %v2766
      %v2834 = vpop.f32.mrb[0].mxu0
      %v2835 = vadd.f32 0.0, %v2834
      %v2836 = vpop.f32.mrb[0].mxu0
      %v2837 = vadd.f32 0.0, %v2836
      %2838 = vdwg.mxu0
      %2839 = vmatprep.subr.mxu0 0.0
      %2840 = vmatpush1.msra.mxu0 %v2758
      %2841 = vmatprep.subr.mxu0 0.0
      %2842 = vmatpush1.msra.mxu0 0.0
      %2843 = vmatprep.subr.mxu0 0.0
      %2844 = vmatpush1.msra.mxu0 0.0
      %2845 = vmatprep.subr.mxu0 0.0
      %2846 = vmatpush1.msra.mxu0 0.0
      %2847 = vmatprep.subr.mxu0 0.0
      %2848 = vmatpush1.msra.mxu0 0.0
      %2849 = vmatprep.subr.mxu0 0.0
      %2850 = vmatpush1.msra.mxu0 0.0
      %2851 = vmatprep.subr.mxu0 0.0
      %2852 = vmatpush1.msra.mxu0 0.0
      %2853 = vmatprep.subr.mxu0 0.0
      %2854 = vmatpush1.msra.mxu0 0.0
      %2855 = vmatprep.subr.mxu0 0.0
      %2856 = vmatpush1.msra.mxu0 0.0
      %2857 = vmatprep.subr.mxu0 0.0
      %2858 = vmatpush1.msra.mxu0 0.0
      %2859 = vmatprep.subr.mxu0 0.0
      %2860 = vmatpush1.msra.mxu0 0.0
      %2861 = vmatprep.subr.mxu0 0.0
      %2862 = vmatpush1.msra.mxu0 0.0
      %2863 = vmatprep.subr.mxu0 0.0
      %2864 = vmatpush1.msra.mxu0 0.0
      %2865 = vmatprep.subr.mxu0 0.0
      %2866 = vmatpush1.msra.mxu0 0.0
      %2867 = vmatprep.subr.mxu0 0.0
      %2868 = vmatpush1.msra.mxu0 0.0
      %2869 = vmatprep.subr.mxu0 0.0
      %2870 = vmatpush1.msra.mxu0 0.0
      %2871 = vmatprep.subr.mxu0 0.0
      %2872 = vmatpush1.msra.mxu0 0.0
      %2873 = vmatprep.subr.mxu0 0.0
      %2874 = vmatpush1.msra.mxu0 0.0
      %2875 = vmatprep.subr.mxu0 0.0
      %2876 = vmatpush1.msra.mxu0 0.0
      %2877 = vmatprep.subr.mxu0 0.0
      %2878 = vmatpush1.msra.mxu0 0.0
      %2879 = vmatprep.subr.mxu0 0.0
      %2880 = vmatpush1.msra.mxu0 0.0
      %2881 = vmatprep.subr.mxu0 0.0
      %2882 = vmatpush1.msra.mxu0 0.0
      %2883 = vmatprep.subr.mxu0 0.0
      %2884 = vmatpush1.msra.mxu0 0.0
      %2885 = vmatprep.subr.mxu0 0.0
      %2886 = vmatpush1.msra.mxu0 0.0
      %2887 = vmatprep.subr.mxu0 0.0
      %2888 = vmatpush1.msra.mxu0 0.0
      %2889 = vmatprep.subr.mxu0 0.0
      %2890 = vmatpush1.msra.mxu0 0.0
      %2891 = vmatprep.subr.mxu0 0.0
      %2892 = vmatpush1.msra.mxu0 0.0
      %2893 = vmatprep.subr.mxu0 0.0
      %2894 = vmatpush1.msra.mxu0 0.0
      %2895 = vmatprep.subr.mxu0 0.0
      %2896 = vmatpush1.msra.mxu0 0.0
      %2897 = vmatprep.subr.mxu0 0.0
      %2898 = vmatpush1.msra.mxu0 0.0
      %2899 = vmatprep.subr.mxu0 0.0
      %2900 = vmatpush1.msra.mxu0 0.0
      %2901 = vmatprep.subr.mxu0 0.0
      %2902 = vmatpush1.msra.mxu0 0.0
      %2903 = vmatprep.mubr.f32.mxu0 0.0
      %2904 = vmatmul.mubr.f32.gmra.mrb[0].mxu0 %v2766
      %v2905 = vpop.f32.mrb[0].mxu0
      %v2906 = vadd.f32 0.0, %v2905
      %v2907 = vpop.f32.mrb[0].mxu0
      %2908 = vdwg.mxu0
      %v2909 = vadd.f32 %v2748, %v2835
      %v2910 = vadd.f32 %v2749, %v2837
      %v2911 = vadd.f32 %v2750, %v2906
      %s2912 = scalar_lea.vmem %s5, 64
      %v2913 = vld [vmem:[%s2912] sm:$0x1f]
      %2914 = vrot.lane.b32.xlu0 %v1637, 90
      %v2915 = vpop.permute.xlu0 %2914
      %2916 = vrot.lane.b32.xlu0 %v1638, 90
      %v2917 = vpop.permute.xlu0 %2916
      %2918 = vrot.lane.b32.xlu0 %v1639, 90
      %v2919 = vpop.permute.xlu0 %2918
      %vm2920 = vcmask 736256
      %v2921 = vsel %vm2920, %v2915, %v2917
      %v2922 = vsel %vm2920, %v2917, %v2919
      %v2927 = vsel %vm612, %v2913, 0
      %2929 = vmatprep.subr.mxu0 %v2922
      %2930 = vmatpush1.msra.mxu0 %v2921
      %2931 = vmatprep.subr.mxu0 0.0
      %2932 = vmatpush1.msra.mxu0 0.0
      %2933 = vmatprep.subr.mxu0 0.0
      %2934 = vmatpush1.msra.mxu0 0.0
      %2935 = vmatprep.subr.mxu0 0.0
      %2936 = vmatpush1.msra.mxu0 0.0
      %2937 = vmatprep.subr.mxu0 0.0
      %2938 = vmatpush1.msra.mxu0 0.0
      %2939 = vmatprep.subr.mxu0 0.0
      %2940 = vmatpush1.msra.mxu0 0.0
      %2941 = vmatprep.subr.mxu0 0.0
      %2942 = vmatpush1.msra.mxu0 0.0
      %2943 = vmatprep.subr.mxu0 0.0
      %2944 = vmatpush1.msra.mxu0 0.0
      %2945 = vmatprep.subr.mxu0 0.0
      %2946 = vmatpush1.msra.mxu0 0.0
      %2947 = vmatprep.subr.mxu0 0.0
      %2948 = vmatpush1.msra.mxu0 0.0
      %2949 = vmatprep.subr.mxu0 0.0
      %2950 = vmatpush1.msra.mxu0 0.0
      %2951 = vmatprep.subr.mxu0 0.0
      %2952 = vmatpush1.msra.mxu0 0.0
      %2953 = vmatprep.subr.mxu0 0.0
      %2954 = vmatpush1.msra.mxu0 0.0
      %2955 = vmatprep.subr.mxu0 0.0
      %2956 = vmatpush1.msra.mxu0 0.0
      %2957 = vmatprep.subr.mxu0 0.0
      %2958 = vmatpush1.msra.mxu0 0.0
      %2959 = vmatprep.subr.mxu0 0.0
      %2960 = vmatpush1.msra.mxu0 0.0
      %2961 = vmatprep.subr.mxu0 0.0
      %2962 = vmatpush1.msra.mxu0 0.0
      %2963 = vmatprep.subr.mxu0 0.0
      %2964 = vmatpush1.msra.mxu0 0.0
      %2965 = vmatprep.subr.mxu0 0.0
      %2966 = vmatpush1.msra.mxu0 0.0
      %2967 = vmatprep.subr.mxu0 0.0
      %2968 = vmatpush1.msra.mxu0 0.0
      %2969 = vmatprep.subr.mxu0 0.0
      %2970 = vmatpush1.msra.mxu0 0.0
      %2971 = vmatprep.subr.mxu0 0.0
      %2972 = vmatpush1.msra.mxu0 0.0
      %2973 = vmatprep.subr.mxu0 0.0
      %2974 = vmatpush1.msra.mxu0 0.0
      %2975 = vmatprep.subr.mxu0 0.0
      %2976 = vmatpush1.msra.mxu0 0.0
      %2977 = vmatprep.subr.mxu0 0.0
      %2978 = vmatpush1.msra.mxu0 0.0
      %2979 = vmatprep.subr.mxu0 0.0
      %2980 = vmatpush1.msra.mxu0 0.0
      %2981 = vmatprep.subr.mxu0 0.0
      %2982 = vmatpush1.msra.mxu0 0.0
      %2983 = vmatprep.subr.mxu0 0.0
      %2984 = vmatpush1.msra.mxu0 0.0
      %2985 = vmatprep.subr.mxu0 0.0
      %2986 = vmatpush1.msra.mxu0 0.0
      %2987 = vmatprep.subr.mxu0 0.0
      %2988 = vmatpush1.msra.mxu0 0.0
      %2989 = vmatprep.subr.mxu0 0.0
      %2990 = vmatpush1.msra.mxu0 0.0
      %2991 = vmatprep.subr.mxu0 0.0
      %2992 = vmatpush1.msra.mxu0 0.0
      %2993 = vmatprep.mubr.f32.mxu0 0.0
      %2994 = vmatmul.mubr.f32.gmra.mrb[0].mxu0 %v2927
      %v2995 = vpop.f32.mrb[0].mxu0
      %v2996 = vadd.f32 0.0, %v2995
      %v2997 = vpop.f32.mrb[0].mxu0
      %v2998 = vadd.f32 0.0, %v2997
      %2999 = vdwg.mxu0
      %3000 = vmatprep.subr.mxu0 0.0
      %3001 = vmatpush1.msra.mxu0 %v2919
      %3002 = vmatprep.subr.mxu0 0.0
      %3003 = vmatpush1.msra.mxu0 0.0
      %3004 = vmatprep.subr.mxu0 0.0
      %3005 = vmatpush1.msra.mxu0 0.0
      %3006 = vmatprep.subr.mxu0 0.0
      %3007 = vmatpush1.msra.mxu0 0.0
      %3008 = vmatprep.subr.mxu0 0.0
      %3009 = vmatpush1.msra.mxu0 0.0
      %3010 = vmatprep.subr.mxu0 0.0
      %3011 = vmatpush1.msra.mxu0 0.0
      %3012 = vmatprep.subr.mxu0 0.0
      %3013 = vmatpush1.msra.mxu0 0.0
      %3014 = vmatprep.subr.mxu0 0.0
      %3015 = vmatpush1.msra.mxu0 0.0
      %3016 = vmatprep.subr.mxu0 0.0
      %3017 = vmatpush1.msra.mxu0 0.0
      %3018 = vmatprep.subr.mxu0 0.0
      %3019 = vmatpush1.msra.mxu0 0.0
      %3020 = vmatprep.subr.mxu0 0.0
      %3021 = vmatpush1.msra.mxu0 0.0
      %3022 = vmatprep.subr.mxu0 0.0
      %3023 = vmatpush1.msra.mxu0 0.0
      %3024 = vmatprep.subr.mxu0 0.0
      %3025 = vmatpush1.msra.mxu0 0.0
      %3026 = vmatprep.subr.mxu0 0.0
      %3027 = vmatpush1.msra.mxu0 0.0
      %3028 = vmatprep.subr.mxu0 0.0
      %3029 = vmatpush1.msra.mxu0 0.0
      %3030 = vmatprep.subr.mxu0 0.0
      %3031 = vmatpush1.msra.mxu0 0.0
      %3032 = vmatprep.subr.mxu0 0.0
      %3033 = vmatpush1.msra.mxu0 0.0
      %3034 = vmatprep.subr.mxu0 0.0
      %3035 = vmatpush1.msra.mxu0 0.0
      %3036 = vmatprep.subr.mxu0 0.0
      %3037 = vmatpush1.msra.mxu0 0.0
      %3038 = vmatprep.subr.mxu0 0.0
      %3039 = vmatpush1.msra.mxu0 0.0
      %3040 = vmatprep.subr.mxu0 0.0
      %3041 = vmatpush1.msra.mxu0 0.0
      %3042 = vmatprep.subr.mxu0 0.0
      %3043 = vmatpush1.msra.mxu0 0.0
      %3044 = vmatprep.subr.mxu0 0.0
      %3045 = vmatpush1.msra.mxu0 0.0
      %3046 = vmatprep.subr.mxu0 0.0
      %3047 = vmatpush1.msra.mxu0 0.0
      %3048 = vmatprep.subr.mxu0 0.0
      %3049 = vmatpush1.msra.mxu0 0.0
      %3050 = vmatprep.subr.mxu0 0.0
      %3051 = vmatpush1.msra.mxu0 0.0
      %3052 = vmatprep.subr.mxu0 0.0
      %3053 = vmatpush1.msra.mxu0 0.0
      %3054 = vmatprep.subr.mxu0 0.0
      %3055 = vmatpush1.msra.mxu0 0.0
      %3056 = vmatprep.subr.mxu0 0.0
      %3057 = vmatpush1.msra.mxu0 0.0
      %3058 = vmatprep.subr.mxu0 0.0
      %3059 = vmatpush1.msra.mxu0 0.0
      %3060 = vmatprep.subr.mxu0 0.0
      %3061 = vmatpush1.msra.mxu0 0.0
      %3062 = vmatprep.subr.mxu0 0.0
      %3063 = vmatpush1.msra.mxu0 0.0
      %3064 = vmatprep.mubr.f32.mxu0 0.0
      %3065 = vmatmul.mubr.f32.gmra.mrb[0].mxu0 %v2927
      %v3066 = vpop.f32.mrb[0].mxu0
      %v3067 = vadd.f32 0.0, %v3066
      %v3068 = vpop.f32.mrb[0].mxu0
      %3069 = vdwg.mxu0
      %v3070 = vadd.f32 %v2909, %v2996
      %v3071 = vadd.f32 %v2910, %v2998
      %v3072 = vadd.f32 %v2911, %v3067
      %v3073 = vld [vmem:[%s9] sm:$0x7]
      %v3074 = vld [vmem:[%s10] sm:$0x7]
      %v3075 = vmul.f32 %v3070, 0.0625
      %v3076 = vmul.f32 %v3071, 0.0625
      %v3077 = vmul.f32 %v3072, 0.0625
      %v3081 = vcombine.low %v3075, %v3076
      %v3083 = vunpack.c.l.s4 1966171168
      %v3084 = vunpack.c.0.s8 %v3083
      %v3085 = vlaneseq
      %v3086 = vshrl.u32 %v3085, 7
      %v3087 = vsub.s32 %v3084, %v3086
      %v3088 = vrot.slane %v3081, %v3087
      %v3090 = vunpack.c.l.s4 1966171168
      %v3091 = vunpack.c.0.s8 %v3090
      %v3092 = vlaneseq
      %v3093 = vshrl.u32 %v3092, 7
      %v3094 = vsub.s32 %v3091, %v3093
      %v3095 = vrot.slane %v3077, %v3094
      %v3096 = vcombine.low %v3088, %v3095
      %v3098 = vunpack.c.l.s4 1966171168
      %v3099 = vunpack.c.0.s8 %v3098
      %v3100 = vlaneseq
      %v3101 = vshrl.u32 %v3100, 7
      %v3102 = vsub.s32 %v3099, %v3101
      %v3103 = vrot.slane %v3096, %v3102
      %v3105 = vadd.f32 %v3073, %v3103
      %v3106 = vcombine.high %v3088, %v3095
      %v3108 = vunpack.c.l.s4 1966171168
      %v3109 = vunpack.c.0.s8 %v3108
      %v3110 = vlaneseq
      %v3111 = vshrl.u32 %v3110, 7
      %v3112 = vsub.s32 %v3109, %v3111
      %v3113 = vrot.slane %v3106, %v3112
      %v3115 = vadd.f32 %v3074, %v3113
      %v3116 = vcombine.high %v3103, %v3103
      %v3118 = vadd.f32 %v3073, %v3116
      %v3119 = vcombine.high %v3113, %v3113
      %v3121 = vadd.f32 %v3074, %v3119
      %v3122 = vsub.f32 0.0, %v3070
      %v3123 = vsub.f32 0.0, %v3071
      %v3124 = vsub.f32 0.0, %v3072
      %v3125 = vmul.f32 %v3122, 1.442695
      %v3126 = vpow.pop %v3125
      %v3127 = vmul.f32 %v3123, 1.442695
      %v3128 = vpow.pop %v3127
      %v3129 = vmul.f32 %v3124, 1.442695
      %v3130 = vpow.pop %v3129
      %v3131 = vadd.f32 %v3126, 1.0
      %v3132 = vadd.f32 %v3128, 1.0
      %v3133 = vadd.f32 %v3130, 1.0
      %v3134 = vrcp.pop %v3131
      %v3135 = vmul.f32 1.0, %v3134
      %v3136 = vrcp.pop %v3132
      %v3137 = vmul.f32 1.0, %v3136
      %v3138 = vrcp.pop %v3133
      %v3139 = vmul.f32 1.0, %v3138
      %v3140 = vadd.f32 %v3105, 1.0
      %v3141 = vmul.f32 %v3140, 3.5
      %v3142 = vadd.f32 %v3115, 1.0
      %v3143 = vmul.f32 %v3142, 3.5
      %v3144 = vfloor.f32 %v3141
      %v3145 = vfloor.f32 %v3143
      %v3146 = vsub.f32 %v3141, %v3144
      %v3147 = vsub.f32 %v3143, %v3145
      %v3148 = vcvt.f32.s32.to.zero.pseudo %v3144
      %v3149 = vcvt.f32.s32.to.zero.pseudo %v3145
      %v3150 = vlaneseq
      %v3151 = vshrl.u32 %v3150, 7
      %v3152 = vsub.s32 0, %v3151
      %v3153 = vrot.slane %v3148, %v3152
      %v3154 = vlaneseq
      %v3155 = vshrl.u32 %v3154, 7
      %v3156 = vsub.s32 1, %v3155
      %v3157 = vrot.slane %v3148, %v3156
      %v3158 = vlaneseq
      %v3159 = vshrl.u32 %v3158, 7
      %v3160 = vsub.s32 2, %v3159
      %v3161 = vrot.slane %v3148, %v3160
      %vm3162 = vcmp.eq.s32.totalorder %v440, %v3153
      %vm3163 = vcmp.eq.s32.totalorder %v440, %v3157
      %vm3164 = vcmp.eq.s32.totalorder %v440, %v3161
      %v3165 = vsel %vm3162, 1, 0
      %v3166 = vsel %vm3163, 1, 0
      %v3167 = vsel %vm3164, 1, 0
      %v3168 = vcvt.s32.f32 %v3165
      %v3169 = vcvt.s32.f32 %v3166
      %v3170 = vcvt.s32.f32 %v3167
      %v3171 = vsub.f32 1.0, %v3146
      %v3173 = vlaneseq
      %v3174 = vshrl.u32 %v3173, 7
      %v3175 = vsub.s32 0, %v3174
      %v3176 = vrot.slane %v3171, %v3175
      %v3177 = vlaneseq
      %v3178 = vshrl.u32 %v3177, 7
      %v3179 = vsub.s32 1, %v3178
      %v3180 = vrot.slane %v3171, %v3179
      %v3181 = vlaneseq
      %v3182 = vshrl.u32 %v3181, 7
      %v3183 = vsub.s32 2, %v3182
      %v3184 = vrot.slane %v3171, %v3183
      %v3188 = vmul.f32 %v3168, %v3176
      %v3189 = vmul.f32 %v3169, %v3180
      %v3190 = vmul.f32 %v3170, %v3184
      %v3191 = vadd.s32 %v3148, 1
      %v3192 = vlaneseq
      %v3193 = vshrl.u32 %v3192, 7
      %v3194 = vsub.s32 0, %v3193
      %v3195 = vrot.slane %v3191, %v3194
      %v3196 = vlaneseq
      %v3197 = vshrl.u32 %v3196, 7
      %v3198 = vsub.s32 1, %v3197
      %v3199 = vrot.slane %v3191, %v3198
      %v3200 = vlaneseq
      %v3201 = vshrl.u32 %v3200, 7
      %v3202 = vsub.s32 2, %v3201
      %v3203 = vrot.slane %v3191, %v3202
      %vm3204 = vcmp.eq.s32.totalorder %v440, %v3195
      %vm3205 = vcmp.eq.s32.totalorder %v440, %v3199
      %vm3206 = vcmp.eq.s32.totalorder %v440, %v3203
      %v3207 = vsel %vm3204, 1, 0
      %v3208 = vsel %vm3205, 1, 0
      %v3209 = vsel %vm3206, 1, 0
      %v3210 = vcvt.s32.f32 %v3207
      %v3211 = vcvt.s32.f32 %v3208
      %v3212 = vcvt.s32.f32 %v3209
      %v3214 = vlaneseq
      %v3215 = vshrl.u32 %v3214, 7
      %v3216 = vsub.s32 0, %v3215
      %v3217 = vrot.slane %v3146, %v3216
      %v3218 = vlaneseq
      %v3219 = vshrl.u32 %v3218, 7
      %v3220 = vsub.s32 1, %v3219
      %v3221 = vrot.slane %v3146, %v3220
      %v3222 = vlaneseq
      %v3223 = vshrl.u32 %v3222, 7
      %v3224 = vsub.s32 2, %v3223
      %v3225 = vrot.slane %v3146, %v3224
      %v3229 = vmul.f32 %v3210, %v3217
      %v3230 = vmul.f32 %v3211, %v3221
      %v3231 = vmul.f32 %v3212, %v3225
      %v3232 = vadd.f32 %v3188, %v3229
      %v3233 = vadd.f32 %v3189, %v3230
      %v3234 = vadd.f32 %v3190, %v3231
      %v3235 = vlaneseq
      %v3236 = vshrl.u32 %v3235, 7
      %v3237 = vsub.s32 0, %v3236
      %v3238 = vrot.slane %v3149, %v3237
      %v3239 = vlaneseq
      %v3240 = vshrl.u32 %v3239, 7
      %v3241 = vsub.s32 1, %v3240
      %v3242 = vrot.slane %v3149, %v3241
      %v3243 = vlaneseq
      %v3244 = vshrl.u32 %v3243, 7
      %v3245 = vsub.s32 2, %v3244
      %v3246 = vrot.slane %v3149, %v3245
      %vm3247 = vcmp.eq.s32.totalorder %v440, %v3238
      %vm3248 = vcmp.eq.s32.totalorder %v440, %v3242
      %vm3249 = vcmp.eq.s32.totalorder %v440, %v3246
      %v3250 = vsel %vm3247, 1, 0
      %v3251 = vsel %vm3248, 1, 0
      %v3252 = vsel %vm3249, 1, 0
      %v3253 = vcvt.s32.f32 %v3250
      %v3254 = vcvt.s32.f32 %v3251
      %v3255 = vcvt.s32.f32 %v3252
      %v3256 = vsub.f32 1.0, %v3147
      %v3258 = vlaneseq
      %v3259 = vshrl.u32 %v3258, 7
      %v3260 = vsub.s32 0, %v3259
      %v3261 = vrot.slane %v3256, %v3260
      %v3262 = vlaneseq
      %v3263 = vshrl.u32 %v3262, 7
      %v3264 = vsub.s32 1, %v3263
      %v3265 = vrot.slane %v3256, %v3264
      %v3266 = vlaneseq
      %v3267 = vshrl.u32 %v3266, 7
      %v3268 = vsub.s32 2, %v3267
      %v3269 = vrot.slane %v3256, %v3268
      %v3273 = vmul.f32 %v3253, %v3261
      %v3274 = vmul.f32 %v3254, %v3265
      %v3275 = vmul.f32 %v3255, %v3269
      %v3276 = vadd.s32 %v3149, 1
      %v3277 = vlaneseq
      %v3278 = vshrl.u32 %v3277, 7
      %v3279 = vsub.s32 0, %v3278
      %v3280 = vrot.slane %v3276, %v3279
      %v3281 = vlaneseq
      %v3282 = vshrl.u32 %v3281, 7
      %v3283 = vsub.s32 1, %v3282
      %v3284 = vrot.slane %v3276, %v3283
      %v3285 = vlaneseq
      %v3286 = vshrl.u32 %v3285, 7
      %v3287 = vsub.s32 2, %v3286
      %v3288 = vrot.slane %v3276, %v3287
      %vm3289 = vcmp.eq.s32.totalorder %v440, %v3280
      %vm3290 = vcmp.eq.s32.totalorder %v440, %v3284
      %vm3291 = vcmp.eq.s32.totalorder %v440, %v3288
      %v3292 = vsel %vm3289, 1, 0
      %v3293 = vsel %vm3290, 1, 0
      %v3294 = vsel %vm3291, 1, 0
      %v3295 = vcvt.s32.f32 %v3292
      %v3296 = vcvt.s32.f32 %v3293
      %v3297 = vcvt.s32.f32 %v3294
      %v3299 = vlaneseq
      %v3300 = vshrl.u32 %v3299, 7
      %v3301 = vsub.s32 0, %v3300
      %v3302 = vrot.slane %v3147, %v3301
      %v3303 = vlaneseq
      %v3304 = vshrl.u32 %v3303, 7
      %v3305 = vsub.s32 1, %v3304
      %v3306 = vrot.slane %v3147, %v3305
      %v3307 = vlaneseq
      %v3308 = vshrl.u32 %v3307, 7
      %v3309 = vsub.s32 2, %v3308
      %v3310 = vrot.slane %v3147, %v3309
      %v3314 = vmul.f32 %v3295, %v3302
      %v3315 = vmul.f32 %v3296, %v3306
      %v3316 = vmul.f32 %v3297, %v3310
      %v3317 = vadd.f32 %v3273, %v3314
      %v3318 = vadd.f32 %v3274, %v3315
      %v3319 = vadd.f32 %v3275, %v3316
      %3320 = vmatprep.subr.mxu0 %v3233
      %3321 = vmatpush1.msra.mxu0 %v3232
      %3322 = vmatprep.subr.mxu0 0.0
      %3323 = vmatpush1.msra.mxu0 0.0
      %3324 = vmatprep.subr.mxu0 0.0
      %3325 = vmatpush1.msra.mxu0 0.0
      %3326 = vmatprep.subr.mxu0 0.0
      %3327 = vmatpush1.msra.mxu0 0.0
      %3328 = vmatprep.subr.mxu0 0.0
      %3329 = vmatpush1.msra.mxu0 0.0
      %3330 = vmatprep.subr.mxu0 0.0
      %3331 = vmatpush1.msra.mxu0 0.0
      %3332 = vmatprep.subr.mxu0 0.0
      %3333 = vmatpush1.msra.mxu0 0.0
      %3334 = vmatprep.subr.mxu0 0.0
      %3335 = vmatpush1.msra.mxu0 0.0
      %3336 = vmatprep.subr.mxu0 0.0
      %3337 = vmatpush1.msra.mxu0 0.0
      %3338 = vmatprep.subr.mxu0 0.0
      %3339 = vmatpush1.msra.mxu0 0.0
      %3340 = vmatprep.subr.mxu0 0.0
      %3341 = vmatpush1.msra.mxu0 0.0
      %3342 = vmatprep.subr.mxu0 0.0
      %3343 = vmatpush1.msra.mxu0 0.0
      %3344 = vmatprep.subr.mxu0 0.0
      %3345 = vmatpush1.msra.mxu0 0.0
      %3346 = vmatprep.subr.mxu0 0.0
      %3347 = vmatpush1.msra.mxu0 0.0
      %3348 = vmatprep.subr.mxu0 0.0
      %3349 = vmatpush1.msra.mxu0 0.0
      %3350 = vmatprep.subr.mxu0 0.0
      %3351 = vmatpush1.msra.mxu0 0.0
      %3352 = vmatprep.subr.mxu0 0.0
      %3353 = vmatpush1.msra.mxu0 0.0
      %3354 = vmatprep.subr.mxu0 0.0
      %3355 = vmatpush1.msra.mxu0 0.0
      %3356 = vmatprep.subr.mxu0 0.0
      %3357 = vmatpush1.msra.mxu0 0.0
      %3358 = vmatprep.subr.mxu0 0.0
      %3359 = vmatpush1.msra.mxu0 0.0
      %3360 = vmatprep.subr.mxu0 0.0
      %3361 = vmatpush1.msra.mxu0 0.0
      %3362 = vmatprep.subr.mxu0 0.0
      %3363 = vmatpush1.msra.mxu0 0.0
      %3364 = vmatprep.subr.mxu0 0.0
      %3365 = vmatpush1.msra.mxu0 0.0
      %3366 = vmatprep.subr.mxu0 0.0
      %3367 = vmatpush1.msra.mxu0 0.0
      %3368 = vmatprep.subr.mxu0 0.0
      %3369 = vmatpush1.msra.mxu0 0.0
      %3370 = vmatprep.subr.mxu0 0.0
      %3371 = vmatpush1.msra.mxu0 0.0
      %3372 = vmatprep.subr.mxu0 0.0
      %3373 = vmatpush1.msra.mxu0 0.0
      %3374 = vmatprep.subr.mxu0 0.0
      %3375 = vmatpush1.msra.mxu0 0.0
      %3376 = vmatprep.subr.mxu0 0.0
      %3377 = vmatpush1.msra.mxu0 0.0
      %3378 = vmatprep.subr.mxu0 0.0
      %3379 = vmatpush1.msra.mxu0 0.0
      %3380 = vmatprep.subr.mxu0 0.0
      %3381 = vmatpush1.msra.mxu0 0.0
      %3382 = vmatprep.subr.mxu0 0.0
      %3383 = vmatpush1.msra.mxu0 0.0
      %3384 = vmatprep.mubr.f32.mxu0 0.0
      %3385 = vmatmul.mubr.f32.gmra.mrb[0].mxu0 %v614
      %v3386 = vpop.f32.mrb[0].mxu0
      %v3387 = vadd.f32 0.0, %v3386
      %v3388 = vpop.f32.mrb[0].mxu0
      %v3389 = vadd.f32 0.0, %v3388
      %3390 = vdwg.mxu0
      %3391 = vmatprep.subr.mxu0 0.0
      %3392 = vmatpush1.msra.mxu0 %v3234
      %3393 = vmatprep.subr.mxu0 0.0
      %3394 = vmatpush1.msra.mxu0 0.0
      %3395 = vmatprep.subr.mxu0 0.0
      %3396 = vmatpush1.msra.mxu0 0.0
      %3397 = vmatprep.subr.mxu0 0.0
      %3398 = vmatpush1.msra.mxu0 0.0
      %3399 = vmatprep.subr.mxu0 0.0
      %3400 = vmatpush1.msra.mxu0 0.0
      %3401 = vmatprep.subr.mxu0 0.0
      %3402 = vmatpush1.msra.mxu0 0.0
      %3403 = vmatprep.subr.mxu0 0.0
      %3404 = vmatpush1.msra.mxu0 0.0
      %3405 = vmatprep.subr.mxu0 0.0
      %3406 = vmatpush1.msra.mxu0 0.0
      %3407 = vmatprep.subr.mxu0 0.0
      %3408 = vmatpush1.msra.mxu0 0.0
      %3409 = vmatprep.subr.mxu0 0.0
      %3410 = vmatpush1.msra.mxu0 0.0
      %3411 = vmatprep.subr.mxu0 0.0
      %3412 = vmatpush1.msra.mxu0 0.0
      %3413 = vmatprep.subr.mxu0 0.0
      %3414 = vmatpush1.msra.mxu0 0.0
      %3415 = vmatprep.subr.mxu0 0.0
      %3416 = vmatpush1.msra.mxu0 0.0
      %3417 = vmatprep.subr.mxu0 0.0
      %3418 = vmatpush1.msra.mxu0 0.0
      %3419 = vmatprep.subr.mxu0 0.0
      %3420 = vmatpush1.msra.mxu0 0.0
      %3421 = vmatprep.subr.mxu0 0.0
      %3422 = vmatpush1.msra.mxu0 0.0
      %3423 = vmatprep.subr.mxu0 0.0
      %3424 = vmatpush1.msra.mxu0 0.0
      %3425 = vmatprep.subr.mxu0 0.0
      %3426 = vmatpush1.msra.mxu0 0.0
      %3427 = vmatprep.subr.mxu0 0.0
      %3428 = vmatpush1.msra.mxu0 0.0
      %3429 = vmatprep.subr.mxu0 0.0
      %3430 = vmatpush1.msra.mxu0 0.0
      %3431 = vmatprep.subr.mxu0 0.0
      %3432 = vmatpush1.msra.mxu0 0.0
      %3433 = vmatprep.subr.mxu0 0.0
      %3434 = vmatpush1.msra.mxu0 0.0
      %3435 = vmatprep.subr.mxu0 0.0
      %3436 = vmatpush1.msra.mxu0 0.0
      %3437 = vmatprep.subr.mxu0 0.0
      %3438 = vmatpush1.msra.mxu0 0.0
      %3439 = vmatprep.subr.mxu0 0.0
      %3440 = vmatpush1.msra.mxu0 0.0
      %3441 = vmatprep.subr.mxu0 0.0
      %3442 = vmatpush1.msra.mxu0 0.0
      %3443 = vmatprep.subr.mxu0 0.0
      %3444 = vmatpush1.msra.mxu0 0.0
      %3445 = vmatprep.subr.mxu0 0.0
      %3446 = vmatpush1.msra.mxu0 0.0
      %3447 = vmatprep.subr.mxu0 0.0
      %3448 = vmatpush1.msra.mxu0 0.0
      %3449 = vmatprep.subr.mxu0 0.0
      %3450 = vmatpush1.msra.mxu0 0.0
      %3451 = vmatprep.subr.mxu0 0.0
      %3452 = vmatpush1.msra.mxu0 0.0
      %3453 = vmatprep.subr.mxu0 0.0
      %3454 = vmatpush1.msra.mxu0 0.0
      %3455 = vmatprep.mubr.f32.mxu0 0.0
      %3456 = vmatmul.mubr.f32.gmra.mrb[0].mxu0 %v614
      %v3457 = vpop.f32.mrb[0].mxu0
      %v3458 = vadd.f32 0.0, %v3457
      %v3459 = vpop.f32.mrb[0].mxu0
      %3460 = vdwg.mxu0
      %v3461 = vmul.f32 %v3387, %v3317
      %v3462 = vmul.f32 %v3389, %v3318
      %v3463 = vmul.f32 %v3458, %v3319
      %v3464 = vrot.slane %v3461, 4
      %v3465 = vadd.f32 %v3461, %v3464
      %v3466 = vrot.slane %v3465, 2
      %v3467 = vadd.f32 %v3465, %v3466
      %v3468 = vrot.slane %v3467, 1
      %v3469 = vadd.f32 %v3467, %v3468
      %v3470 = vrot.slane %v3462, 4
      %v3471 = vadd.f32 %v3462, %v3470
      %v3472 = vrot.slane %v3471, 2
      %v3473 = vadd.f32 %v3471, %v3472
      %v3474 = vrot.slane %v3473, 1
      %v3475 = vadd.f32 %v3473, %v3474
      %vm3476 = vcmask 261120
      %v3477 = vsel %vm3476, %v3463, 0.0
      %v3478 = vrot.slane %v3477, 4
      %v3479 = vadd.f32 %v3477, %v3478
      %v3480 = vrot.slane %v3479, 2
      %v3481 = vadd.f32 %v3479, %v3480
      %v3482 = vrot.slane %v3481, 1
      %v3483 = vadd.f32 %v3481, %v3482
      %3484 = vmatprep.subr.mxu0 %v3233
      %3485 = vmatpush1.msra.mxu0 %v3232
      %3486 = vmatprep.subr.mxu0 0.0
      %3487 = vmatpush1.msra.mxu0 0.0
      %3488 = vmatprep.subr.mxu0 0.0
      %3489 = vmatpush1.msra.mxu0 0.0
      %3490 = vmatprep.subr.mxu0 0.0
      %3491 = vmatpush1.msra.mxu0 0.0
      %3492 = vmatprep.subr.mxu0 0.0
      %3493 = vmatpush1.msra.mxu0 0.0
      %3494 = vmatprep.subr.mxu0 0.0
      %3495 = vmatpush1.msra.mxu0 0.0
      %3496 = vmatprep.subr.mxu0 0.0
      %3497 = vmatpush1.msra.mxu0 0.0
      %3498 = vmatprep.subr.mxu0 0.0
      %3499 = vmatpush1.msra.mxu0 0.0
      %3500 = vmatprep.subr.mxu0 0.0
      %3501 = vmatpush1.msra.mxu0 0.0
      %3502 = vmatprep.subr.mxu0 0.0
      %3503 = vmatpush1.msra.mxu0 0.0
      %3504 = vmatprep.subr.mxu0 0.0
      %3505 = vmatpush1.msra.mxu0 0.0
      %3506 = vmatprep.subr.mxu0 0.0
      %3507 = vmatpush1.msra.mxu0 0.0
      %3508 = vmatprep.subr.mxu0 0.0
      %3509 = vmatpush1.msra.mxu0 0.0
      %3510 = vmatprep.subr.mxu0 0.0
      %3511 = vmatpush1.msra.mxu0 0.0
      %3512 = vmatprep.subr.mxu0 0.0
      %3513 = vmatpush1.msra.mxu0 0.0
      %3514 = vmatprep.subr.mxu0 0.0
      %3515 = vmatpush1.msra.mxu0 0.0
      %3516 = vmatprep.subr.mxu0 0.0
      %3517 = vmatpush1.msra.mxu0 0.0
      %3518 = vmatprep.subr.mxu0 0.0
      %3519 = vmatpush1.msra.mxu0 0.0
      %3520 = vmatprep.subr.mxu0 0.0
      %3521 = vmatpush1.msra.mxu0 0.0
      %3522 = vmatprep.subr.mxu0 0.0
      %3523 = vmatpush1.msra.mxu0 0.0
      %3524 = vmatprep.subr.mxu0 0.0
      %3525 = vmatpush1.msra.mxu0 0.0
      %3526 = vmatprep.subr.mxu0 0.0
      %3527 = vmatpush1.msra.mxu0 0.0
      %3528 = vmatprep.subr.mxu0 0.0
      %3529 = vmatpush1.msra.mxu0 0.0
      %3530 = vmatprep.subr.mxu0 0.0
      %3531 = vmatpush1.msra.mxu0 0.0
      %3532 = vmatprep.subr.mxu0 0.0
      %3533 = vmatpush1.msra.mxu0 0.0
      %3534 = vmatprep.subr.mxu0 0.0
      %3535 = vmatpush1.msra.mxu0 0.0
      %3536 = vmatprep.subr.mxu0 0.0
      %3537 = vmatpush1.msra.mxu0 0.0
      %3538 = vmatprep.subr.mxu0 0.0
      %3539 = vmatpush1.msra.mxu0 0.0
      %3540 = vmatprep.subr.mxu0 0.0
      %3541 = vmatpush1.msra.mxu0 0.0
      %3542 = vmatprep.subr.mxu0 0.0
      %3543 = vmatpush1.msra.mxu0 0.0
      %3544 = vmatprep.subr.mxu0 0.0
      %3545 = vmatpush1.msra.mxu0 0.0
      %3546 = vmatprep.subr.mxu0 0.0
      %3547 = vmatpush1.msra.mxu0 0.0
      %3548 = vmatprep.mubr.f32.mxu0 0.0
      %3549 = vmatmul.mubr.f32.gmra.mrb[0].mxu0 %v783
      %v3550 = vpop.f32.mrb[0].mxu0
      %v3551 = vadd.f32 0.0, %v3550
      %v3552 = vpop.f32.mrb[0].mxu0
      %v3553 = vadd.f32 0.0, %v3552
      %3554 = vdwg.mxu0
      %3555 = vmatprep.subr.mxu0 0.0
      %3556 = vmatpush1.msra.mxu0 %v3234
      %3557 = vmatprep.subr.mxu0 0.0
      %3558 = vmatpush1.msra.mxu0 0.0
      %3559 = vmatprep.subr.mxu0 0.0
      %3560 = vmatpush1.msra.mxu0 0.0
      %3561 = vmatprep.subr.mxu0 0.0
      %3562 = vmatpush1.msra.mxu0 0.0
      %3563 = vmatprep.subr.mxu0 0.0
      %3564 = vmatpush1.msra.mxu0 0.0
      %3565 = vmatprep.subr.mxu0 0.0
      %3566 = vmatpush1.msra.mxu0 0.0
      %3567 = vmatprep.subr.mxu0 0.0
      %3568 = vmatpush1.msra.mxu0 0.0
      %3569 = vmatprep.subr.mxu0 0.0
      %3570 = vmatpush1.msra.mxu0 0.0
      %3571 = vmatprep.subr.mxu0 0.0
      %3572 = vmatpush1.msra.mxu0 0.0
      %3573 = vmatprep.subr.mxu0 0.0
      %3574 = vmatpush1.msra.mxu0 0.0
      %3575 = vmatprep.subr.mxu0 0.0
      %3576 = vmatpush1.msra.mxu0 0.0
      %3577 = vmatprep.subr.mxu0 0.0
      %3578 = vmatpush1.msra.mxu0 0.0
      %3579 = vmatprep.subr.mxu0 0.0
      %3580 = vmatpush1.msra.mxu0 0.0
      %3581 = vmatprep.subr.mxu0 0.0
      %3582 = vmatpush1.msra.mxu0 0.0
      %3583 = vmatprep.subr.mxu0 0.0
      %3584 = vmatpush1.msra.mxu0 0.0
      %3585 = vmatprep.subr.mxu0 0.0
      %3586 = vmatpush1.msra.mxu0 0.0
      %3587 = vmatprep.subr.mxu0 0.0
      %3588 = vmatpush1.msra.mxu0 0.0
      %3589 = vmatprep.subr.mxu0 0.0
      %3590 = vmatpush1.msra.mxu0 0.0
      %3591 = vmatprep.subr.mxu0 0.0
      %3592 = vmatpush1.msra.mxu0 0.0
      %3593 = vmatprep.subr.mxu0 0.0
      %3594 = vmatpush1.msra.mxu0 0.0
      %3595 = vmatprep.subr.mxu0 0.0
      %3596 = vmatpush1.msra.mxu0 0.0
      %3597 = vmatprep.subr.mxu0 0.0
      %3598 = vmatpush1.msra.mxu0 0.0
      %3599 = vmatprep.subr.mxu0 0.0
      %3600 = vmatpush1.msra.mxu0 0.0
      %3601 = vmatprep.subr.mxu0 0.0
      %3602 = vmatpush1.msra.mxu0 0.0
      %3603 = vmatprep.subr.mxu0 0.0
      %3604 = vmatpush1.msra.mxu0 0.0
      %3605 = vmatprep.subr.mxu0 0.0
      %3606 = vmatpush1.msra.mxu0 0.0
      %3607 = vmatprep.subr.mxu0 0.0
      %3608 = vmatpush1.msra.mxu0 0.0
      %3609 = vmatprep.subr.mxu0 0.0
      %3610 = vmatpush1.msra.mxu0 0.0
      %3611 = vmatprep.subr.mxu0 0.0
      %3612 = vmatpush1.msra.mxu0 0.0
      %3613 = vmatprep.subr.mxu0 0.0
      %3614 = vmatpush1.msra.mxu0 0.0
      %3615 = vmatprep.subr.mxu0 0.0
      %3616 = vmatpush1.msra.mxu0 0.0
      %3617 = vmatprep.subr.mxu0 0.0
      %3618 = vmatpush1.msra.mxu0 0.0
      %3619 = vmatprep.mubr.f32.mxu0 0.0
      %3620 = vmatmul.mubr.f32.gmra.mrb[0].mxu0 %v783
      %v3621 = vpop.f32.mrb[0].mxu0
      %v3622 = vadd.f32 0.0, %v3621
      %v3623 = vpop.f32.mrb[0].mxu0
      %3624 = vdwg.mxu0
      %v3625 = vmul.f32 %v3551, %v3317
      %v3626 = vmul.f32 %v3553, %v3318
      %v3627 = vmul.f32 %v3622, %v3319
      %v3628 = vrot.slane %v3625, 4
      %v3629 = vadd.f32 %v3625, %v3628
      %v3630 = vrot.slane %v3629, 2
      %v3631 = vadd.f32 %v3629, %v3630
      %v3632 = vrot.slane %v3631, 1
      %v3633 = vadd.f32 %v3631, %v3632
      %v3634 = vrot.slane %v3626, 4
      %v3635 = vadd.f32 %v3626, %v3634
      %v3636 = vrot.slane %v3635, 2
      %v3637 = vadd.f32 %v3635, %v3636
      %v3638 = vrot.slane %v3637, 1
      %v3639 = vadd.f32 %v3637, %v3638
      %v3640 = vsel %vm3476, %v3627, 0.0
      %v3641 = vrot.slane %v3640, 4
      %v3642 = vadd.f32 %v3640, %v3641
      %v3643 = vrot.slane %v3642, 2
      %v3644 = vadd.f32 %v3642, %v3643
      %v3645 = vrot.slane %v3644, 1
      %v3646 = vadd.f32 %v3644, %v3645
      %3647 = vmatprep.subr.mxu0 %v3233
      %3648 = vmatpush1.msra.mxu0 %v3232
      %3649 = vmatprep.subr.mxu0 0.0
      %3650 = vmatpush1.msra.mxu0 0.0
      %3651 = vmatprep.subr.mxu0 0.0
      %3652 = vmatpush1.msra.mxu0 0.0
      %3653 = vmatprep.subr.mxu0 0.0
      %3654 = vmatpush1.msra.mxu0 0.0
      %3655 = vmatprep.subr.mxu0 0.0
      %3656 = vmatpush1.msra.mxu0 0.0
      %3657 = vmatprep.subr.mxu0 0.0
      %3658 = vmatpush1.msra.mxu0 0.0
      %3659 = vmatprep.subr.mxu0 0.0
      %3660 = vmatpush1.msra.mxu0 0.0
      %3661 = vmatprep.subr.mxu0 0.0
      %3662 = vmatpush1.msra.mxu0 0.0
      %3663 = vmatprep.subr.mxu0 0.0
      %3664 = vmatpush1.msra.mxu0 0.0
      %3665 = vmatprep.subr.mxu0 0.0
      %3666 = vmatpush1.msra.mxu0 0.0
      %3667 = vmatprep.subr.mxu0 0.0
      %3668 = vmatpush1.msra.mxu0 0.0
      %3669 = vmatprep.subr.mxu0 0.0
      %3670 = vmatpush1.msra.mxu0 0.0
      %3671 = vmatprep.subr.mxu0 0.0
      %3672 = vmatpush1.msra.mxu0 0.0
      %3673 = vmatprep.subr.mxu0 0.0
      %3674 = vmatpush1.msra.mxu0 0.0
      %3675 = vmatprep.subr.mxu0 0.0
      %3676 = vmatpush1.msra.mxu0 0.0
      %3677 = vmatprep.subr.mxu0 0.0
      %3678 = vmatpush1.msra.mxu0 0.0
      %3679 = vmatprep.subr.mxu0 0.0
      %3680 = vmatpush1.msra.mxu0 0.0
      %3681 = vmatprep.subr.mxu0 0.0
      %3682 = vmatpush1.msra.mxu0 0.0
      %3683 = vmatprep.subr.mxu0 0.0
      %3684 = vmatpush1.msra.mxu0 0.0
      %3685 = vmatprep.subr.mxu0 0.0
      %3686 = vmatpush1.msra.mxu0 0.0
      %3687 = vmatprep.subr.mxu0 0.0
      %3688 = vmatpush1.msra.mxu0 0.0
      %3689 = vmatprep.subr.mxu0 0.0
      %3690 = vmatpush1.msra.mxu0 0.0
      %3691 = vmatprep.subr.mxu0 0.0
      %3692 = vmatpush1.msra.mxu0 0.0
      %3693 = vmatprep.subr.mxu0 0.0
      %3694 = vmatpush1.msra.mxu0 0.0
      %3695 = vmatprep.subr.mxu0 0.0
      %3696 = vmatpush1.msra.mxu0 0.0
      %3697 = vmatprep.subr.mxu0 0.0
      %3698 = vmatpush1.msra.mxu0 0.0
      %3699 = vmatprep.subr.mxu0 0.0
      %3700 = vmatpush1.msra.mxu0 0.0
      %3701 = vmatprep.subr.mxu0 0.0
      %3702 = vmatpush1.msra.mxu0 0.0
      %3703 = vmatprep.subr.mxu0 0.0
      %3704 = vmatpush1.msra.mxu0 0.0
      %3705 = vmatprep.subr.mxu0 0.0
      %3706 = vmatpush1.msra.mxu0 0.0
      %3707 = vmatprep.subr.mxu0 0.0
      %3708 = vmatpush1.msra.mxu0 0.0
      %3709 = vmatprep.subr.mxu0 0.0
      %3710 = vmatpush1.msra.mxu0 0.0
      %3711 = vmatprep.mubr.f32.mxu0 0.0
      %3712 = vmatmul.mubr.f32.gmra.mrb[0].mxu0 %v951
      %v3713 = vpop.f32.mrb[0].mxu0
      %v3714 = vadd.f32 0.0, %v3713
      %v3715 = vpop.f32.mrb[0].mxu0
      %v3716 = vadd.f32 0.0, %v3715
      %3717 = vdwg.mxu0
      %3718 = vmatprep.subr.mxu0 0.0
      %3719 = vmatpush1.msra.mxu0 %v3234
      %3720 = vmatprep.subr.mxu0 0.0
      %3721 = vmatpush1.msra.mxu0 0.0
      %3722 = vmatprep.subr.mxu0 0.0
      %3723 = vmatpush1.msra.mxu0 0.0
      %3724 = vmatprep.subr.mxu0 0.0
      %3725 = vmatpush1.msra.mxu0 0.0
      %3726 = vmatprep.subr.mxu0 0.0
      %3727 = vmatpush1.msra.mxu0 0.0
      %3728 = vmatprep.subr.mxu0 0.0
      %3729 = vmatpush1.msra.mxu0 0.0
      %3730 = vmatprep.subr.mxu0 0.0
      %3731 = vmatpush1.msra.mxu0 0.0
      %3732 = vmatprep.subr.mxu0 0.0
      %3733 = vmatpush1.msra.mxu0 0.0
      %3734 = vmatprep.subr.mxu0 0.0
      %3735 = vmatpush1.msra.mxu0 0.0
      %3736 = vmatprep.subr.mxu0 0.0
      %3737 = vmatpush1.msra.mxu0 0.0
      %3738 = vmatprep.subr.mxu0 0.0
      %3739 = vmatpush1.msra.mxu0 0.0
      %3740 = vmatprep.subr.mxu0 0.0
      %3741 = vmatpush1.msra.mxu0 0.0
      %3742 = vmatprep.subr.mxu0 0.0
      %3743 = vmatpush1.msra.mxu0 0.0
      %3744 = vmatprep.subr.mxu0 0.0
      %3745 = vmatpush1.msra.mxu0 0.0
      %3746 = vmatprep.subr.mxu0 0.0
      %3747 = vmatpush1.msra.mxu0 0.0
      %3748 = vmatprep.subr.mxu0 0.0
      %3749 = vmatpush1.msra.mxu0 0.0
      %3750 = vmatprep.subr.mxu0 0.0
      %3751 = vmatpush1.msra.mxu0 0.0
      %3752 = vmatprep.subr.mxu0 0.0
      %3753 = vmatpush1.msra.mxu0 0.0
      %3754 = vmatprep.subr.mxu0 0.0
      %3755 = vmatpush1.msra.mxu0 0.0
      %3756 = vmatprep.subr.mxu0 0.0
      %3757 = vmatpush1.msra.mxu0 0.0
      %3758 = vmatprep.subr.mxu0 0.0
      %3759 = vmatpush1.msra.mxu0 0.0
      %3760 = vmatprep.subr.mxu0 0.0
      %3761 = vmatpush1.msra.mxu0 0.0
      %3762 = vmatprep.subr.mxu0 0.0
      %3763 = vmatpush1.msra.mxu0 0.0
      %3764 = vmatprep.subr.mxu0 0.0
      %3765 = vmatpush1.msra.mxu0 0.0
      %3766 = vmatprep.subr.mxu0 0.0
      %3767 = vmatpush1.msra.mxu0 0.0
      %3768 = vmatprep.subr.mxu0 0.0
      %3769 = vmatpush1.msra.mxu0 0.0
      %3770 = vmatprep.subr.mxu0 0.0
      %3771 = vmatpush1.msra.mxu0 0.0
      %3772 = vmatprep.subr.mxu0 0.0
      %3773 = vmatpush1.msra.mxu0 0.0
      %3774 = vmatprep.subr.mxu0 0.0
      %3775 = vmatpush1.msra.mxu0 0.0
      %3776 = vmatprep.subr.mxu0 0.0
      %3777 = vmatpush1.msra.mxu0 0.0
      %3778 = vmatprep.subr.mxu0 0.0
      %3779 = vmatpush1.msra.mxu0 0.0
      %3780 = vmatprep.subr.mxu0 0.0
      %3781 = vmatpush1.msra.mxu0 0.0
      %3782 = vmatprep.mubr.f32.mxu0 0.0
      %3783 = vmatmul.mubr.f32.gmra.mrb[0].mxu0 %v951
      %v3784 = vpop.f32.mrb[0].mxu0
      %v3785 = vadd.f32 0.0, %v3784
      %v3786 = vpop.f32.mrb[0].mxu0
      %3787 = vdwg.mxu0
      %v3788 = vmul.f32 %v3714, %v3317
      %v3789 = vmul.f32 %v3716, %v3318
      %v3790 = vmul.f32 %v3785, %v3319
      %v3791 = vrot.slane %v3788, 4
      %v3792 = vadd.f32 %v3788, %v3791
      %v3793 = vrot.slane %v3792, 2
      %v3794 = vadd.f32 %v3792, %v3793
      %v3795 = vrot.slane %v3794, 1
      %v3796 = vadd.f32 %v3794, %v3795
      %v3797 = vrot.slane %v3789, 4
      %v3798 = vadd.f32 %v3789, %v3797
      %v3799 = vrot.slane %v3798, 2
      %v3800 = vadd.f32 %v3798, %v3799
      %v3801 = vrot.slane %v3800, 1
      %v3802 = vadd.f32 %v3800, %v3801
      %v3803 = vsel %vm3476, %v3790, 0.0
      %v3804 = vrot.slane %v3803, 4
      %v3805 = vadd.f32 %v3803, %v3804
      %v3806 = vrot.slane %v3805, 2
      %v3807 = vadd.f32 %v3805, %v3806
      %v3808 = vrot.slane %v3807, 1
      %v3809 = vadd.f32 %v3807, %v3808
      %3810 = vmatprep.subr.mxu0 %v3233
      %3811 = vmatpush1.msra.mxu0 %v3232
      %3812 = vmatprep.subr.mxu0 0.0
      %3813 = vmatpush1.msra.mxu0 0.0
      %3814 = vmatprep.subr.mxu0 0.0
      %3815 = vmatpush1.msra.mxu0 0.0
      %3816 = vmatprep.subr.mxu0 0.0
      %3817 = vmatpush1.msra.mxu0 0.0
      %3818 = vmatprep.subr.mxu0 0.0
      %3819 = vmatpush1.msra.mxu0 0.0
      %3820 = vmatprep.subr.mxu0 0.0
      %3821 = vmatpush1.msra.mxu0 0.0
      %3822 = vmatprep.subr.mxu0 0.0
      %3823 = vmatpush1.msra.mxu0 0.0
      %3824 = vmatprep.subr.mxu0 0.0
      %3825 = vmatpush1.msra.mxu0 0.0
      %3826 = vmatprep.subr.mxu0 0.0
      %3827 = vmatpush1.msra.mxu0 0.0
      %3828 = vmatprep.subr.mxu0 0.0
      %3829 = vmatpush1.msra.mxu0 0.0
      %3830 = vmatprep.subr.mxu0 0.0
      %3831 = vmatpush1.msra.mxu0 0.0
      %3832 = vmatprep.subr.mxu0 0.0
      %3833 = vmatpush1.msra.mxu0 0.0
      %3834 = vmatprep.subr.mxu0 0.0
      %3835 = vmatpush1.msra.mxu0 0.0
      %3836 = vmatprep.subr.mxu0 0.0
      %3837 = vmatpush1.msra.mxu0 0.0
      %3838 = vmatprep.subr.mxu0 0.0
      %3839 = vmatpush1.msra.mxu0 0.0
      %3840 = vmatprep.subr.mxu0 0.0
      %3841 = vmatpush1.msra.mxu0 0.0
      %3842 = vmatprep.subr.mxu0 0.0
      %3843 = vmatpush1.msra.mxu0 0.0
      %3844 = vmatprep.subr.mxu0 0.0
      %3845 = vmatpush1.msra.mxu0 0.0
      %3846 = vmatprep.subr.mxu0 0.0
      %3847 = vmatpush1.msra.mxu0 0.0
      %3848 = vmatprep.subr.mxu0 0.0
      %3849 = vmatpush1.msra.mxu0 0.0
      %3850 = vmatprep.subr.mxu0 0.0
      %3851 = vmatpush1.msra.mxu0 0.0
      %3852 = vmatprep.subr.mxu0 0.0
      %3853 = vmatpush1.msra.mxu0 0.0
      %3854 = vmatprep.subr.mxu0 0.0
      %3855 = vmatpush1.msra.mxu0 0.0
      %3856 = vmatprep.subr.mxu0 0.0
      %3857 = vmatpush1.msra.mxu0 0.0
      %3858 = vmatprep.subr.mxu0 0.0
      %3859 = vmatpush1.msra.mxu0 0.0
      %3860 = vmatprep.subr.mxu0 0.0
      %3861 = vmatpush1.msra.mxu0 0.0
      %3862 = vmatprep.subr.mxu0 0.0
      %3863 = vmatpush1.msra.mxu0 0.0
      %3864 = vmatprep.subr.mxu0 0.0
      %3865 = vmatpush1.msra.mxu0 0.0
      %3866 = vmatprep.subr.mxu0 0.0
      %3867 = vmatpush1.msra.mxu0 0.0
      %3868 = vmatprep.subr.mxu0 0.0
      %3869 = vmatpush1.msra.mxu0 0.0
      %3870 = vmatprep.subr.mxu0 0.0
      %3871 = vmatpush1.msra.mxu0 0.0
      %3872 = vmatprep.subr.mxu0 0.0
      %3873 = vmatpush1.msra.mxu0 0.0
      %3874 = vmatprep.mubr.f32.mxu0 0.0
      %3875 = vmatmul.mubr.f32.gmra.mrb[0].mxu0 %v1119
      %v3876 = vpop.f32.mrb[0].mxu0
      %v3877 = vadd.f32 0.0, %v3876
      %v3878 = vpop.f32.mrb[0].mxu0
      %v3879 = vadd.f32 0.0, %v3878
      %3880 = vdwg.mxu0
      %3881 = vmatprep.subr.mxu0 0.0
      %3882 = vmatpush1.msra.mxu0 %v3234
      %3883 = vmatprep.subr.mxu0 0.0
      %3884 = vmatpush1.msra.mxu0 0.0
      %3885 = vmatprep.subr.mxu0 0.0
      %3886 = vmatpush1.msra.mxu0 0.0
      %3887 = vmatprep.subr.mxu0 0.0
      %3888 = vmatpush1.msra.mxu0 0.0
      %3889 = vmatprep.subr.mxu0 0.0
      %3890 = vmatpush1.msra.mxu0 0.0
      %3891 = vmatprep.subr.mxu0 0.0
      %3892 = vmatpush1.msra.mxu0 0.0
      %3893 = vmatprep.subr.mxu0 0.0
      %3894 = vmatpush1.msra.mxu0 0.0
      %3895 = vmatprep.subr.mxu0 0.0
      %3896 = vmatpush1.msra.mxu0 0.0
      %3897 = vmatprep.subr.mxu0 0.0
      %3898 = vmatpush1.msra.mxu0 0.0
      %3899 = vmatprep.subr.mxu0 0.0
      %3900 = vmatpush1.msra.mxu0 0.0
      %3901 = vmatprep.subr.mxu0 0.0
      %3902 = vmatpush1.msra.mxu0 0.0
      %3903 = vmatprep.subr.mxu0 0.0
      %3904 = vmatpush1.msra.mxu0 0.0
      %3905 = vmatprep.subr.mxu0 0.0
      %3906 = vmatpush1.msra.mxu0 0.0
      %3907 = vmatprep.subr.mxu0 0.0
      %3908 = vmatpush1.msra.mxu0 0.0
      %3909 = vmatprep.subr.mxu0 0.0
      %3910 = vmatpush1.msra.mxu0 0.0
      %3911 = vmatprep.subr.mxu0 0.0
      %3912 = vmatpush1.msra.mxu0 0.0
      %3913 = vmatprep.subr.mxu0 0.0
      %3914 = vmatpush1.msra.mxu0 0.0
      %3915 = vmatprep.subr.mxu0 0.0
      %3916 = vmatpush1.msra.mxu0 0.0
      %3917 = vmatprep.subr.mxu0 0.0
      %3918 = vmatpush1.msra.mxu0 0.0
      %3919 = vmatprep.subr.mxu0 0.0
      %3920 = vmatpush1.msra.mxu0 0.0
      %3921 = vmatprep.subr.mxu0 0.0
      %3922 = vmatpush1.msra.mxu0 0.0
      %3923 = vmatprep.subr.mxu0 0.0
      %3924 = vmatpush1.msra.mxu0 0.0
      %3925 = vmatprep.subr.mxu0 0.0
      %3926 = vmatpush1.msra.mxu0 0.0
      %3927 = vmatprep.subr.mxu0 0.0
      %3928 = vmatpush1.msra.mxu0 0.0
      %3929 = vmatprep.subr.mxu0 0.0
      %3930 = vmatpush1.msra.mxu0 0.0
      %3931 = vmatprep.subr.mxu0 0.0
      %3932 = vmatpush1.msra.mxu0 0.0
      %3933 = vmatprep.subr.mxu0 0.0
      %3934 = vmatpush1.msra.mxu0 0.0
      %3935 = vmatprep.subr.mxu0 0.0
      %3936 = vmatpush1.msra.mxu0 0.0
      %3937 = vmatprep.subr.mxu0 0.0
      %3938 = vmatpush1.msra.mxu0 0.0
      %3939 = vmatprep.subr.mxu0 0.0
      %3940 = vmatpush1.msra.mxu0 0.0
      %3941 = vmatprep.subr.mxu0 0.0
      %3942 = vmatpush1.msra.mxu0 0.0
      %3943 = vmatprep.subr.mxu0 0.0
      %3944 = vmatpush1.msra.mxu0 0.0
      %3945 = vmatprep.mubr.f32.mxu0 0.0
      %3946 = vmatmul.mubr.f32.gmra.mrb[0].mxu0 %v1119
      %v3947 = vpop.f32.mrb[0].mxu0
      %v3948 = vadd.f32 0.0, %v3947
      %v3949 = vpop.f32.mrb[0].mxu0
      %3950 = vdwg.mxu0
      %v3951 = vmul.f32 %v3877, %v3317
      %v3952 = vmul.f32 %v3879, %v3318
      %v3953 = vmul.f32 %v3948, %v3319
      %v3954 = vrot.slane %v3951, 4
      %v3955 = vadd.f32 %v3951, %v3954
      %v3956 = vrot.slane %v3955, 2
      %v3957 = vadd.f32 %v3955, %v3956
      %v3958 = vrot.slane %v3957, 1
      %v3959 = vadd.f32 %v3957, %v3958
      %v3960 = vrot.slane %v3952, 4
      %v3961 = vadd.f32 %v3952, %v3960
      %v3962 = vrot.slane %v3961, 2
      %v3963 = vadd.f32 %v3961, %v3962
      %v3964 = vrot.slane %v3963, 1
      %v3965 = vadd.f32 %v3963, %v3964
      %v3966 = vsel %vm3476, %v3953, 0.0
      %v3967 = vrot.slane %v3966, 4
      %v3968 = vadd.f32 %v3966, %v3967
      %v3969 = vrot.slane %v3968, 2
      %v3970 = vadd.f32 %v3968, %v3969
      %v3971 = vrot.slane %v3970, 1
      %v3972 = vadd.f32 %v3970, %v3971
      %v3973 = vsel %vm1284, %v3469, %v3633
      %v3974 = vsel %vm1284, %v3475, %v3639
      %v3975 = vsel %vm1284, %v3483, %v3646
      %v3976 = vsel %vm1288, %v3973, %v3796
      %v3977 = vsel %vm1288, %v3974, %v3802
      %v3978 = vsel %vm1288, %v3975, %v3809
      %v3979 = vsel %vm1292, %v3976, %v3959
      %v3980 = vsel %vm1292, %v3977, %v3965
      %v3981 = vsel %vm1292, %v3978, %v3972
      %v3982 = vadd.f32 %v3118, 1.0
      %v3983 = vmul.f32 %v3982, 7.5
      %v3984 = vadd.f32 %v3121, 1.0
      %v3985 = vmul.f32 %v3984, 7.5
      %v3986 = vfloor.f32 %v3983
      %v3987 = vfloor.f32 %v3985
      %v3988 = vsub.f32 %v3983, %v3986
      %v3989 = vsub.f32 %v3985, %v3987
      %v3990 = vcvt.f32.s32.to.zero.pseudo %v3986
      %v3991 = vcvt.f32.s32.to.zero.pseudo %v3987
      %v3992 = vadd.s32 %v440, 8
      %v3993 = vlaneseq
      %v3994 = vshrl.u32 %v3993, 7
      %v3995 = vsub.s32 0, %v3994
      %v3996 = vrot.slane %v3990, %v3995
      %v3997 = vlaneseq
      %v3998 = vshrl.u32 %v3997, 7
      %v3999 = vsub.s32 1, %v3998
      %v4000 = vrot.slane %v3990, %v3999
      %v4001 = vlaneseq
      %v4002 = vshrl.u32 %v4001, 7
      %v4003 = vsub.s32 2, %v4002
      %v4004 = vrot.slane %v3990, %v4003
      %vm4005 = vcmp.eq.s32.totalorder %v440, %v3996
      %vm4006 = vcmp.eq.s32.totalorder %v440, %v4000
      %vm4007 = vcmp.eq.s32.totalorder %v440, %v4004
      %vm4008 = vcmp.eq.s32.totalorder %v3992, %v3996
      %vm4009 = vcmp.eq.s32.totalorder %v3992, %v4000
      %vm4010 = vcmp.eq.s32.totalorder %v3992, %v4004
      %v4011 = vsel %vm4005, 1, 0
      %v4012 = vsel %vm4006, 1, 0
      %v4013 = vsel %vm4007, 1, 0
      %v4014 = vsel %vm4008, 1, 0
      %v4015 = vsel %vm4009, 1, 0
      %v4016 = vsel %vm4010, 1, 0
      %v4017 = vcvt.s32.f32 %v4011
      %v4018 = vcvt.s32.f32 %v4012
      %v4019 = vcvt.s32.f32 %v4013
      %v4020 = vcvt.s32.f32 %v4014
      %v4021 = vcvt.s32.f32 %v4015
      %v4022 = vcvt.s32.f32 %v4016
      %v4023 = vsub.f32 1.0, %v3988
      %v4025 = vlaneseq
      %v4026 = vshrl.u32 %v4025, 7
      %v4027 = vsub.s32 0, %v4026
      %v4028 = vrot.slane %v4023, %v4027
      %v4029 = vlaneseq
      %v4030 = vshrl.u32 %v4029, 7
      %v4031 = vsub.s32 1, %v4030
      %v4032 = vrot.slane %v4023, %v4031
      %v4033 = vlaneseq
      %v4034 = vshrl.u32 %v4033, 7
      %v4035 = vsub.s32 2, %v4034
      %v4036 = vrot.slane %v4023, %v4035
      %v4040 = vmul.f32 %v4017, %v4028
      %v4041 = vmul.f32 %v4018, %v4032
      %v4042 = vmul.f32 %v4019, %v4036
      %v4043 = vmul.f32 %v4020, %v4028
      %v4044 = vmul.f32 %v4021, %v4032
      %v4045 = vmul.f32 %v4022, %v4036
      %v4046 = vadd.s32 %v3990, 1
      %v4047 = vlaneseq
      %v4048 = vshrl.u32 %v4047, 7
      %v4049 = vsub.s32 0, %v4048
      %v4050 = vrot.slane %v4046, %v4049
      %v4051 = vlaneseq
      %v4052 = vshrl.u32 %v4051, 7
      %v4053 = vsub.s32 1, %v4052
      %v4054 = vrot.slane %v4046, %v4053
      %v4055 = vlaneseq
      %v4056 = vshrl.u32 %v4055, 7
      %v4057 = vsub.s32 2, %v4056
      %v4058 = vrot.slane %v4046, %v4057
      %vm4059 = vcmp.eq.s32.totalorder %v440, %v4050
      %vm4060 = vcmp.eq.s32.totalorder %v440, %v4054
      %vm4061 = vcmp.eq.s32.totalorder %v440, %v4058
      %vm4062 = vcmp.eq.s32.totalorder %v3992, %v4050
      %vm4063 = vcmp.eq.s32.totalorder %v3992, %v4054
      %vm4064 = vcmp.eq.s32.totalorder %v3992, %v4058
      %v4065 = vsel %vm4059, 1, 0
      %v4066 = vsel %vm4060, 1, 0
      %v4067 = vsel %vm4061, 1, 0
      %v4068 = vsel %vm4062, 1, 0
      %v4069 = vsel %vm4063, 1, 0
      %v4070 = vsel %vm4064, 1, 0
      %v4071 = vcvt.s32.f32 %v4065
      %v4072 = vcvt.s32.f32 %v4066
      %v4073 = vcvt.s32.f32 %v4067
      %v4074 = vcvt.s32.f32 %v4068
      %v4075 = vcvt.s32.f32 %v4069
      %v4076 = vcvt.s32.f32 %v4070
      %v4078 = vlaneseq
      %v4079 = vshrl.u32 %v4078, 7
      %v4080 = vsub.s32 0, %v4079
      %v4081 = vrot.slane %v3988, %v4080
      %v4082 = vlaneseq
      %v4083 = vshrl.u32 %v4082, 7
      %v4084 = vsub.s32 1, %v4083
      %v4085 = vrot.slane %v3988, %v4084
      %v4086 = vlaneseq
      %v4087 = vshrl.u32 %v4086, 7
      %v4088 = vsub.s32 2, %v4087
      %v4089 = vrot.slane %v3988, %v4088
      %v4093 = vmul.f32 %v4071, %v4081
      %v4094 = vmul.f32 %v4072, %v4085
      %v4095 = vmul.f32 %v4073, %v4089
      %v4096 = vmul.f32 %v4074, %v4081
      %v4097 = vmul.f32 %v4075, %v4085
      %v4098 = vmul.f32 %v4076, %v4089
      %v4099 = vadd.f32 %v4040, %v4093
      %v4100 = vadd.f32 %v4041, %v4094
      %v4101 = vadd.f32 %v4042, %v4095
      %v4102 = vadd.f32 %v4043, %v4096
      %v4103 = vadd.f32 %v4044, %v4097
      %v4104 = vadd.f32 %v4045, %v4098
      %v4105 = vlaneseq
      %v4106 = vshrl.u32 %v4105, 7
      %v4107 = vsub.s32 0, %v4106
      %v4108 = vrot.slane %v3991, %v4107
      %v4109 = vlaneseq
      %v4110 = vshrl.u32 %v4109, 7
      %v4111 = vsub.s32 1, %v4110
      %v4112 = vrot.slane %v3991, %v4111
      %v4113 = vlaneseq
      %v4114 = vshrl.u32 %v4113, 7
      %v4115 = vsub.s32 2, %v4114
      %v4116 = vrot.slane %v3991, %v4115
      %vm4117 = vcmp.eq.s32.totalorder %v440, %v4108
      %vm4118 = vcmp.eq.s32.totalorder %v440, %v4112
      %vm4119 = vcmp.eq.s32.totalorder %v440, %v4116
      %vm4120 = vcmp.eq.s32.totalorder %v3992, %v4108
      %vm4121 = vcmp.eq.s32.totalorder %v3992, %v4112
      %vm4122 = vcmp.eq.s32.totalorder %v3992, %v4116
      %v4123 = vsel %vm4117, 1, 0
      %v4124 = vsel %vm4118, 1, 0
      %v4125 = vsel %vm4119, 1, 0
      %v4126 = vsel %vm4120, 1, 0
      %v4127 = vsel %vm4121, 1, 0
      %v4128 = vsel %vm4122, 1, 0
      %v4129 = vcvt.s32.f32 %v4123
      %v4130 = vcvt.s32.f32 %v4124
      %v4131 = vcvt.s32.f32 %v4125
      %v4132 = vcvt.s32.f32 %v4126
      %v4133 = vcvt.s32.f32 %v4127
      %v4134 = vcvt.s32.f32 %v4128
      %v4135 = vsub.f32 1.0, %v3989
      %v4137 = vlaneseq
      %v4138 = vshrl.u32 %v4137, 7
      %v4139 = vsub.s32 0, %v4138
      %v4140 = vrot.slane %v4135, %v4139
      %v4141 = vlaneseq
      %v4142 = vshrl.u32 %v4141, 7
      %v4143 = vsub.s32 1, %v4142
      %v4144 = vrot.slane %v4135, %v4143
      %v4145 = vlaneseq
      %v4146 = vshrl.u32 %v4145, 7
      %v4147 = vsub.s32 2, %v4146
      %v4148 = vrot.slane %v4135, %v4147
      %v4152 = vmul.f32 %v4129, %v4140
      %v4153 = vmul.f32 %v4130, %v4144
      %v4154 = vmul.f32 %v4131, %v4148
      %v4155 = vmul.f32 %v4132, %v4140
      %v4156 = vmul.f32 %v4133, %v4144
      %v4157 = vmul.f32 %v4134, %v4148
      %v4158 = vadd.s32 %v3991, 1
      %v4159 = vlaneseq
      %v4160 = vshrl.u32 %v4159, 7
      %v4161 = vsub.s32 0, %v4160
      %v4162 = vrot.slane %v4158, %v4161
      %v4163 = vlaneseq
      %v4164 = vshrl.u32 %v4163, 7
      %v4165 = vsub.s32 1, %v4164
      %v4166 = vrot.slane %v4158, %v4165
      %v4167 = vlaneseq
      %v4168 = vshrl.u32 %v4167, 7
      %v4169 = vsub.s32 2, %v4168
      %v4170 = vrot.slane %v4158, %v4169
      %vm4171 = vcmp.eq.s32.totalorder %v440, %v4162
      %vm4172 = vcmp.eq.s32.totalorder %v440, %v4166
      %vm4173 = vcmp.eq.s32.totalorder %v440, %v4170
      %vm4174 = vcmp.eq.s32.totalorder %v3992, %v4162
      %vm4175 = vcmp.eq.s32.totalorder %v3992, %v4166
      %vm4176 = vcmp.eq.s32.totalorder %v3992, %v4170
      %v4177 = vsel %vm4171, 1, 0
      %v4178 = vsel %vm4172, 1, 0
      %v4179 = vsel %vm4173, 1, 0
      %v4180 = vsel %vm4174, 1, 0
      %v4181 = vsel %vm4175, 1, 0
      %v4182 = vsel %vm4176, 1, 0
      %v4183 = vcvt.s32.f32 %v4177
      %v4184 = vcvt.s32.f32 %v4178
      %v4185 = vcvt.s32.f32 %v4179
      %v4186 = vcvt.s32.f32 %v4180
      %v4187 = vcvt.s32.f32 %v4181
      %v4188 = vcvt.s32.f32 %v4182
      %v4190 = vlaneseq
      %v4191 = vshrl.u32 %v4190, 7
      %v4192 = vsub.s32 0, %v4191
      %v4193 = vrot.slane %v3989, %v4192
      %v4194 = vlaneseq
      %v4195 = vshrl.u32 %v4194, 7
      %v4196 = vsub.s32 1, %v4195
      %v4197 = vrot.slane %v3989, %v4196
      %v4198 = vlaneseq
      %v4199 = vshrl.u32 %v4198, 7
      %v4200 = vsub.s32 2, %v4199
      %v4201 = vrot.slane %v3989, %v4200
      %v4205 = vmul.f32 %v4183, %v4193
      %v4206 = vmul.f32 %v4184, %v4197
      %v4207 = vmul.f32 %v4185, %v4201
      %v4208 = vmul.f32 %v4186, %v4193
      %v4209 = vmul.f32 %v4187, %v4197
      %v4210 = vmul.f32 %v4188, %v4201
      %v4211 = vadd.f32 %v4152, %v4205
      %v4212 = vadd.f32 %v4153, %v4206
      %v4213 = vadd.f32 %v4154, %v4207
      %v4214 = vadd.f32 %v4155, %v4208
      %v4215 = vadd.f32 %v4156, %v4209
      %v4216 = vadd.f32 %v4157, %v4210
      %v4217 = vld [vmem:[%s411] sm:$0xff]
      %v4218 = vld [vmem:[%s411 + $0x8] sm:$0xff]
      %vm4219 = vcmask 130048
      %v4221 = vsel %vm4219, %v4217, 0
      %v4224 = vsel %vm4219, %v4218, 0
      %4226 = vmatprep.subr.mxu0 %v4100
      %4227 = vmatpush1.msra.mxu0 %v4099
      %4228 = vmatprep.subr.mxu0 %v4103
      %4229 = vmatpush1.msra.mxu0 %v4102
      %4230 = vmatprep.subr.mxu0 0.0
      %4231 = vmatpush1.msra.mxu0 0.0
      %4232 = vmatprep.subr.mxu0 0.0
      %4233 = vmatpush1.msra.mxu0 0.0
      %4234 = vmatprep.subr.mxu0 0.0
      %4235 = vmatpush1.msra.mxu0 0.0
      %4236 = vmatprep.subr.mxu0 0.0
      %4237 = vmatpush1.msra.mxu0 0.0
      %4238 = vmatprep.subr.mxu0 0.0
      %4239 = vmatpush1.msra.mxu0 0.0
      %4240 = vmatprep.subr.mxu0 0.0
      %4241 = vmatpush1.msra.mxu0 0.0
      %4242 = vmatprep.subr.mxu0 0.0
      %4243 = vmatpush1.msra.mxu0 0.0
      %4244 = vmatprep.subr.mxu0 0.0
      %4245 = vmatpush1.msra.mxu0 0.0
      %4246 = vmatprep.subr.mxu0 0.0
      %4247 = vmatpush1.msra.mxu0 0.0
      %4248 = vmatprep.subr.mxu0 0.0
      %4249 = vmatpush1.msra.mxu0 0.0
      %4250 = vmatprep.subr.mxu0 0.0
      %4251 = vmatpush1.msra.mxu0 0.0
      %4252 = vmatprep.subr.mxu0 0.0
      %4253 = vmatpush1.msra.mxu0 0.0
      %4254 = vmatprep.subr.mxu0 0.0
      %4255 = vmatpush1.msra.mxu0 0.0
      %4256 = vmatprep.subr.mxu0 0.0
      %4257 = vmatpush1.msra.mxu0 0.0
      %4258 = vmatprep.subr.mxu0 0.0
      %4259 = vmatpush1.msra.mxu0 0.0
      %4260 = vmatprep.subr.mxu0 0.0
      %4261 = vmatpush1.msra.mxu0 0.0
      %4262 = vmatprep.subr.mxu0 0.0
      %4263 = vmatpush1.msra.mxu0 0.0
      %4264 = vmatprep.subr.mxu0 0.0
      %4265 = vmatpush1.msra.mxu0 0.0
      %4266 = vmatprep.subr.mxu0 0.0
      %4267 = vmatpush1.msra.mxu0 0.0
      %4268 = vmatprep.subr.mxu0 0.0
      %4269 = vmatpush1.msra.mxu0 0.0
      %4270 = vmatprep.subr.mxu0 0.0
      %4271 = vmatpush1.msra.mxu0 0.0
      %4272 = vmatprep.subr.mxu0 0.0
      %4273 = vmatpush1.msra.mxu0 0.0
      %4274 = vmatprep.subr.mxu0 0.0
      %4275 = vmatpush1.msra.mxu0 0.0
      %4276 = vmatprep.subr.mxu0 0.0
      %4277 = vmatpush1.msra.mxu0 0.0
      %4278 = vmatprep.subr.mxu0 0.0
      %4279 = vmatpush1.msra.mxu0 0.0
      %4280 = vmatprep.subr.mxu0 0.0
      %4281 = vmatpush1.msra.mxu0 0.0
      %4282 = vmatprep.subr.mxu0 0.0
      %4283 = vmatpush1.msra.mxu0 0.0
      %4284 = vmatprep.subr.mxu0 0.0
      %4285 = vmatpush1.msra.mxu0 0.0
      %4286 = vmatprep.subr.mxu0 0.0
      %4287 = vmatpush1.msra.mxu0 0.0
      %4288 = vmatprep.subr.mxu0 0.0
      %4289 = vmatpush1.msra.mxu0 0.0
      %4290 = vmatprep.mubr.f32.mxu0 0.0
      %4291 = vmatmul.mubr.f32.gmra.mrb[0].mxu0 %v4221
      %v4292 = vpop.f32.mrb[0].mxu0
      %v4293 = vadd.f32 0.0, %v4292
      %v4294 = vpop.f32.mrb[0].mxu0
      %v4295 = vadd.f32 0.0, %v4294
      %4296 = vmatprep.mubr.f32.mxu0 0.0
      %4297 = vmatmul.mubr.f32.gmra.mrb[0].mxu0 %v4224
      %v4298 = vpop.f32.mrb[0].mxu0
      %v4299 = vadd.f32 0.0, %v4298
      %v4300 = vpop.f32.mrb[0].mxu0
      %v4301 = vadd.f32 0.0, %v4300
      %4302 = vdwg.mxu0
      %4303 = vmatprep.subr.mxu0 0.0
      %4304 = vmatpush1.msra.mxu0 %v4101
      %4305 = vmatprep.subr.mxu0 0.0
      %4306 = vmatpush1.msra.mxu0 %v4104
      %4307 = vmatprep.subr.mxu0 0.0
      %4308 = vmatpush1.msra.mxu0 0.0
      %4309 = vmatprep.subr.mxu0 0.0
      %4310 = vmatpush1.msra.mxu0 0.0
      %4311 = vmatprep.subr.mxu0 0.0
      %4312 = vmatpush1.msra.mxu0 0.0
      %4313 = vmatprep.subr.mxu0 0.0
      %4314 = vmatpush1.msra.mxu0 0.0
      %4315 = vmatprep.subr.mxu0 0.0
      %4316 = vmatpush1.msra.mxu0 0.0
      %4317 = vmatprep.subr.mxu0 0.0
      %4318 = vmatpush1.msra.mxu0 0.0
      %4319 = vmatprep.subr.mxu0 0.0
      %4320 = vmatpush1.msra.mxu0 0.0
      %4321 = vmatprep.subr.mxu0 0.0
      %4322 = vmatpush1.msra.mxu0 0.0
      %4323 = vmatprep.subr.mxu0 0.0
      %4324 = vmatpush1.msra.mxu0 0.0
      %4325 = vmatprep.subr.mxu0 0.0
      %4326 = vmatpush1.msra.mxu0 0.0
      %4327 = vmatprep.subr.mxu0 0.0
      %4328 = vmatpush1.msra.mxu0 0.0
      %4329 = vmatprep.subr.mxu0 0.0
      %4330 = vmatpush1.msra.mxu0 0.0
      %4331 = vmatprep.subr.mxu0 0.0
      %4332 = vmatpush1.msra.mxu0 0.0
      %4333 = vmatprep.subr.mxu0 0.0
      %4334 = vmatpush1.msra.mxu0 0.0
      %4335 = vmatprep.subr.mxu0 0.0
      %4336 = vmatpush1.msra.mxu0 0.0
      %4337 = vmatprep.subr.mxu0 0.0
      %4338 = vmatpush1.msra.mxu0 0.0
      %4339 = vmatprep.subr.mxu0 0.0
      %4340 = vmatpush1.msra.mxu0 0.0
      %4341 = vmatprep.subr.mxu0 0.0
      %4342 = vmatpush1.msra.mxu0 0.0
      %4343 = vmatprep.subr.mxu0 0.0
      %4344 = vmatpush1.msra.mxu0 0.0
      %4345 = vmatprep.subr.mxu0 0.0
      %4346 = vmatpush1.msra.mxu0 0.0
      %4347 = vmatprep.subr.mxu0 0.0
      %4348 = vmatpush1.msra.mxu0 0.0
      %4349 = vmatprep.subr.mxu0 0.0
      %4350 = vmatpush1.msra.mxu0 0.0
      %4351 = vmatprep.subr.mxu0 0.0
      %4352 = vmatpush1.msra.mxu0 0.0
      %4353 = vmatprep.subr.mxu0 0.0
      %4354 = vmatpush1.msra.mxu0 0.0
      %4355 = vmatprep.subr.mxu0 0.0
      %4356 = vmatpush1.msra.mxu0 0.0
      %4357 = vmatprep.subr.mxu0 0.0
      %4358 = vmatpush1.msra.mxu0 0.0
      %4359 = vmatprep.subr.mxu0 0.0
      %4360 = vmatpush1.msra.mxu0 0.0
      %4361 = vmatprep.subr.mxu0 0.0
      %4362 = vmatpush1.msra.mxu0 0.0
      %4363 = vmatprep.subr.mxu0 0.0
      %4364 = vmatpush1.msra.mxu0 0.0
      %4365 = vmatprep.subr.mxu0 0.0
      %4366 = vmatpush1.msra.mxu0 0.0
      %4367 = vmatprep.mubr.f32.mxu0 0.0
      %4368 = vmatmul.mubr.f32.gmra.mrb[0].mxu0 %v4221
      %v4369 = vpop.f32.mrb[0].mxu0
      %v4370 = vadd.f32 0.0, %v4369
      %v4371 = vpop.f32.mrb[0].mxu0
      %4372 = vmatprep.mubr.f32.mxu0 0.0
      %4373 = vmatmul.mubr.f32.gmra.mrb[0].mxu0 %v4224
      %v4374 = vpop.f32.mrb[0].mxu0
      %v4375 = vadd.f32 0.0, %v4374
      %v4376 = vpop.f32.mrb[0].mxu0
      %4377 = vdwg.mxu0
      %v4378 = vmul.f32 %v4293, %v4211
      %v4379 = vmul.f32 %v4295, %v4212
      %v4380 = vmul.f32 %v4370, %v4213
      %v4381 = vmul.f32 %v4299, %v4214
      %v4382 = vmul.f32 %v4301, %v4215
      %v4383 = vmul.f32 %v4375, %v4216
      %v4384 = vadd.f32 %v4378, %v4381
      %v4385 = vrot.slane %v4384, 4
      %v4386 = vadd.f32 %v4384, %v4385
      %v4387 = vrot.slane %v4386, 2
      %v4388 = vadd.f32 %v4386, %v4387
      %v4389 = vrot.slane %v4388, 1
      %v4390 = vadd.f32 %v4388, %v4389
      %v4391 = vadd.f32 %v4379, %v4382
      %v4392 = vrot.slane %v4391, 4
      %v4393 = vadd.f32 %v4391, %v4392
      %v4394 = vrot.slane %v4393, 2
      %v4395 = vadd.f32 %v4393, %v4394
      %v4396 = vrot.slane %v4395, 1
      %v4397 = vadd.f32 %v4395, %v4396
      %v4398 = vsel %vm3476, %v4380, 0.0
      %v4399 = vsel %vm3476, %v4383, 0.0
      %v4400 = vadd.f32 %v4398, %v4399
      %v4401 = vrot.slane %v4400, 4
      %v4402 = vadd.f32 %v4400, %v4401
      %v4403 = vrot.slane %v4402, 2
      %v4404 = vadd.f32 %v4402, %v4403
      %v4405 = vrot.slane %v4404, 1
      %v4406 = vadd.f32 %v4404, %v4405
      %s4407 = scalar_lea.vmem %s411, 16
      %v4408 = vld [vmem:[%s4407] sm:$0xff]
      %v4409 = vld [vmem:[%s4407 + $0x8] sm:$0xff]
      %v4411 = vsel %vm4219, %v4408, 0
      %v4414 = vsel %vm4219, %v4409, 0
      %4416 = vmatprep.subr.mxu0 %v4100
      %4417 = vmatpush1.msra.mxu0 %v4099
      %4418 = vmatprep.subr.mxu0 %v4103
      %4419 = vmatpush1.msra.mxu0 %v4102
      %4420 = vmatprep.subr.mxu0 0.0
      %4421 = vmatpush1.msra.mxu0 0.0
      %4422 = vmatprep.subr.mxu0 0.0
      %4423 = vmatpush1.msra.mxu0 0.0
      %4424 = vmatprep.subr.mxu0 0.0
      %4425 = vmatpush1.msra.mxu0 0.0
      %4426 = vmatprep.subr.mxu0 0.0
      %4427 = vmatpush1.msra.mxu0 0.0
      %4428 = vmatprep.subr.mxu0 0.0
      %4429 = vmatpush1.msra.mxu0 0.0
      %4430 = vmatprep.subr.mxu0 0.0
      %4431 = vmatpush1.msra.mxu0 0.0
      %4432 = vmatprep.subr.mxu0 0.0
      %4433 = vmatpush1.msra.mxu0 0.0
      %4434 = vmatprep.subr.mxu0 0.0
      %4435 = vmatpush1.msra.mxu0 0.0
      %4436 = vmatprep.subr.mxu0 0.0
      %4437 = vmatpush1.msra.mxu0 0.0
      %4438 = vmatprep.subr.mxu0 0.0
      %4439 = vmatpush1.msra.mxu0 0.0
      %4440 = vmatprep.subr.mxu0 0.0
      %4441 = vmatpush1.msra.mxu0 0.0
      %4442 = vmatprep.subr.mxu0 0.0
      %4443 = vmatpush1.msra.mxu0 0.0
      %4444 = vmatprep.subr.mxu0 0.0
      %4445 = vmatpush1.msra.mxu0 0.0
      %4446 = vmatprep.subr.mxu0 0.0
      %4447 = vmatpush1.msra.mxu0 0.0
      %4448 = vmatprep.subr.mxu0 0.0
      %4449 = vmatpush1.msra.mxu0 0.0
      %4450 = vmatprep.subr.mxu0 0.0
      %4451 = vmatpush1.msra.mxu0 0.0
      %4452 = vmatprep.subr.mxu0 0.0
      %4453 = vmatpush1.msra.mxu0 0.0
      %4454 = vmatprep.subr.mxu0 0.0
      %4455 = vmatpush1.msra.mxu0 0.0
      %4456 = vmatprep.subr.mxu0 0.0
      %4457 = vmatpush1.msra.mxu0 0.0
      %4458 = vmatprep.subr.mxu0 0.0
      %4459 = vmatpush1.msra.mxu0 0.0
      %4460 = vmatprep.subr.mxu0 0.0
      %4461 = vmatpush1.msra.mxu0 0.0
      %4462 = vmatprep.subr.mxu0 0.0
      %4463 = vmatpush1.msra.mxu0 0.0
      %4464 = vmatprep.subr.mxu0 0.0
      %4465 = vmatpush1.msra.mxu0 0.0
      %4466 = vmatprep.subr.mxu0 0.0
      %4467 = vmatpush1.msra.mxu0 0.0
      %4468 = vmatprep.subr.mxu0 0.0
      %4469 = vmatpush1.msra.mxu0 0.0
      %4470 = vmatprep.subr.mxu0 0.0
      %4471 = vmatpush1.msra.mxu0 0.0
      %4472 = vmatprep.subr.mxu0 0.0
      %4473 = vmatpush1.msra.mxu0 0.0
      %4474 = vmatprep.subr.mxu0 0.0
      %4475 = vmatpush1.msra.mxu0 0.0
      %4476 = vmatprep.subr.mxu0 0.0
      %4477 = vmatpush1.msra.mxu0 0.0
      %4478 = vmatprep.subr.mxu0 0.0
      %4479 = vmatpush1.msra.mxu0 0.0
      %4480 = vmatprep.mubr.f32.mxu0 0.0
      %4481 = vmatmul.mubr.f32.gmra.mrb[0].mxu0 %v4411
      %v4482 = vpop.f32.mrb[0].mxu0
      %v4483 = vadd.f32 0.0, %v4482
      %v4484 = vpop.f32.mrb[0].mxu0
      %v4485 = vadd.f32 0.0, %v4484
      %4486 = vmatprep.mubr.f32.mxu0 0.0
      %4487 = vmatmul.mubr.f32.gmra.mrb[0].mxu0 %v4414
      %v4488 = vpop.f32.mrb[0].mxu0
      %v4489 = vadd.f32 0.0, %v4488
      %v4490 = vpop.f32.mrb[0].mxu0
      %v4491 = vadd.f32 0.0, %v4490
      %4492 = vdwg.mxu0
      %4493 = vmatprep.subr.mxu0 0.0
      %4494 = vmatpush1.msra.mxu0 %v4101
      %4495 = vmatprep.subr.mxu0 0.0
      %4496 = vmatpush1.msra.mxu0 %v4104
      %4497 = vmatprep.subr.mxu0 0.0
      %4498 = vmatpush1.msra.mxu0 0.0
      %4499 = vmatprep.subr.mxu0 0.0
      %4500 = vmatpush1.msra.mxu0 0.0
      %4501 = vmatprep.subr.mxu0 0.0
      %4502 = vmatpush1.msra.mxu0 0.0
      %4503 = vmatprep.subr.mxu0 0.0
      %4504 = vmatpush1.msra.mxu0 0.0
      %4505 = vmatprep.subr.mxu0 0.0
      %4506 = vmatpush1.msra.mxu0 0.0
      %4507 = vmatprep.subr.mxu0 0.0
      %4508 = vmatpush1.msra.mxu0 0.0
      %4509 = vmatprep.subr.mxu0 0.0
      %4510 = vmatpush1.msra.mxu0 0.0
      %4511 = vmatprep.subr.mxu0 0.0
      %4512 = vmatpush1.msra.mxu0 0.0
      %4513 = vmatprep.subr.mxu0 0.0
      %4514 = vmatpush1.msra.mxu0 0.0
      %4515 = vmatprep.subr.mxu0 0.0
      %4516 = vmatpush1.msra.mxu0 0.0
      %4517 = vmatprep.subr.mxu0 0.0
      %4518 = vmatpush1.msra.mxu0 0.0
      %4519 = vmatprep.subr.mxu0 0.0
      %4520 = vmatpush1.msra.mxu0 0.0
      %4521 = vmatprep.subr.mxu0 0.0
      %4522 = vmatpush1.msra.mxu0 0.0
      %4523 = vmatprep.subr.mxu0 0.0
      %4524 = vmatpush1.msra.mxu0 0.0
      %4525 = vmatprep.subr.mxu0 0.0
      %4526 = vmatpush1.msra.mxu0 0.0
      %4527 = vmatprep.subr.mxu0 0.0
      %4528 = vmatpush1.msra.mxu0 0.0
      %4529 = vmatprep.subr.mxu0 0.0
      %4530 = vmatpush1.msra.mxu0 0.0
      %4531 = vmatprep.subr.mxu0 0.0
      %4532 = vmatpush1.msra.mxu0 0.0
      %4533 = vmatprep.subr.mxu0 0.0
      %4534 = vmatpush1.msra.mxu0 0.0
      %4535 = vmatprep.subr.mxu0 0.0
      %4536 = vmatpush1.msra.mxu0 0.0
      %4537 = vmatprep.subr.mxu0 0.0
      %4538 = vmatpush1.msra.mxu0 0.0
      %4539 = vmatprep.subr.mxu0 0.0
      %4540 = vmatpush1.msra.mxu0 0.0
      %4541 = vmatprep.subr.mxu0 0.0
      %4542 = vmatpush1.msra.mxu0 0.0
      %4543 = vmatprep.subr.mxu0 0.0
      %4544 = vmatpush1.msra.mxu0 0.0
      %4545 = vmatprep.subr.mxu0 0.0
      %4546 = vmatpush1.msra.mxu0 0.0
      %4547 = vmatprep.subr.mxu0 0.0
      %4548 = vmatpush1.msra.mxu0 0.0
      %4549 = vmatprep.subr.mxu0 0.0
      %4550 = vmatpush1.msra.mxu0 0.0
      %4551 = vmatprep.subr.mxu0 0.0
      %4552 = vmatpush1.msra.mxu0 0.0
      %4553 = vmatprep.subr.mxu0 0.0
      %4554 = vmatpush1.msra.mxu0 0.0
      %4555 = vmatprep.subr.mxu0 0.0
      %4556 = vmatpush1.msra.mxu0 0.0
      %4557 = vmatprep.mubr.f32.mxu0 0.0
      %4558 = vmatmul.mubr.f32.gmra.mrb[0].mxu0 %v4411
      %v4559 = vpop.f32.mrb[0].mxu0
      %v4560 = vadd.f32 0.0, %v4559
      %v4561 = vpop.f32.mrb[0].mxu0
      %4562 = vmatprep.mubr.f32.mxu0 0.0
      %4563 = vmatmul.mubr.f32.gmra.mrb[0].mxu0 %v4414
      %v4564 = vpop.f32.mrb[0].mxu0
      %v4565 = vadd.f32 0.0, %v4564
      %v4566 = vpop.f32.mrb[0].mxu0
      %4567 = vdwg.mxu0
      %v4568 = vmul.f32 %v4483, %v4211
      %v4569 = vmul.f32 %v4485, %v4212
      %v4570 = vmul.f32 %v4560, %v4213
      %v4571 = vmul.f32 %v4489, %v4214
      %v4572 = vmul.f32 %v4491, %v4215
      %v4573 = vmul.f32 %v4565, %v4216
      %v4574 = vadd.f32 %v4568, %v4571
      %v4575 = vrot.slane %v4574, 4
      %v4576 = vadd.f32 %v4574, %v4575
      %v4577 = vrot.slane %v4576, 2
      %v4578 = vadd.f32 %v4576, %v4577
      %v4579 = vrot.slane %v4578, 1
      %v4580 = vadd.f32 %v4578, %v4579
      %v4581 = vadd.f32 %v4569, %v4572
      %v4582 = vrot.slane %v4581, 4
      %v4583 = vadd.f32 %v4581, %v4582
      %v4584 = vrot.slane %v4583, 2
      %v4585 = vadd.f32 %v4583, %v4584
      %v4586 = vrot.slane %v4585, 1
      %v4587 = vadd.f32 %v4585, %v4586
      %v4588 = vsel %vm3476, %v4570, 0.0
      %v4589 = vsel %vm3476, %v4573, 0.0
      %v4590 = vadd.f32 %v4588, %v4589
      %v4591 = vrot.slane %v4590, 4
      %v4592 = vadd.f32 %v4590, %v4591
      %v4593 = vrot.slane %v4592, 2
      %v4594 = vadd.f32 %v4592, %v4593
      %v4595 = vrot.slane %v4594, 1
      %v4596 = vadd.f32 %v4594, %v4595
      %s4597 = scalar_lea.vmem %s411, 32
      %v4598 = vld [vmem:[%s4597] sm:$0xff]
      %v4599 = vld [vmem:[%s4597 + $0x8] sm:$0xff]
      %v4601 = vsel %vm4219, %v4598, 0
      %v4604 = vsel %vm4219, %v4599, 0
      %4606 = vmatprep.subr.mxu0 %v4100
      %4607 = vmatpush1.msra.mxu0 %v4099
      %4608 = vmatprep.subr.mxu0 %v4103
      %4609 = vmatpush1.msra.mxu0 %v4102
      %4610 = vmatprep.subr.mxu0 0.0
      %4611 = vmatpush1.msra.mxu0 0.0
      %4612 = vmatprep.subr.mxu0 0.0
      %4613 = vmatpush1.msra.mxu0 0.0
      %4614 = vmatprep.subr.mxu0 0.0
      %4615 = vmatpush1.msra.mxu0 0.0
      %4616 = vmatprep.subr.mxu0 0.0
      %4617 = vmatpush1.msra.mxu0 0.0
      %4618 = vmatprep.subr.mxu0 0.0
      %4619 = vmatpush1.msra.mxu0 0.0
      %4620 = vmatprep.subr.mxu0 0.0
      %4621 = vmatpush1.msra.mxu0 0.0
      %4622 = vmatprep.subr.mxu0 0.0
      %4623 = vmatpush1.msra.mxu0 0.0
      %4624 = vmatprep.subr.mxu0 0.0
      %4625 = vmatpush1.msra.mxu0 0.0
      %4626 = vmatprep.subr.mxu0 0.0
      %4627 = vmatpush1.msra.mxu0 0.0
      %4628 = vmatprep.subr.mxu0 0.0
      %4629 = vmatpush1.msra.mxu0 0.0
      %4630 = vmatprep.subr.mxu0 0.0
      %4631 = vmatpush1.msra.mxu0 0.0
      %4632 = vmatprep.subr.mxu0 0.0
      %4633 = vmatpush1.msra.mxu0 0.0
      %4634 = vmatprep.subr.mxu0 0.0
      %4635 = vmatpush1.msra.mxu0 0.0
      %4636 = vmatprep.subr.mxu0 0.0
      %4637 = vmatpush1.msra.mxu0 0.0
      %4638 = vmatprep.subr.mxu0 0.0
      %4639 = vmatpush1.msra.mxu0 0.0
      %4640 = vmatprep.subr.mxu0 0.0
      %4641 = vmatpush1.msra.mxu0 0.0
      %4642 = vmatprep.subr.mxu0 0.0
      %4643 = vmatpush1.msra.mxu0 0.0
      %4644 = vmatprep.subr.mxu0 0.0
      %4645 = vmatpush1.msra.mxu0 0.0
      %4646 = vmatprep.subr.mxu0 0.0
      %4647 = vmatpush1.msra.mxu0 0.0
      %4648 = vmatprep.subr.mxu0 0.0
      %4649 = vmatpush1.msra.mxu0 0.0
      %4650 = vmatprep.subr.mxu0 0.0
      %4651 = vmatpush1.msra.mxu0 0.0
      %4652 = vmatprep.subr.mxu0 0.0
      %4653 = vmatpush1.msra.mxu0 0.0
      %4654 = vmatprep.subr.mxu0 0.0
      %4655 = vmatpush1.msra.mxu0 0.0
      %4656 = vmatprep.subr.mxu0 0.0
      %4657 = vmatpush1.msra.mxu0 0.0
      %4658 = vmatprep.subr.mxu0 0.0
      %4659 = vmatpush1.msra.mxu0 0.0
      %4660 = vmatprep.subr.mxu0 0.0
      %4661 = vmatpush1.msra.mxu0 0.0
      %4662 = vmatprep.subr.mxu0 0.0
      %4663 = vmatpush1.msra.mxu0 0.0
      %4664 = vmatprep.subr.mxu0 0.0
      %4665 = vmatpush1.msra.mxu0 0.0
      %4666 = vmatprep.subr.mxu0 0.0
      %4667 = vmatpush1.msra.mxu0 0.0
      %4668 = vmatprep.subr.mxu0 0.0
      %4669 = vmatpush1.msra.mxu0 0.0
      %4670 = vmatprep.mubr.f32.mxu0 0.0
      %4671 = vmatmul.mubr.f32.gmra.mrb[0].mxu0 %v4601
      %v4672 = vpop.f32.mrb[0].mxu0
      %v4673 = vadd.f32 0.0, %v4672
      %v4674 = vpop.f32.mrb[0].mxu0
      %v4675 = vadd.f32 0.0, %v4674
      %4676 = vmatprep.mubr.f32.mxu0 0.0
      %4677 = vmatmul.mubr.f32.gmra.mrb[0].mxu0 %v4604
      %v4678 = vpop.f32.mrb[0].mxu0
      %v4679 = vadd.f32 0.0, %v4678
      %v4680 = vpop.f32.mrb[0].mxu0
      %v4681 = vadd.f32 0.0, %v4680
      %4682 = vdwg.mxu0
      %4683 = vmatprep.subr.mxu0 0.0
      %4684 = vmatpush1.msra.mxu0 %v4101
      %4685 = vmatprep.subr.mxu0 0.0
      %4686 = vmatpush1.msra.mxu0 %v4104
      %4687 = vmatprep.subr.mxu0 0.0
      %4688 = vmatpush1.msra.mxu0 0.0
      %4689 = vmatprep.subr.mxu0 0.0
      %4690 = vmatpush1.msra.mxu0 0.0
      %4691 = vmatprep.subr.mxu0 0.0
      %4692 = vmatpush1.msra.mxu0 0.0
      %4693 = vmatprep.subr.mxu0 0.0
      %4694 = vmatpush1.msra.mxu0 0.0
      %4695 = vmatprep.subr.mxu0 0.0
      %4696 = vmatpush1.msra.mxu0 0.0
      %4697 = vmatprep.subr.mxu0 0.0
      %4698 = vmatpush1.msra.mxu0 0.0
      %4699 = vmatprep.subr.mxu0 0.0
      %4700 = vmatpush1.msra.mxu0 0.0
      %4701 = vmatprep.subr.mxu0 0.0
      %4702 = vmatpush1.msra.mxu0 0.0
      %4703 = vmatprep.subr.mxu0 0.0
      %4704 = vmatpush1.msra.mxu0 0.0
      %4705 = vmatprep.subr.mxu0 0.0
      %4706 = vmatpush1.msra.mxu0 0.0
      %4707 = vmatprep.subr.mxu0 0.0
      %4708 = vmatpush1.msra.mxu0 0.0
      %4709 = vmatprep.subr.mxu0 0.0
      %4710 = vmatpush1.msra.mxu0 0.0
      %4711 = vmatprep.subr.mxu0 0.0
      %4712 = vmatpush1.msra.mxu0 0.0
      %4713 = vmatprep.subr.mxu0 0.0
      %4714 = vmatpush1.msra.mxu0 0.0
      %4715 = vmatprep.subr.mxu0 0.0
      %4716 = vmatpush1.msra.mxu0 0.0
      %4717 = vmatprep.subr.mxu0 0.0
      %4718 = vmatpush1.msra.mxu0 0.0
      %4719 = vmatprep.subr.mxu0 0.0
      %4720 = vmatpush1.msra.mxu0 0.0
      %4721 = vmatprep.subr.mxu0 0.0
      %4722 = vmatpush1.msra.mxu0 0.0
      %4723 = vmatprep.subr.mxu0 0.0
      %4724 = vmatpush1.msra.mxu0 0.0
      %4725 = vmatprep.subr.mxu0 0.0
      %4726 = vmatpush1.msra.mxu0 0.0
      %4727 = vmatprep.subr.mxu0 0.0
      %4728 = vmatpush1.msra.mxu0 0.0
      %4729 = vmatprep.subr.mxu0 0.0
      %4730 = vmatpush1.msra.mxu0 0.0
      %4731 = vmatprep.subr.mxu0 0.0
      %4732 = vmatpush1.msra.mxu0 0.0
      %4733 = vmatprep.subr.mxu0 0.0
      %4734 = vmatpush1.msra.mxu0 0.0
      %4735 = vmatprep.subr.mxu0 0.0
      %4736 = vmatpush1.msra.mxu0 0.0
      %4737 = vmatprep.subr.mxu0 0.0
      %4738 = vmatpush1.msra.mxu0 0.0
      %4739 = vmatprep.subr.mxu0 0.0
      %4740 = vmatpush1.msra.mxu0 0.0
      %4741 = vmatprep.subr.mxu0 0.0
      %4742 = vmatpush1.msra.mxu0 0.0
      %4743 = vmatprep.subr.mxu0 0.0
      %4744 = vmatpush1.msra.mxu0 0.0
      %4745 = vmatprep.subr.mxu0 0.0
      %4746 = vmatpush1.msra.mxu0 0.0
      %4747 = vmatprep.mubr.f32.mxu0 0.0
      %4748 = vmatmul.mubr.f32.gmra.mrb[0].mxu0 %v4601
      %v4749 = vpop.f32.mrb[0].mxu0
      %v4750 = vadd.f32 0.0, %v4749
      %v4751 = vpop.f32.mrb[0].mxu0
      %4752 = vmatprep.mubr.f32.mxu0 0.0
      %4753 = vmatmul.mubr.f32.gmra.mrb[0].mxu0 %v4604
      %v4754 = vpop.f32.mrb[0].mxu0
      %v4755 = vadd.f32 0.0, %v4754
      %v4756 = vpop.f32.mrb[0].mxu0
      %4757 = vdwg.mxu0
      %v4758 = vmul.f32 %v4673, %v4211
      %v4759 = vmul.f32 %v4675, %v4212
      %v4760 = vmul.f32 %v4750, %v4213
      %v4761 = vmul.f32 %v4679, %v4214
      %v4762 = vmul.f32 %v4681, %v4215
      %v4763 = vmul.f32 %v4755, %v4216
      %v4764 = vadd.f32 %v4758, %v4761
      %v4765 = vrot.slane %v4764, 4
      %v4766 = vadd.f32 %v4764, %v4765
      %v4767 = vrot.slane %v4766, 2
      %v4768 = vadd.f32 %v4766, %v4767
      %v4769 = vrot.slane %v4768, 1
      %v4770 = vadd.f32 %v4768, %v4769
      %v4771 = vadd.f32 %v4759, %v4762
      %v4772 = vrot.slane %v4771, 4
      %v4773 = vadd.f32 %v4771, %v4772
      %v4774 = vrot.slane %v4773, 2
      %v4775 = vadd.f32 %v4773, %v4774
      %v4776 = vrot.slane %v4775, 1
      %v4777 = vadd.f32 %v4775, %v4776
      %v4778 = vsel %vm3476, %v4760, 0.0
      %v4779 = vsel %vm3476, %v4763, 0.0
      %v4780 = vadd.f32 %v4778, %v4779
      %v4781 = vrot.slane %v4780, 4
      %v4782 = vadd.f32 %v4780, %v4781
      %v4783 = vrot.slane %v4782, 2
      %v4784 = vadd.f32 %v4782, %v4783
      %v4785 = vrot.slane %v4784, 1
      %v4786 = vadd.f32 %v4784, %v4785
      %s4787 = scalar_lea.vmem %s411, 48
      %v4788 = vld [vmem:[%s4787] sm:$0xff]
      %v4789 = vld [vmem:[%s4787 + $0x8] sm:$0xff]
      %v4791 = vsel %vm4219, %v4788, 0
      %v4794 = vsel %vm4219, %v4789, 0
      %4796 = vmatprep.subr.mxu0 %v4100
      %4797 = vmatpush1.msra.mxu0 %v4099
      %4798 = vmatprep.subr.mxu0 %v4103
      %4799 = vmatpush1.msra.mxu0 %v4102
      %4800 = vmatprep.subr.mxu0 0.0
      %4801 = vmatpush1.msra.mxu0 0.0
      %4802 = vmatprep.subr.mxu0 0.0
      %4803 = vmatpush1.msra.mxu0 0.0
      %4804 = vmatprep.subr.mxu0 0.0
      %4805 = vmatpush1.msra.mxu0 0.0
      %4806 = vmatprep.subr.mxu0 0.0
      %4807 = vmatpush1.msra.mxu0 0.0
      %4808 = vmatprep.subr.mxu0 0.0
      %4809 = vmatpush1.msra.mxu0 0.0
      %4810 = vmatprep.subr.mxu0 0.0
      %4811 = vmatpush1.msra.mxu0 0.0
      %4812 = vmatprep.subr.mxu0 0.0
      %4813 = vmatpush1.msra.mxu0 0.0
      %4814 = vmatprep.subr.mxu0 0.0
      %4815 = vmatpush1.msra.mxu0 0.0
      %4816 = vmatprep.subr.mxu0 0.0
      %4817 = vmatpush1.msra.mxu0 0.0
      %4818 = vmatprep.subr.mxu0 0.0
      %4819 = vmatpush1.msra.mxu0 0.0
      %4820 = vmatprep.subr.mxu0 0.0
      %4821 = vmatpush1.msra.mxu0 0.0
      %4822 = vmatprep.subr.mxu0 0.0
      %4823 = vmatpush1.msra.mxu0 0.0
      %4824 = vmatprep.subr.mxu0 0.0
      %4825 = vmatpush1.msra.mxu0 0.0
      %4826 = vmatprep.subr.mxu0 0.0
      %4827 = vmatpush1.msra.mxu0 0.0
      %4828 = vmatprep.subr.mxu0 0.0
      %4829 = vmatpush1.msra.mxu0 0.0
      %4830 = vmatprep.subr.mxu0 0.0
      %4831 = vmatpush1.msra.mxu0 0.0
      %4832 = vmatprep.subr.mxu0 0.0
      %4833 = vmatpush1.msra.mxu0 0.0
      %4834 = vmatprep.subr.mxu0 0.0
      %4835 = vmatpush1.msra.mxu0 0.0
      %4836 = vmatprep.subr.mxu0 0.0
      %4837 = vmatpush1.msra.mxu0 0.0
      %4838 = vmatprep.subr.mxu0 0.0
      %4839 = vmatpush1.msra.mxu0 0.0
      %4840 = vmatprep.subr.mxu0 0.0
      %4841 = vmatpush1.msra.mxu0 0.0
      %4842 = vmatprep.subr.mxu0 0.0
      %4843 = vmatpush1.msra.mxu0 0.0
      %4844 = vmatprep.subr.mxu0 0.0
      %4845 = vmatpush1.msra.mxu0 0.0
      %4846 = vmatprep.subr.mxu0 0.0
      %4847 = vmatpush1.msra.mxu0 0.0
      %4848 = vmatprep.subr.mxu0 0.0
      %4849 = vmatpush1.msra.mxu0 0.0
      %4850 = vmatprep.subr.mxu0 0.0
      %4851 = vmatpush1.msra.mxu0 0.0
      %4852 = vmatprep.subr.mxu0 0.0
      %4853 = vmatpush1.msra.mxu0 0.0
      %4854 = vmatprep.subr.mxu0 0.0
      %4855 = vmatpush1.msra.mxu0 0.0
      %4856 = vmatprep.subr.mxu0 0.0
      %4857 = vmatpush1.msra.mxu0 0.0
      %4858 = vmatprep.subr.mxu0 0.0
      %4859 = vmatpush1.msra.mxu0 0.0
      %4860 = vmatprep.mubr.f32.mxu0 0.0
      %4861 = vmatmul.mubr.f32.gmra.mrb[0].mxu0 %v4791
      %v4862 = vpop.f32.mrb[0].mxu0
      %v4863 = vadd.f32 0.0, %v4862
      %v4864 = vpop.f32.mrb[0].mxu0
      %v4865 = vadd.f32 0.0, %v4864
      %4866 = vmatprep.mubr.f32.mxu0 0.0
      %4867 = vmatmul.mubr.f32.gmra.mrb[0].mxu0 %v4794
      %v4868 = vpop.f32.mrb[0].mxu0
      %v4869 = vadd.f32 0.0, %v4868
      %v4870 = vpop.f32.mrb[0].mxu0
      %v4871 = vadd.f32 0.0, %v4870
      %4872 = vdwg.mxu0
      %4873 = vmatprep.subr.mxu0 0.0
      %4874 = vmatpush1.msra.mxu0 %v4101
      %4875 = vmatprep.subr.mxu0 0.0
      %4876 = vmatpush1.msra.mxu0 %v4104
      %4877 = vmatprep.subr.mxu0 0.0
      %4878 = vmatpush1.msra.mxu0 0.0
      %4879 = vmatprep.subr.mxu0 0.0
      %4880 = vmatpush1.msra.mxu0 0.0
      %4881 = vmatprep.subr.mxu0 0.0
      %4882 = vmatpush1.msra.mxu0 0.0
      %4883 = vmatprep.subr.mxu0 0.0
      %4884 = vmatpush1.msra.mxu0 0.0
      %4885 = vmatprep.subr.mxu0 0.0
      %4886 = vmatpush1.msra.mxu0 0.0
      %4887 = vmatprep.subr.mxu0 0.0
      %4888 = vmatpush1.msra.mxu0 0.0
      %4889 = vmatprep.subr.mxu0 0.0
      %4890 = vmatpush1.msra.mxu0 0.0
      %4891 = vmatprep.subr.mxu0 0.0
      %4892 = vmatpush1.msra.mxu0 0.0
      %4893 = vmatprep.subr.mxu0 0.0
      %4894 = vmatpush1.msra.mxu0 0.0
      %4895 = vmatprep.subr.mxu0 0.0
      %4896 = vmatpush1.msra.mxu0 0.0
      %4897 = vmatprep.subr.mxu0 0.0
      %4898 = vmatpush1.msra.mxu0 0.0
      %4899 = vmatprep.subr.mxu0 0.0
      %4900 = vmatpush1.msra.mxu0 0.0
      %4901 = vmatprep.subr.mxu0 0.0
      %4902 = vmatpush1.msra.mxu0 0.0
      %4903 = vmatprep.subr.mxu0 0.0
      %4904 = vmatpush1.msra.mxu0 0.0
      %4905 = vmatprep.subr.mxu0 0.0
      %4906 = vmatpush1.msra.mxu0 0.0
      %4907 = vmatprep.subr.mxu0 0.0
      %4908 = vmatpush1.msra.mxu0 0.0
      %4909 = vmatprep.subr.mxu0 0.0
      %4910 = vmatpush1.msra.mxu0 0.0
      %4911 = vmatprep.subr.mxu0 0.0
      %4912 = vmatpush1.msra.mxu0 0.0
      %4913 = vmatprep.subr.mxu0 0.0
      %4914 = vmatpush1.msra.mxu0 0.0
      %4915 = vmatprep.subr.mxu0 0.0
      %4916 = vmatpush1.msra.mxu0 0.0
      %4917 = vmatprep.subr.mxu0 0.0
      %4918 = vmatpush1.msra.mxu0 0.0
      %4919 = vmatprep.subr.mxu0 0.0
      %4920 = vmatpush1.msra.mxu0 0.0
      %4921 = vmatprep.subr.mxu0 0.0
      %4922 = vmatpush1.msra.mxu0 0.0
      %4923 = vmatprep.subr.mxu0 0.0
      %4924 = vmatpush1.msra.mxu0 0.0
      %4925 = vmatprep.subr.mxu0 0.0
      %4926 = vmatpush1.msra.mxu0 0.0
      %4927 = vmatprep.subr.mxu0 0.0
      %4928 = vmatpush1.msra.mxu0 0.0
      %4929 = vmatprep.subr.mxu0 0.0
      %4930 = vmatpush1.msra.mxu0 0.0
      %4931 = vmatprep.subr.mxu0 0.0
      %4932 = vmatpush1.msra.mxu0 0.0
      %4933 = vmatprep.subr.mxu0 0.0
      %4934 = vmatpush1.msra.mxu0 0.0
      %4935 = vmatprep.subr.mxu0 0.0
      %4936 = vmatpush1.msra.mxu0 0.0
      %4937 = vmatprep.mubr.f32.mxu0 0.0
      %4938 = vmatmul.mubr.f32.gmra.mrb[0].mxu0 %v4791
      %v4939 = vpop.f32.mrb[0].mxu0
      %v4940 = vadd.f32 0.0, %v4939
      %v4941 = vpop.f32.mrb[0].mxu0
      %4942 = vmatprep.mubr.f32.mxu0 0.0
      %4943 = vmatmul.mubr.f32.gmra.mrb[0].mxu0 %v4794
      %v4944 = vpop.f32.mrb[0].mxu0
      %v4945 = vadd.f32 0.0, %v4944
      %v4946 = vpop.f32.mrb[0].mxu0
      %4947 = vdwg.mxu0
      %v4948 = vmul.f32 %v4863, %v4211
      %v4949 = vmul.f32 %v4865, %v4212
      %v4950 = vmul.f32 %v4940, %v4213
      %v4951 = vmul.f32 %v4869, %v4214
      %v4952 = vmul.f32 %v4871, %v4215
      %v4953 = vmul.f32 %v4945, %v4216
      %v4954 = vadd.f32 %v4948, %v4951
      %v4955 = vrot.slane %v4954, 4
      %v4956 = vadd.f32 %v4954, %v4955
      %v4957 = vrot.slane %v4956, 2
      %v4958 = vadd.f32 %v4956, %v4957
      %v4959 = vrot.slane %v4958, 1
      %v4960 = vadd.f32 %v4958, %v4959
      %v4961 = vadd.f32 %v4949, %v4952
      %v4962 = vrot.slane %v4961, 4
      %v4963 = vadd.f32 %v4961, %v4962
      %v4964 = vrot.slane %v4963, 2
      %v4965 = vadd.f32 %v4963, %v4964
      %v4966 = vrot.slane %v4965, 1
      %v4967 = vadd.f32 %v4965, %v4966
      %v4968 = vsel %vm3476, %v4950, 0.0
      %v4969 = vsel %vm3476, %v4953, 0.0
      %v4970 = vadd.f32 %v4968, %v4969
      %v4971 = vrot.slane %v4970, 4
      %v4972 = vadd.f32 %v4970, %v4971
      %v4973 = vrot.slane %v4972, 2
      %v4974 = vadd.f32 %v4972, %v4973
      %v4975 = vrot.slane %v4974, 1
      %v4976 = vadd.f32 %v4974, %v4975
      %v4977 = vsel %vm1284, %v4390, %v4580
      %v4978 = vsel %vm1284, %v4397, %v4587
      %v4979 = vsel %vm1284, %v4406, %v4596
      %v4980 = vsel %vm1288, %v4977, %v4770
      %v4981 = vsel %vm1288, %v4978, %v4777
      %v4982 = vsel %vm1288, %v4979, %v4786
      %v4983 = vsel %vm1292, %v4980, %v4960
      %v4984 = vsel %vm1292, %v4981, %v4967
      %v4985 = vsel %vm1292, %v4982, %v4976
      %v4986 = vlaneseq
      %v4987 = vshrl.u32 %v4986, 7
      %v4988 = vsub.s32 4, %v4987
      %v4989 = vrot.slane %v3135, %v4988
      %v4990 = vlaneseq
      %v4991 = vshrl.u32 %v4990, 7
      %v4992 = vsub.s32 4, %v4991
      %v4993 = vrot.slane %v3137, %v4992
      %v4994 = vlaneseq
      %v4995 = vshrl.u32 %v4994, 7
      %v4996 = vsub.s32 4, %v4995
      %v4997 = vrot.slane %v3139, %v4996
      %v4998 = vmul.f32 %v3979, %v4989
      %v4999 = vmul.f32 %v3980, %v4993
      %v5000 = vmul.f32 %v3981, %v4997
      %v5001 = vsub.f32 1.0, %v3135
      %v5002 = vsub.f32 1.0, %v3137
      %v5003 = vsub.f32 1.0, %v3139
      %v5004 = vlaneseq
      %v5005 = vshrl.u32 %v5004, 7
      %v5006 = vsub.s32 4, %v5005
      %v5007 = vrot.slane %v5001, %v5006
      %v5008 = vlaneseq
      %v5009 = vshrl.u32 %v5008, 7
      %v5010 = vsub.s32 4, %v5009
      %v5011 = vrot.slane %v5002, %v5010
      %v5012 = vlaneseq
      %v5013 = vshrl.u32 %v5012, 7
      %v5014 = vsub.s32 4, %v5013
      %v5015 = vrot.slane %v5003, %v5014
      %v5016 = vmul.f32 %v4983, %v5007
      %v5017 = vmul.f32 %v4984, %v5011
      %v5018 = vmul.f32 %v4985, %v5015
      %v5019 = vadd.f32 %v4998, %v5016
      %v5020 = vadd.f32 %v4999, %v5017
      %v5021 = vadd.f32 %v5000, %v5018
      %v5024 = vcombine.low %v5019, %v5020
      %5026 = vst [vmem:[%s426] sm:$0xff] %v5024
      %vm5027 = vcmask 257024
      %5028 = vst.msk [vmem:[%s426 + $0x8] sm:$0xf] %vm5027, %v5021
      %p5029 = scmp.lt.s32.totalorder %s22, 1
      %s5030 = scalar_select %p5029, %s22, 1
      %s5031 = smul.addr %s5030, 3
      %s5032 = smul.addr %s5031, 4
      %s5033 = scalar_lea.vmem %s11, %s5032
      // Predicated region
      $region65: #{aligned_module_v2_forward.1} parent=63 // pred_check
        %p5034 = pneg %p286
      $region66: #{aligned_module_v2_forward.1} parent=63 // pred_check_branch
        %5036 = sbr.rel (%p5034) target = $region68
      $region67: #{aligned_module_v2_forward.1} parent=63 // pred_region
        _
      $region68: #{aligned_module_v2_forward.1} parent=63 // pred_fallthru
        _
    $region64: #{aligned_module_v2_forward.1} parent=5 // pred_fallthru
      _
    %p5037 = scmp.le.s32.totalorder 2, %s17
    // Predicated region
    $region69: #{aligned_module_v2_forward.1} parent=5 // pred_check
      %p5038 = pneg %p5037
    $region70: #{aligned_module_v2_forward.1} parent=5 // pred_check_branch
      %5040 = sbr.rel (%p5038) target = $region72
    $region71: #{aligned_module_v2_forward.1} parent=5 // pred_region
      %s5041 = ssub.s32 %s17, 2
      // Predicated region
      $region73: #{aligned_module_v2_forward.1} parent=71 // pred_check
        %p5042 = pneg %p292
      $region74: #{aligned_module_v2_forward.1} parent=71 // pred_check_branch
        %5044 = sbr.rel (%p5042) target = $region76
      $region75: #{aligned_module_v2_forward.1} parent=71 // pred_region
        %p5045 = scmp.lt.s32.totalorder %s23, 1
        %s5046 = scalar_select %p5045, %s23, 1
        %s5047 = smul.addr %s5046, 3
        %s5048 = smul.addr %s5047, 4
        %s5049 = scalar_lea.vmem %s11, %s5048
      $region76: #{aligned_module_v2_forward.1} parent=71 // pred_fallthru
        _
    $region72: #{aligned_module_v2_forward.1} parent=5 // pred_fallthru
      _
  $region6: #{aligned_module_v2_forward.1} parent=0 // loop_footer
    %s21 = sadd.s32 1, %s17
  $region7: #{aligned_module_v2_forward.1} parent=0 // loop_footer_branch
    %16 = sbr.rel target = $region3
  $region8: #{aligned_module_v2_forward.1} parent=0 // loop_exit
    _

</llo_original>
